<compile_context>
chip_gen: v5e
topology: v5e:2x2
jax: 0.10.0
libtpu: 0.0.40
codegen_flags: <defaults>
</compile_context>

<pallas_src>
import jax
import jax.numpy as jnp
from jax.experimental import pallas as pl
from jax.experimental.pallas import tpu as pltpu

LANES = 128
_VMEM_LIMIT = 32 * 1024 * 1024
_BN_EPS = 1e-5


def _round_up(x, m):
    return ((x + m - 1) // m) * m


# ---------------------------------------------------------------------------
# Kernel A: 3x3 conv (with the 1x1 conv pre-folded into the weights) + fused
# partial BatchNorm statistics.
#   x_ref   : (H+2, W+2, Ci)  zero-padded input image (lane-padded channels)
#   w_ref   : (3, 3, Ci, Co)  bf16 weights
#   y_ref   : (H+2, W+2, Co)  conv result written into the interior, zero border
#                             (pre-padded so the next conv needs no wrapper pad)
#   sum_ref / ssq_ref : (8, Co) per-image partial channel sums (row 0 is used)
# ---------------------------------------------------------------------------
def _conv3x3_stats_kernel(x_ref, w_ref, y_ref, sum_ref, ssq_ref):
    Hp2, Wp2, Ci = x_ref.shape
    H, W = Hp2 - 2, Wp2 - 2
    Co = w_ref.shape[-1]

    xb = x_ref[...].astype(jnp.bfloat16)               # single cast, bf16 MXU path
    acc = jnp.zeros((H * W, Co), jnp.float32)
    for kh in range(3):
        for kw in range(3):
            xw = xb[kh:kh + H, kw:kw + W, :].reshape(H * W, Ci)
            acc += jnp.dot(xw, w_ref[kh, kw, :, :],
                           preferred_element_type=jnp.float32)

    # Spatially pre-padded output: zero border, conv result in the interior.
    y_ref[...] = jnp.zeros(y_ref.shape, y_ref.dtype)
    y_ref[pl.ds(1, H), pl.ds(1, W), :] = acc.reshape(H, W, Co)

    # Partial BatchNorm statistics for this image (reduced across images in the wrapper).
    s = jnp.sum(acc, axis=0, keepdims=True)             # (1, Co)
    q = jnp.sum(acc * acc, axis=0, keepdims=True)       # (1, Co)
    sum_ref[...] = jnp.broadcast_to(s, sum_ref.shape)
    ssq_ref[...] = jnp.broadcast_to(q, ssq_ref.shape)


def conv3x3_fused_stats(x_pad, w):
    N, Hp2, Wp2, Ci = x_pad.shape
    Co = w.shape[-1]
    out_shape = (
        jax.ShapeDtypeStruct((N, Hp2, Wp2, Co), jnp.float32),
        jax.ShapeDtypeStruct((N, 8, Co), jnp.float32),
        jax.ShapeDtypeStruct((N, 8, Co), jnp.float32),
    )
    return pl.pallas_call(
        _conv3x3_stats_kernel,
        out_shape=out_shape,
        grid=(N,),
        in_specs=[
            pl.BlockSpec((None, Hp2, Wp2, Ci), lambda n: (n, 0, 0, 0)),
            pl.BlockSpec((3, 3, Ci, Co), lambda n: (0, 0, 0, 0)),
        ],
        out_specs=(
            pl.BlockSpec((None, Hp2, Wp2, Co), lambda n: (n, 0, 0, 0)),
            pl.BlockSpec((None, 8, Co), lambda n: (n, 0, 0)),
            pl.BlockSpec((None, 8, Co), lambda n: (n, 0, 0)),
        ),
        compiler_params=pltpu.CompilerParams(
            dimension_semantics=("parallel",),
            vmem_limit_bytes=_VMEM_LIMIT),
    )(x_pad, w)


# ---------------------------------------------------------------------------
# Kernel B: fused [BN affine on the input] + 3x3 conv + partial BN statistics.
# The input is the spatially pre-padded conv1 output; the previous BatchNorm's
# per-channel scale/shift is applied to the interior only (border stays zero).
# ---------------------------------------------------------------------------
def _bn_conv3x3_stats_kernel(x_ref, scale_ref, shift_ref, w_ref,
                             y_ref, sum_ref, ssq_ref):
    Hp2, Wp2, Ci = x_ref.shape
    H, W = Hp2 - 2, Wp2 - 2
    Co = w_ref.shape[-1]

    x = x_ref[...]
    scale = scale_ref[...].reshape(1, 1, Ci)
    shift = shift_ref[...].reshape(1, 1, Ci)
    row = jax.lax.broadcasted_iota(jnp.int32, (Hp2, Wp2, Ci), 0)
    col = jax.lax.broadcasted_iota(jnp.int32, (Hp2, Wp2, Ci), 1)
    interior = (row >= 1) & (row <= H) & (col >= 1) & (col <= W)
    xb = jnp.where(interior, x * scale + shift, 0.0).astype(jnp.bfloat16)

    acc = jnp.zeros((H * W, Co), jnp.float32)
    for kh in range(3):
        for kw in range(3):
            xw = xb[kh:kh + H, kw:kw + W, :].reshape(H * W, Ci)
            acc += jnp.dot(xw, w_ref[kh, kw, :, :],
                           preferred_element_type=jnp.float32)

    y_ref[...] = acc
    s = jnp.sum(acc, axis=0, keepdims=True)
    q = jnp.sum(acc * acc, axis=0, keepdims=True)
    sum_ref[...] = jnp.broadcast_to(s, sum_ref.shape)
    ssq_ref[...] = jnp.broadcast_to(q, ssq_ref.shape)


def bn_conv3x3_fused_stats(x_pad, scale, shift, w):
    N, Hp2, Wp2, Ci = x_pad.shape
    H, W = Hp2 - 2, Wp2 - 2
    Co = w.shape[-1]
    out_shape = (
        jax.ShapeDtypeStruct((N * H * W, Co), jnp.float32),
        jax.ShapeDtypeStruct((N, 8, Co), jnp.float32),
        jax.ShapeDtypeStruct((N, 8, Co), jnp.float32),
    )
    return pl.pallas_call(
        _bn_conv3x3_stats_kernel,
        out_shape=out_shape,
        grid=(N,),
        in_specs=[
            pl.BlockSpec((None, Hp2, Wp2, Ci), lambda n: (n, 0, 0, 0)),
            pl.BlockSpec((1, Ci), lambda n: (0, 0)),
            pl.BlockSpec((1, Ci), lambda n: (0, 0)),
            pl.BlockSpec((3, 3, Ci, Co), lambda n: (0, 0, 0, 0)),
        ],
        out_specs=(
            pl.BlockSpec((H * W, Co), lambda n: (n, 0)),
            pl.BlockSpec((None, 8, Co), lambda n: (n, 0, 0)),
            pl.BlockSpec((None, 8, Co), lambda n: (n, 0, 0)),
        ),
        compiler_params=pltpu.CompilerParams(
            dimension_semantics=("parallel",),
            vmem_limit_bytes=_VMEM_LIMIT),
    )(x_pad, scale, shift, w)


# ---------------------------------------------------------------------------
# Kernel C: per-channel affine (BatchNorm apply), tiled over rows.
# ---------------------------------------------------------------------------
def _affine_kernel(x_ref, scale_ref, shift_ref, o_ref):
    o_ref[...] = x_ref[...] * scale_ref[...] + shift_ref[...]


def affine_tiled(x, scale, shift, tm=512):
    M, C = x.shape
    tm = min(tm, M)
    Mp = _round_up(M, tm)
    if Mp != M:
        x = jnp.pad(x, ((0, Mp - M), (0, 0)))
    y = pl.pallas_call(
        _affine_kernel,
        out_shape=jax.ShapeDtypeStruct((Mp, C), jnp.float32),
        grid=(Mp // tm,),
        in_specs=[
            pl.BlockSpec((tm, C), lambda i: (i, 0)),
            pl.BlockSpec((1, C), lambda i: (0, 0)),
            pl.BlockSpec((1, C), lambda i: (0, 0)),
        ],
        out_specs=pl.BlockSpec((tm, C), lambda i: (i, 0)),
        compiler_params=pltpu.CompilerParams(
            dimension_semantics=("parallel",),
            vmem_limit_bytes=_VMEM_LIMIT),
    )(x, scale, shift)
    return y[:M] if Mp != M else y


# ---------------------------------------------------------------------------
# Wrapper glue
# ---------------------------------------------------------------------------
def _bn_affine_from_partials(sum_p, ssq_p, gamma, beta, count):
    """Training-mode BN: reduce per-image partials -> per-channel scale/shift."""
    s = jnp.sum(sum_p[:, 0, :], axis=0)
    q = jnp.sum(ssq_p[:, 0, :], axis=0)
    mean = s / count
    var = jnp.maximum(q / count - mean * mean, 0.0)     # biased variance (PyTorch train)
    scale = gamma * jax.lax.rsqrt(var + _BN_EPS)
    shift = beta - mean * scale
    return scale.reshape(1, -1), shift.reshape(1, -1)


def init_params(key, in_c, out_c):
    k1, k2, k3 = jax.random.split(key, 3)
    return dict(
        w1=jax.random.normal(k1, (3, 3, in_c, in_c), jnp.float32) * 0.1,
        w1x1=jax.random.normal(k2, (in_c, out_c), jnp.float32) * 0.1,
        g1=jnp.ones((out_c,), jnp.float32),
        b1=jnp.zeros((out_c,), jnp.float32),
        w2=jax.random.normal(k3, (3, 3, out_c, out_c), jnp.float32) * 0.1,
        g2=jnp.ones((out_c,), jnp.float32),
        b2=jnp.zeros((out_c,), jnp.float32),
    )


@jax.jit
def dense_layer_forward(params, x_nchw):
    N, Cin, H, W = x_nchw.shape
    Cout = params["w1x1"].shape[-1]
    Cin_p = _round_up(Cin, LANES)
    Cout_p = _round_up(Cout, LANES)
    M = N * H * W

    x_nhwc = jnp.transpose(x_nchw, (0, 2, 3, 1))                 # NCHW -> NHWC

    # --- weight prep (tiny, done once per call under jit) -------------------
    # Fold conv2d_1 (3x3) and conv2d_1_ (1x1) into a single 3x3 conv weight.
    w_fold = (params["w1"].reshape(9 * Cin, Cin) @ params["w1x1"]
              ).reshape(3, 3, Cin, Cout)
    w1p = jnp.zeros((3, 3, Cin_p, Cout_p), jnp.bfloat16)
    w1p = w1p.at[:, :, :Cin, :Cout].set(w_fold.astype(jnp.bfloat16))
    w2p = jnp.zeros((3, 3, Cout_p, Cout_p), jnp.bfloat16)
    w2p = w2p.at[:, :, :Cout, :Cout].set(params["w2"].astype(jnp.bfloat16))
    g1 = jnp.zeros((Cout_p,), jnp.float32).at[:Cout].set(params["g1"])
    b1 = jnp.zeros((Cout_p,), jnp.float32).at[:Cout].set(params["b1"])
    g2 = jnp.zeros((Cout_p,), jnp.float32).at[:Cout].set(params["g2"])
    b2 = jnp.zeros((Cout_p,), jnp.float32).at[:Cout].set(params["b2"])

    # Zero-pad: +1 spatial halo for the 3x3 conv, channels up to a multiple of
    # 128 so every VMEM tile is lane-dense.
    x_pad = jnp.pad(x_nhwc, ((0, 0), (1, 1), (1, 1), (0, Cin_p - Cin)))

    # conv2d_1 + conv2d_1_ (folded) with fused partial BN1 statistics.
    y1_pad, s1, q1 = conv3x3_fused_stats(x_pad, w1p)
    scale1, shift1 = _bn_affine_from_partials(s1, q1, g1, b1, M)

    # batch_normal_1 affine folded into conv2d_2's input + fused BN2 partial stats.
    y2, s2, q2 = bn_conv3x3_fused_stats(y1_pad, scale1, shift1, w2p)
    scale2, shift2 = _bn_affine_from_partials(s2, q2, g2, b2, M)

    # batch_normal_2 affine, tiled over rows ('parallel' grid for v7x megacore).
    y2n = affine_tiled(y2, scale2, shift2)                       # (M, Cout_p)

    # TODO(synk): training dropout (drop_rate > 0) would use pltpu.prng_seed +
    # pltpu.prng_random_bits in the affine kernel; this config uses drop_rate = 0.0.

    out = y2n[:, :Cout].reshape(N, H, W, Cout)
    y = jnp.concatenate([x_nhwc, out], axis=-1)                  # torch.cat([x, out], 1)
    return jnp.transpose(y, (0, 3, 1, 2))                        # back to NCHW


# ---------------------------------------------------------------------------
# Pure-JAX reference (sanity check)
# ---------------------------------------------------------------------------
def reference_forward(params, x_nchw):
    def conv(x, w_hwio):
        return jax.lax.conv_general_dilated(
            x, w_hwio, window_strides=(1, 1), padding="SAME",
            dimension_numbers=("NCHW", "HWIO", "NCHW"),
            precision=jax.lax.Precision.HIGHEST)

    def bn(x, g, b):
        mean = jnp.mean(x, axis=(0, 2, 3), keepdims=True)
        var = jnp.mean((x - mean) ** 2, axis=(0, 2, 3), keepdims=True)
        return (x - mean) * jax.lax.rsqrt(var + _BN_EPS) * g[None, :, None, None] \
            + b[None, :, None, None]

    h = conv(x_nchw, params["w1"])
    h = conv(h, params["w1x1"][None, None])
    h = bn(h, params["g1"], params["b1"])
    h = conv(h, params["w2"])
    h = bn(h, params["g2"], params["b2"])
    return jnp.concatenate([x_nchw, h], axis=1)


if __name__ == "__main__":
    in_c, out_c = 4, 8
    N, H, W = 2, 16, 16

    key = jax.random.PRNGKey(0)
    kx, kp = jax.random.split(key)
    x = jax.random.normal(kx, (N, in_c, H, W), jnp.float32)
    params = init_params(kp, in_c, out_c)

    out = jax.block_until_ready(dense_layer_forward(params, x))
    assert out.shape == (N, in_c + out_c, H, W), out.shape

    ref = jax.block_until_ready(reference_forward(params, x))
    max_err = float(jnp.max(jnp.abs(out - ref)))
    # bf16 MXU path vs f32 HIGHEST reference: expect ~1e-2 worst-case error.
    assert jnp.allclose(out, ref, atol=3e-2, rtol=3e-2), max_err

    print("KERNEL_OK")
</pallas_src>

<mosaic_0001>
module attributes {stable_mosaic.version = 11 : i64} {
  func.func @_affine_kernel(%arg0: i32, %arg1: memref<512x128xf32, #tpu.memory_space<vmem>>, %arg2: memref<1x128xf32, #tpu.memory_space<vmem>>, %arg3: memref<1x128xf32, #tpu.memory_space<vmem>>, %arg4: memref<512x128xf32, #tpu.memory_space<vmem>>) attributes {dimension_semantics = [#tpu.dimension_semantics<parallel>], iteration_bounds = array<i64: 1>, scalar_prefetch = 0 : i64, scratch_operands = 0 : i64, tpu.core_type = #tpu.core_type<tc>, window_params = [{transform_indices = @transform_0, window_bounds = array<i64: 512, 128>}, {pipeline_mode = #tpu.pipeline_mode<synchronous>, transform_indices = @transform_1, window_bounds = array<i64: 1, 128>}, {pipeline_mode = #tpu.pipeline_mode<synchronous>, transform_indices = @transform_2, window_bounds = array<i64: 1, 128>}, {transform_indices = @transform_3, window_bounds = array<i64: 512, 128>}]} {
    %c0 = arith.constant 0 : index
    %c0_0 = arith.constant 0 : index
    %0 = vector.load %arg1[%c0, %c0_0] : memref<512x128xf32, #tpu.memory_space<vmem>>, vector<512x128xf32>
    %c0_1 = arith.constant 0 : index
    %c0_2 = arith.constant 0 : index
    %1 = vector.load %arg2[%c0_1, %c0_2] : memref<1x128xf32, #tpu.memory_space<vmem>>, vector<1x128xf32>
    %2 = vector.broadcast %1 : vector<1x128xf32> to vector<512x128xf32>
    %3 = arith.mulf %0, %2 : vector<512x128xf32>
    %c0_3 = arith.constant 0 : index
    %c0_4 = arith.constant 0 : index
    %4 = vector.load %arg3[%c0_3, %c0_4] : memref<1x128xf32, #tpu.memory_space<vmem>>, vector<1x128xf32>
    %5 = vector.broadcast %4 : vector<1x128xf32> to vector<512x128xf32>
    %6 = arith.addf %3, %5 : vector<512x128xf32>
    %c0_5 = arith.constant 0 : index
    %c0_6 = arith.constant 0 : index
    %7 = vector.load %arg4[%c0_5, %c0_6] : memref<512x128xf32, #tpu.memory_space<vmem>>, vector<512x128xf32>
    tpu.vector_store %arg4[%c0_5, %c0_6], %6 {strides = array<i32>} : memref<512x128xf32, #tpu.memory_space<vmem>>, vector<512x128xf32>,
    return
  }
  func.func @transform_0(%arg0: i32) -> (i32, i32) {
    %c0_i32 = arith.constant 0 : i32
    %c0_i32_0 = arith.constant 0 : i32
    return %arg0, %c0_i32 : i32, i32
  }
  func.func @transform_1(%arg0: i32) -> (i32, i32) {
    %c0_i32 = arith.constant 0 : i32
    %c0_i32_0 = arith.constant 0 : i32
    %c0_i32_1 = arith.constant 0 : i32
    return %c0_i32, %c0_i32_0 : i32, i32
  }
  func.func @transform_2(%arg0: i32) -> (i32, i32) {
    %c0_i32 = arith.constant 0 : i32
    %c0_i32_0 = arith.constant 0 : i32
    %c0_i32_1 = arith.constant 0 : i32
    return %c0_i32, %c0_i32_0 : i32, i32
  }
  func.func @transform_3(%arg0: i32) -> (i32, i32) {
    %c0_i32 = arith.constant 0 : i32
    %c0_i32_0 = arith.constant 0 : i32
    return %arg0, %c0_i32 : i32, i32
  }
}

module attributes {stable_mosaic.version = 11 : i64} {
  func.func @_conv3x3_stats_kernel(%arg0: i32, %arg1: memref<1x18x18x128xf32, #tpu.memory_space<vmem>>, %arg2: memref<3x3x128x128xbf16, #tpu.memory_space<vmem>>, %arg3: memref<1x18x18x128xf32, #tpu.memory_space<vmem>>, %arg4: memref<1x8x128xf32, #tpu.memory_space<vmem>>, %arg5: memref<1x8x128xf32, #tpu.memory_space<vmem>>) attributes {dimension_semantics = [#tpu.dimension_semantics<parallel>], iteration_bounds = array<i64: 2>, scalar_prefetch = 0 : i64, scratch_operands = 0 : i64, tpu.core_type = #tpu.core_type<tc>, window_params = [{transform_indices = @transform_0, window_bounds = array<i64: 1, 18, 18, 128>}, {pipeline_mode = #tpu.pipeline_mode<synchronous>, transform_indices = @transform_1, window_bounds = array<i64: 3, 3, 128, 128>}, {transform_indices = @transform_2, window_bounds = array<i64: 1, 18, 18, 128>}, {transform_indices = @transform_3, window_bounds = array<i64: 1, 8, 128>}, {transform_indices = @transform_4, window_bounds = array<i64: 1, 8, 128>}]} {
    %c0 = arith.constant 0 : index
    %c0_0 = arith.constant 0 : index
    %c0_1 = arith.constant 0 : index
    %c0_2 = arith.constant 0 : index
    %0 = vector.load %arg1[%c0, %c0_0, %c0_1, %c0_2] : memref<1x18x18x128xf32, #tpu.memory_space<vmem>>, vector<1x18x18x128xf32>
    %1 = vector.shape_cast %0 : vector<1x18x18x128xf32> to vector<18x18x128xf32>
    %2 = arith.truncf %1 : vector<18x18x128xf32> to vector<18x18x128xbf16>
    %cst = arith.constant 0.000000e+00 : f32
    %3 = vector.broadcast %cst : f32 to vector<256x128xf32>
    %4 = vector.extract_strided_slice %2 {offsets = [0, 0, 0], sizes = [16, 16, 128], strides = [1, 1, 1]} : vector<18x18x128xbf16> to vector<16x16x128xbf16>
    %5 = vector.shape_cast %4 : vector<16x16x128xbf16> to vector<256x128xbf16>
    %c0_3 = arith.constant 0 : index
    %c0_4 = arith.constant 0 : index
    %c0_5 = arith.constant 0 : index
    %c0_6 = arith.constant 0 : index
    %6 = vector.load %arg2[%c0_3, %c0_4, %c0_5, %c0_6] : memref<3x3x128x128xbf16, #tpu.memory_space<vmem>>, vector<1x1x128x128xbf16>
    %7 = vector.shape_cast %6 : vector<1x1x128x128xbf16> to vector<128x128xbf16>
    %cst_7 = arith.constant dense<0.000000e+00> : vector<256x128xf32>
    %8 = tpu.matmul %5, %7, %cst_7 {dimension_numbers = #tpu.dot_dimension_numbers<[1], [0], [0], [1], [0, 0, 1, 1], [], []>} : vector<256x128xbf16>, vector<128x128xbf16>, vector<256x128xf32> -> vector<256x128xf32>
    %9 = arith.addf %3, %8 : vector<256x128xf32>
    %10 = vector.extract_strided_slice %2 {offsets = [0, 1, 0], sizes = [16, 16, 128], strides = [1, 1, 1]} : vector<18x18x128xbf16> to vector<16x16x128xbf16>
    %11 = vector.shape_cast %10 : vector<16x16x128xbf16> to vector<256x128xbf16>
    %c0_8 = arith.constant 0 : index
    %c1 = arith.constant 1 : index
    %c0_9 = arith.constant 0 : index
    %c0_10 = arith.constant 0 : index
    %12 = vector.load %arg2[%c0_8, %c1, %c0_9, %c0_10] : memref<3x3x128x128xbf16, #tpu.memory_space<vmem>>, vector<1x1x128x128xbf16>
    %13 = vector.shape_cast %12 : vector<1x1x128x128xbf16> to vector<128x128xbf16>
    %cst_11 = arith.constant dense<0.000000e+00> : vector<256x128xf32>
    %14 = tpu.matmul %11, %13, %cst_11 {dimension_numbers = #tpu.dot_dimension_numbers<[1], [0], [0], [1], [0, 0, 1, 1], [], []>} : vector<256x128xbf16>, vector<128x128xbf16>, vector<256x128xf32> -> vector<256x128xf32>
    %15 = arith.addf %9, %14 : vector<256x128xf32>
    %16 = vector.extract_strided_slice %2 {offsets = [0, 2, 0], sizes = [16, 16, 128], strides = [1, 1, 1]} : vector<18x18x128xbf16> to vector<16x16x128xbf16>
    %17 = vector.shape_cast %16 : vector<16x16x128xbf16> to vector<256x128xbf16>
    %c0_12 = arith.constant 0 : index
    %c2 = arith.constant 2 : index
    %c0_13 = arith.constant 0 : index
    %c0_14 = arith.constant 0 : index
    %18 = vector.load %arg2[%c0_12, %c2, %c0_13, %c0_14] : memref<3x3x128x128xbf16, #tpu.memory_space<vmem>>, vector<1x1x128x128xbf16>
    %19 = vector.shape_cast %18 : vector<1x1x128x128xbf16> to vector<128x128xbf16>
    %cst_15 = arith.constant dense<0.000000e+00> : vector<256x128xf32>
    %20 = tpu.matmul %17, %19, %cst_15 {dimension_numbers = #tpu.dot_dimension_numbers<[1], [0], [0], [1], [0, 0, 1, 1], [], []>} : vector<256x128xbf16>, vector<128x128xbf16>, vector<256x128xf32> -> vector<256x128xf32>
    %21 = arith.addf %15, %20 : vector<256x128xf32>
    %22 = vector.extract_strided_slice %2 {offsets = [1, 0, 0], sizes = [16, 16, 128], strides = [1, 1, 1]} : vector<18x18x128xbf16> to vector<16x16x128xbf16>
    %23 = vector.shape_cast %22 : vector<16x16x128xbf16> to vector<256x128xbf16>
    %c1_16 = arith.constant 1 : index
    %c0_17 = arith.constant 0 : index
    %c0_18 = arith.constant 0 : index
    %c0_19 = arith.constant 0 : index
    %24 = vector.load %arg2[%c1_16, %c0_17, %c0_18, %c0_19] : memref<3x3x128x128xbf16, #tpu.memory_space<vmem>>, vector<1x1x128x128xbf16>
    %25 = vector.shape_cast %24 : vector<1x1x128x128xbf16> to vector<128x128xbf16>
    %cst_20 = arith.constant dense<0.000000e+00> : vector<256x128xf32>
    %26 = tpu.matmul %23, %25, %cst_20 {dimension_numbers = #tpu.dot_dimension_numbers<[1], [0], [0], [1], [0, 0, 1, 1], [], []>} : vector<256x128xbf16>, vector<128x128xbf16>, vector<256x128xf32> -> vector<256x128xf32>
    %27 = arith.addf %21, %26 : vector<256x128xf32>
    %28 = vector.extract_strided_slice %2 {offsets = [1, 1, 0], sizes = [16, 16, 128], strides = [1, 1, 1]} : vector<18x18x128xbf16> to vector<16x16x128xbf16>
    %29 = vector.shape_cast %28 : vector<16x16x128xbf16> to vector<256x128xbf16>
    %c1_21 = arith.constant 1 : index
    %c1_22 = arith.constant 1 : index
    %c0_23 = arith.constant 0 : index
    %c0_24 = arith.constant 0 : index
    %30 = vector.load %arg2[%c1_21, %c1_22, %c0_23, %c0_24] : memref<3x3x128x128xbf16, #tpu.memory_space<vmem>>, vector<1x1x128x128xbf16>
    %31 = vector.shape_cast %30 : vector<1x1x128x128xbf16> to vector<128x128xbf16>
    %cst_25 = arith.constant dense<0.000000e+00> : vector<256x128xf32>
    %32 = tpu.matmul %29, %31, %cst_25 {dimension_numbers = #tpu.dot_dimension_numbers<[1], [0], [0], [1], [0, 0, 1, 1], [], []>} : vector<256x128xbf16>, vector<128x128xbf16>, vector<256x128xf32> -> vector<256x128xf32>
    %33 = arith.addf %27, %32 : vector<256x128xf32>
    %34 = vector.extract_strided_slice %2 {offsets = [1, 2, 0], sizes = [16, 16, 128], strides = [1, 1, 1]} : vector<18x18x128xbf16> to vector<16x16x128xbf16>
    %35 = vector.shape_cast %34 : vector<16x16x128xbf16> to vector<256x128xbf16>
    %c1_26 = arith.constant 1 : index
    %c2_27 = arith.constant 2 : index
    %c0_28 = arith.constant 0 : index
    %c0_29 = arith.constant 0 : index
    %36 = vector.load %arg2[%c1_26, %c2_27, %c0_28, %c0_29] : memref<3x3x128x128xbf16, #tpu.memory_space<vmem>>, vector<1x1x128x128xbf16>
    %37 = vector.shape_cast %36 : vector<1x1x128x128xbf16> to vector<128x128xbf16>
    %cst_30 = arith.constant dense<0.000000e+00> : vector<256x128xf32>
    %38 = tpu.matmul %35, %37, %cst_30 {dimension_numbers = #tpu.dot_dimension_numbers<[1], [0], [0], [1], [0, 0, 1, 1], [], []>} : vector<256x128xbf16>, vector<128x128xbf16>, vector<256x128xf32> -> vector<256x128xf32>
    %39 = arith.addf %33, %38 : vector<256x128xf32>
    %40 = vector.extract_strided_slice %2 {offsets = [2, 0, 0], sizes = [16, 16, 128], strides = [1, 1, 1]} : vector<18x18x128xbf16> to vector<16x16x128xbf16>
    %41 = vector.shape_cast %40 : vector<16x16x128xbf16> to vector<256x128xbf16>
    %c2_31 = arith.constant 2 : index
    %c0_32 = arith.constant 0 : index
    %c0_33 = arith.constant 0 : index
    %c0_34 = arith.constant 0 : index
    %42 = vector.load %arg2[%c2_31, %c0_32, %c0_33, %c0_34] : memref<3x3x128x128xbf16, #tpu.memory_space<vmem>>, vector<1x1x128x128xbf16>
    %43 = vector.shape_cast %42 : vector<1x1x128x128xbf16> to vector<128x128xbf16>
    %cst_35 = arith.constant dense<0.000000e+00> : vector<256x128xf32>
    %44 = tpu.matmul %41, %43, %cst_35 {dimension_numbers = #tpu.dot_dimension_numbers<[1], [0], [0], [1], [0, 0, 1, 1], [], []>} : vector<256x128xbf16>, vector<128x128xbf16>, vector<256x128xf32> -> vector<256x128xf32>
    %45 = arith.addf %39, %44 : vector<256x128xf32>
    %46 = vector.extract_strided_slice %2 {offsets = [2, 1, 0], sizes = [16, 16, 128], strides = [1, 1, 1]} : vector<18x18x128xbf16> to vector<16x16x128xbf16>
    %47 = vector.shape_cast %46 : vector<16x16x128xbf16> to vector<256x128xbf16>
    %c2_36 = arith.constant 2 : index
    %c1_37 = arith.constant 1 : index
    %c0_38 = arith.constant 0 : index
    %c0_39 = arith.constant 0 : index
    %48 = vector.load %arg2[%c2_36, %c1_37, %c0_38, %c0_39] : memref<3x3x128x128xbf16, #tpu.memory_space<vmem>>, vector<1x1x128x128xbf16>
    %49 = vector.shape_cast %48 : vector<1x1x128x128xbf16> to vector<128x128xbf16>
    %cst_40 = arith.constant dense<0.000000e+00> : vector<256x128xf32>
    %50 = tpu.matmul %47, %49, %cst_40 {dimension_numbers = #tpu.dot_dimension_numbers<[1], [0], [0], [1], [0, 0, 1, 1], [], []>} : vector<256x128xbf16>, vector<128x128xbf16>, vector<256x128xf32> -> vector<256x128xf32>
    %51 = arith.addf %45, %50 : vector<256x128xf32>
    %52 = vector.extract_strided_slice %2 {offsets = [2, 2, 0], sizes = [16, 16, 128], strides = [1, 1, 1]} : vector<18x18x128xbf16> to vector<16x16x128xbf16>
    %53 = vector.shape_cast %52 : vector<16x16x128xbf16> to vector<256x128xbf16>
    %c2_41 = arith.constant 2 : index
    %c2_42 = arith.constant 2 : index
    %c0_43 = arith.constant 0 : index
    %c0_44 = arith.constant 0 : index
    %54 = vector.load %arg2[%c2_41, %c2_42, %c0_43, %c0_44] : memref<3x3x128x128xbf16, #tpu.memory_space<vmem>>, vector<1x1x128x128xbf16>
    %55 = vector.shape_cast %54 : vector<1x1x128x128xbf16> to vector<128x128xbf16>
    %cst_45 = arith.constant dense<0.000000e+00> : vector<256x128xf32>
    %56 = tpu.matmul %53, %55, %cst_45 {dimension_numbers = #tpu.dot_dimension_numbers<[1], [0], [0], [1], [0, 0, 1, 1], [], []>} : vector<256x128xbf16>, vector<128x128xbf16>, vector<256x128xf32> -> vector<256x128xf32>
    %57 = arith.addf %51, %56 : vector<256x128xf32>
    %cst_46 = arith.constant 0.000000e+00 : f32
    %58 = vector.broadcast %cst_46 : f32 to vector<18x18x128xf32>
    %c0_47 = arith.constant 0 : index
    %c0_48 = arith.constant 0 : index
    %c0_49 = arith.constant 0 : index
    %c0_50 = arith.constant 0 : index
    %59 = vector.load %arg3[%c0_47, %c0_48, %c0_49, %c0_50] : memref<1x18x18x128xf32, #tpu.memory_space<vmem>>, vector<1x18x18x128xf32>
    %60 = vector.shape_cast %59 : vector<1x18x18x128xf32> to vector<18x18x128xf32>
    %61 = vector.shape_cast %58 : vector<18x18x128xf32> to vector<1x18x18x128xf32>
    tpu.vector_store %arg3[%c0_47, %c0_48, %c0_49, %c0_50], %61 {strides = array<i32>} : memref<1x18x18x128xf32, #tpu.memory_space<vmem>>, vector<1x18x18x128xf32>,
    %62 = vector.shape_cast %57 : vector<256x128xf32> to vector<16x16x128xf32>
    %c0_51 = arith.constant 0 : index
    %c1_52 = arith.constant 1 : index
    %c1_53 = arith.constant 1 : index
    %c0_54 = arith.constant 0 : index
    %63 = vector.load %arg3[%c0_51, %c1_52, %c1_53, %c0_54] : memref<1x18x18x128xf32, #tpu.memory_space<vmem>>, vector<1x16x16x128xf32>
    %64 = vector.shape_cast %63 : vector<1x16x16x128xf32> to vector<16x16x128xf32>
    %65 = vector.shape_cast %62 : vector<16x16x128xf32> to vector<1x16x16x128xf32>
    tpu.vector_store %arg3[%c0_51, %c1_52, %c1_53, %c0_54], %65 {strides = array<i32>} : memref<1x18x18x128xf32, #tpu.memory_space<vmem>>, vector<1x16x16x128xf32>,
    %cst_55 = arith.constant dense<0.000000e+00> : vector<128xf32>
    %66 = vector.multi_reduction <add>, %57, %cst_55 [0] : vector<256x128xf32> to vector<128xf32>
    %67 = vector.shape_cast %66 : vector<128xf32> to vector<1x128xf32>
    %68 = arith.mulf %57, %57 : vector<256x128xf32>
    %cst_56 = arith.constant dense<0.000000e+00> : vector<128xf32>
    %69 = vector.multi_reduction <add>, %68, %cst_56 [0] : vector<256x128xf32> to vector<128xf32>
    %70 = vector.shape_cast %69 : vector<128xf32> to vector<1x128xf32>
    %71 = vector.shape_cast %67 : vector<1x128xf32> to vector<1x128xf32>
    %72 = vector.broadcast %71 : vector<1x128xf32> to vector<8x128xf32>
    %c0_57 = arith.constant 0 : index
    %c0_58 = arith.constant 0 : index
    %c0_59 = arith.constant 0 : index
    %73 = vector.load %arg4[%c0_57, %c0_58, %c0_59] : memref<1x8x128xf32, #tpu.memory_space<vmem>>, vector<1x8x128xf32>
    %74 = vector.shape_cast %73 : vector<1x8x128xf32> to vector<8x128xf32>
    %75 = vector.shape_cast %72 : vector<8x128xf32> to vector<1x8x128xf32>
    tpu.vector_store %arg4[%c0_57, %c0_58, %c0_59], %75 {strides = array<i32>} : memref<1x8x128xf32, #tpu.memory_space<vmem>>, vector<1x8x128xf32>,
    %76 = vector.shape_cast %70 : vector<1x128xf32> to vector<1x128xf32>
    %77 = vector.broadcast %76 : vector<1x128xf32> to vector<8x128xf32>
    %c0_60 = arith.constant 0 : index
    %c0_61 = arith.constant 0 : index
    %c0_62 = arith.constant 0 : index
    %78 = vector.load %arg5[%c0_60, %c0_61, %c0_62] : memref<1x8x128xf32, #tpu.memory_space<vmem>>, vector<1x8x128xf32>
    %79 = vector.shape_cast %78 : vector<1x8x128xf32> to vector<8x128xf32>
    %80 = vector.shape_cast %77 : vector<8x128xf32> to vector<1x8x128xf32>
    tpu.vector_store %arg5[%c0_60, %c0_61, %c0_62], %80 {strides = array<i32>} : memref<1x8x128xf32, #tpu.memory_space<vmem>>, vector<1x8x128xf32>,
    return
  }
  func.func @transform_0(%arg0: i32) -> (i32, i32, i32, i32) {
    %c0_i32 = arith.constant 0 : i32
    %c0_i32_0 = arith.constant 0 : i32
    %c0_i32_1 = arith.constant 0 : i32
    %c0_i32_2 = arith.constant 0 : i32
    return %arg0, %c0_i32, %c0_i32_0, %c0_i32_1 : i32, i32, i32, i32
  }
  func.func @transform_1(%arg0: i32) -> (i32, i32, i32, i32) {
    %c0_i32 = arith.constant 0 : i32
    %c0_i32_0 = arith.constant 0 : i32
    %c0_i32_1 = arith.constant 0 : i32
    %c0_i32_2 = arith.constant 0 : i32
    %c0_i32_3 = arith.constant 0 : i32
    return %c0_i32, %c0_i32_0, %c0_i32_1, %c0_i32_2 : i32, i32, i32, i32
  }
  func.func @transform_2(%arg0: i32) -> (i32, i32, i32, i32) {
    %c0_i32 = arith.constant 0 : i32
    %c0_i32_0 = arith.constant 0 : i32
    %c0_i32_1 = arith.constant 0 : i32
    %c0_i32_2 = arith.constant 0 : i32
    return %arg0, %c0_i32, %c0_i32_0, %c0_i32_1 : i32, i32, i32, i32
  }
  func.func @transform_3(%arg0: i32) -> (i32, i32, i32) {
    %c0_i32 = arith.constant 0 : i32
    %c0_i32_0 = arith.constant 0 : i32
    %c0_i32_1 = arith.constant 0 : i32
    return %arg0, %c0_i32, %c0_i32_0 : i32, i32, i32
  }
  func.func @transform_4(%arg0: i32) -> (i32, i32, i32) {
    %c0_i32 = arith.constant 0 : i32
    %c0_i32_0 = arith.constant 0 : i32
    %c0_i32_1 = arith.constant 0 : i32
    return %arg0, %c0_i32, %c0_i32_0 : i32, i32, i32
  }
}

module attributes {stable_mosaic.version = 11 : i64} {
  func.func @_bn_conv3x3_stats_kernel(%arg0: i32, %arg1: memref<1x18x18x128xf32, #tpu.memory_space<vmem>>, %arg2: memref<1x128xf32, #tpu.memory_space<vmem>>, %arg3: memref<1x128xf32, #tpu.memory_space<vmem>>, %arg4: memref<3x3x128x128xbf16, #tpu.memory_space<vmem>>, %arg5: memref<256x128xf32, #tpu.memory_space<vmem>>, %arg6: memref<1x8x128xf32, #tpu.memory_space<vmem>>, %arg7: memref<1x8x128xf32, #tpu.memory_space<vmem>>) attributes {dimension_semantics = [#tpu.dimension_semantics<parallel>], iteration_bounds = array<i64: 2>, scalar_prefetch = 0 : i64, scratch_operands = 0 : i64, tpu.core_type = #tpu.core_type<tc>, window_params = [{transform_indices = @transform_0, window_bounds = array<i64: 1, 18, 18, 128>}, {pipeline_mode = #tpu.pipeline_mode<synchronous>, transform_indices = @transform_1, window_bounds = array<i64: 1, 128>}, {pipeline_mode = #tpu.pipeline_mode<synchronous>, transform_indices = @transform_2, window_bounds = array<i64: 1, 128>}, {pipeline_mode = #tpu.pipeline_mode<synchronous>, transform_indices = @transform_3, window_bounds = array<i64: 3, 3, 128, 128>}, {transform_indices = @transform_4, window_bounds = array<i64: 256, 128>}, {transform_indices = @transform_5, window_bounds = array<i64: 1, 8, 128>}, {transform_indices = @transform_6, window_bounds = array<i64: 1, 8, 128>}]} {
    %c0 = arith.constant 0 : index
    %c0_0 = arith.constant 0 : index
    %c0_1 = arith.constant 0 : index
    %c0_2 = arith.constant 0 : index
    %0 = vector.load %arg1[%c0, %c0_0, %c0_1, %c0_2] : memref<1x18x18x128xf32, #tpu.memory_space<vmem>>, vector<1x18x18x128xf32>
    %1 = vector.shape_cast %0 : vector<1x18x18x128xf32> to vector<18x18x128xf32>
    %c0_3 = arith.constant 0 : index
    %c0_4 = arith.constant 0 : index
    %2 = vector.load %arg2[%c0_3, %c0_4] : memref<1x128xf32, #tpu.memory_space<vmem>>, vector<1x128xf32>
    %3 = vector.shape_cast %2 : vector<1x128xf32> to vector<1x1x128xf32>
    %c0_5 = arith.constant 0 : index
    %c0_6 = arith.constant 0 : index
    %4 = vector.load %arg3[%c0_5, %c0_6] : memref<1x128xf32, #tpu.memory_space<vmem>>, vector<1x128xf32>
    %5 = vector.shape_cast %4 : vector<1x128xf32> to vector<1x1x128xf32>
    %6 = tpu.iota {dimensions = array<i32: 0>} : vector<18x18x128xi32>
    %7 = tpu.iota {dimensions = array<i32: 1>} : vector<18x18x128xi32>
    %c1_i32 = arith.constant 1 : i32
    %8 = vector.broadcast %c1_i32 : i32 to vector<18x18x128xi32>
    %9 = arith.cmpi sge, %6, %8 : vector<18x18x128xi32>
    %c16_i32 = arith.constant 16 : i32
    %10 = vector.broadcast %c16_i32 : i32 to vector<18x18x128xi32>
    %11 = arith.cmpi sle, %6, %10 : vector<18x18x128xi32>
    %12 = arith.andi %9, %11 : vector<18x18x128xi1>
    %c1_i32_7 = arith.constant 1 : i32
    %13 = vector.broadcast %c1_i32_7 : i32 to vector<18x18x128xi32>
    %14 = arith.cmpi sge, %7, %13 : vector<18x18x128xi32>
    %15 = arith.andi %12, %14 : vector<18x18x128xi1>
    %c16_i32_8 = arith.constant 16 : i32
    %16 = vector.broadcast %c16_i32_8 : i32 to vector<18x18x128xi32>
    %17 = arith.cmpi sle, %7, %16 : vector<18x18x128xi32>
    %18 = arith.andi %15, %17 : vector<18x18x128xi1>
    %19 = vector.broadcast %3 : vector<1x1x128xf32> to vector<18x18x128xf32>
    %20 = arith.mulf %1, %19 : vector<18x18x128xf32>
    %21 = vector.broadcast %5 : vector<1x1x128xf32> to vector<18x18x128xf32>
    %22 = arith.addf %20, %21 : vector<18x18x128xf32>
    %cst = arith.constant 0.000000e+00 : f32
    %23 = vector.broadcast %cst : f32 to vector<18x18x128xf32>
    %24 = arith.select %18, %22, %23 : vector<18x18x128xi1>, vector<18x18x128xf32>
    %25 = arith.truncf %24 : vector<18x18x128xf32> to vector<18x18x128xbf16>
    %cst_9 = arith.constant 0.000000e+00 : f32
    %26 = vector.broadcast %cst_9 : f32 to vector<256x128xf32>
    %27 = vector.extract_strided_slice %25 {offsets = [0, 0, 0], sizes = [16, 16, 128], strides = [1, 1, 1]} : vector<18x18x128xbf16> to vector<16x16x128xbf16>
    %28 = vector.shape_cast %27 : vector<16x16x128xbf16> to vector<256x128xbf16>
    %c0_10 = arith.constant 0 : index
    %c0_11 = arith.constant 0 : index
    %c0_12 = arith.constant 0 : index
    %c0_13 = arith.constant 0 : index
    %29 = vector.load %arg4[%c0_10, %c0_11, %c0_12, %c0_13] : memref<3x3x128x128xbf16, #tpu.memory_space<vmem>>, vector<1x1x128x128xbf16>
    %30 = vector.shape_cast %29 : vector<1x1x128x128xbf16> to vector<128x128xbf16>
    %cst_14 = arith.constant dense<0.000000e+00> : vector<256x128xf32>
    %31 = tpu.matmul %28, %30, %cst_14 {dimension_numbers = #tpu.dot_dimension_numbers<[1], [0], [0], [1], [0, 0, 1, 1], [], []>} : vector<256x128xbf16>, vector<128x128xbf16>, vector<256x128xf32> -> vector<256x128xf32>
    %32 = arith.addf %26, %31 : vector<256x128xf32>
    %33 = vector.extract_strided_slice %25 {offsets = [0, 1, 0], sizes = [16, 16, 128], strides = [1, 1, 1]} : vector<18x18x128xbf16> to vector<16x16x128xbf16>
    %34 = vector.shape_cast %33 : vector<16x16x128xbf16> to vector<256x128xbf16>
    %c0_15 = arith.constant 0 : index
    %c1 = arith.constant 1 : index
    %c0_16 = arith.constant 0 : index
    %c0_17 = arith.constant 0 : index
    %35 = vector.load %arg4[%c0_15, %c1, %c0_16, %c0_17] : memref<3x3x128x128xbf16, #tpu.memory_space<vmem>>, vector<1x1x128x128xbf16>
    %36 = vector.shape_cast %35 : vector<1x1x128x128xbf16> to vector<128x128xbf16>
    %cst_18 = arith.constant dense<0.000000e+00> : vector<256x128xf32>
    %37 = tpu.matmul %34, %36, %cst_18 {dimension_numbers = #tpu.dot_dimension_numbers<[1], [0], [0], [1], [0, 0, 1, 1], [], []>} : vector<256x128xbf16>, vector<128x128xbf16>, vector<256x128xf32> -> vector<256x128xf32>
    %38 = arith.addf %32, %37 : vector<256x128xf32>
    %39 = vector.extract_strided_slice %25 {offsets = [0, 2, 0], sizes = [16, 16, 128], strides = [1, 1, 1]} : vector<18x18x128xbf16> to vector<16x16x128xbf16>
    %40 = vector.shape_cast %39 : vector<16x16x128xbf16> to vector<256x128xbf16>
    %c0_19 = arith.constant 0 : index
    %c2 = arith.constant 2 : index
    %c0_20 = arith.constant 0 : index
    %c0_21 = arith.constant 0 : index
    %41 = vector.load %arg4[%c0_19, %c2, %c0_20, %c0_21] : memref<3x3x128x128xbf16, #tpu.memory_space<vmem>>, vector<1x1x128x128xbf16>
    %42 = vector.shape_cast %41 : vector<1x1x128x128xbf16> to vector<128x128xbf16>
    %cst_22 = arith.constant dense<0.000000e+00> : vector<256x128xf32>
    %43 = tpu.matmul %40, %42, %cst_22 {dimension_numbers = #tpu.dot_dimension_numbers<[1], [0], [0], [1], [0, 0, 1, 1], [], []>} : vector<256x128xbf16>, vector<128x128xbf16>, vector<256x128xf32> -> vector<256x128xf32>
    %44 = arith.addf %38, %43 : vector<256x128xf32>
    %45 = vector.extract_strided_slice %25 {offsets = [1, 0, 0], sizes = [16, 16, 128], strides = [1, 1, 1]} : vector<18x18x128xbf16> to vector<16x16x128xbf16>
    %46 = vector.shape_cast %45 : vector<16x16x128xbf16> to vector<256x128xbf16>
    %c1_23 = arith.constant 1 : index
    %c0_24 = arith.constant 0 : index
    %c0_25 = arith.constant 0 : index
    %c0_26 = arith.constant 0 : index
    %47 = vector.load %arg4[%c1_23, %c0_24, %c0_25, %c0_26] : memref<3x3x128x128xbf16, #tpu.memory_space<vmem>>, vector<1x1x128x128xbf16>
    %48 = vector.shape_cast %47 : vector<1x1x128x128xbf16> to vector<128x128xbf16>
    %cst_27 = arith.constant dense<0.000000e+00> : vector<256x128xf32>
    %49 = tpu.matmul %46, %48, %cst_27 {dimension_numbers = #tpu.dot_dimension_numbers<[1], [0], [0], [1], [0, 0, 1, 1], [], []>} : vector<256x128xbf16>, vector<128x128xbf16>, vector<256x128xf32> -> vector<256x128xf32>
    %50 = arith.addf %44, %49 : vector<256x128xf32>
    %51 = vector.extract_strided_slice %25 {offsets = [1, 1, 0], sizes = [16, 16, 128], strides = [1, 1, 1]} : vector<18x18x128xbf16> to vector<16x16x128xbf16>
    %52 = vector.shape_cast %51 : vector<16x16x128xbf16> to vector<256x128xbf16>
    %c1_28 = arith.constant 1 : index
    %c1_29 = arith.constant 1 : index
    %c0_30 = arith.constant 0 : index
    %c0_31 = arith.constant 0 : index
    %53 = vector.load %arg4[%c1_28, %c1_29, %c0_30, %c0_31] : memref<3x3x128x128xbf16, #tpu.memory_space<vmem>>, vector<1x1x128x128xbf16>
    %54 = vector.shape_cast %53 : vector<1x1x128x128xbf16> to vector<128x128xbf16>
    %cst_32 = arith.constant dense<0.000000e+00> : vector<256x128xf32>
    %55 = tpu.matmul %52, %54, %cst_32 {dimension_numbers = #tpu.dot_dimension_numbers<[1], [0], [0], [1], [0, 0, 1, 1], [], []>} : vector<256x128xbf16>, vector<128x128xbf16>, vector<256x128xf32> -> vector<256x128xf32>
    %56 = arith.addf %50, %55 : vector<256x128xf32>
    %57 = vector.extract_strided_slice %25 {offsets = [1, 2, 0], sizes = [16, 16, 128], strides = [1, 1, 1]} : vector<18x18x128xbf16> to vector<16x16x128xbf16>
    %58 = vector.shape_cast %57 : vector<16x16x128xbf16> to vector<256x128xbf16>
    %c1_33 = arith.constant 1 : index
    %c2_34 = arith.constant 2 : index
    %c0_35 = arith.constant 0 : index
    %c0_36 = arith.constant 0 : index
    %59 = vector.load %arg4[%c1_33, %c2_34, %c0_35, %c0_36] : memref<3x3x128x128xbf16, #tpu.memory_space<vmem>>, vector<1x1x128x128xbf16>
    %60 = vector.shape_cast %59 : vector<1x1x128x128xbf16> to vector<128x128xbf16>
    %cst_37 = arith.constant dense<0.000000e+00> : vector<256x128xf32>
    %61 = tpu.matmul %58, %60, %cst_37 {dimension_numbers = #tpu.dot_dimension_numbers<[1], [0], [0], [1], [0, 0, 1, 1], [], []>} : vector<256x128xbf16>, vector<128x128xbf16>, vector<256x128xf32> -> vector<256x128xf32>
    %62 = arith.addf %56, %61 : vector<256x128xf32>
    %63 = vector.extract_strided_slice %25 {offsets = [2, 0, 0], sizes = [16, 16, 128], strides = [1, 1, 1]} : vector<18x18x128xbf16> to vector<16x16x128xbf16>
    %64 = vector.shape_cast %63 : vector<16x16x128xbf16> to vector<256x128xbf16>
    %c2_38 = arith.constant 2 : index
    %c0_39 = arith.constant 0 : index
    %c0_40 = arith.constant 0 : index
    %c0_41 = arith.constant 0 : index
    %65 = vector.load %arg4[%c2_38, %c0_39, %c0_40, %c0_41] : memref<3x3x128x128xbf16, #tpu.memory_space<vmem>>, vector<1x1x128x128xbf16>
    %66 = vector.shape_cast %65 : vector<1x1x128x128xbf16> to vector<128x128xbf16>
    %cst_42 = arith.constant dense<0.000000e+00> : vector<256x128xf32>
    %67 = tpu.matmul %64, %66, %cst_42 {dimension_numbers = #tpu.dot_dimension_numbers<[1], [0], [0], [1], [0, 0, 1, 1], [], []>} : vector<256x128xbf16>, vector<128x128xbf16>, vector<256x128xf32> -> vector<256x128xf32>
    %68 = arith.addf %62, %67 : vector<256x128xf32>
    %69 = vector.extract_strided_slice %25 {offsets = [2, 1, 0], sizes = [16, 16, 128], strides = [1, 1, 1]} : vector<18x18x128xbf16> to vector<16x16x128xbf16>
    %70 = vector.shape_cast %69 : vector<16x16x128xbf16> to vector<256x128xbf16>
    %c2_43 = arith.constant 2 : index
    %c1_44 = arith.constant 1 : index
    %c0_45 = arith.constant 0 : index
    %c0_46 = arith.constant 0 : index
    %71 = vector.load %arg4[%c2_43, %c1_44, %c0_45, %c0_46] : memref<3x3x128x128xbf16, #tpu.memory_space<vmem>>, vector<1x1x128x128xbf16>
    %72 = vector.shape_cast %71 : vector<1x1x128x128xbf16> to vector<128x128xbf16>
    %cst_47 = arith.constant dense<0.000000e+00> : vector<256x128xf32>
    %73 = tpu.matmul %70, %72, %cst_47 {dimension_numbers = #tpu.dot_dimension_numbers<[1], [0], [0], [1], [0, 0, 1, 1], [], []>} : vector<256x128xbf16>, vector<128x128xbf16>, vector<256x128xf32> -> vector<256x128xf32>
    %74 = arith.addf %68, %73 : vector<256x128xf32>
    %75 = vector.extract_strided_slice %25 {offsets = [2, 2, 0], sizes = [16, 16, 128], strides = [1, 1, 1]} : vector<18x18x128xbf16> to vector<16x16x128xbf16>
    %76 = vector.shape_cast %75 : vector<16x16x128xbf16> to vector<256x128xbf16>
    %c2_48 = arith.constant 2 : index
    %c2_49 = arith.constant 2 : index
    %c0_50 = arith.constant 0 : index
    %c0_51 = arith.constant 0 : index
    %77 = vector.load %arg4[%c2_48, %c2_49, %c0_50, %c0_51] : memref<3x3x128x128xbf16, #tpu.memory_space<vmem>>, vector<1x1x128x128xbf16>
    %78 = vector.shape_cast %77 : vector<1x1x128x128xbf16> to vector<128x128xbf16>
    %cst_52 = arith.constant dense<0.000000e+00> : vector<256x128xf32>
    %79 = tpu.matmul %76, %78, %cst_52 {dimension_numbers = #tpu.dot_dimension_numbers<[1], [0], [0], [1], [0, 0, 1, 1], [], []>} : vector<256x128xbf16>, vector<128x128xbf16>, vector<256x128xf32> -> vector<256x128xf32>
    %80 = arith.addf %74, %79 : vector<256x128xf32>
    %c0_53 = arith.constant 0 : index
    %c0_54 = arith.constant 0 : index
    %81 = vector.load %arg5[%c0_53, %c0_54] : memref<256x128xf32, #tpu.memory_space<vmem>>, vector<256x128xf32>
    tpu.vector_store %arg5[%c0_53, %c0_54], %80 {strides = array<i32>} : memref<256x128xf32, #tpu.memory_space<vmem>>, vector<256x128xf32>,
    %cst_55 = arith.constant dense<0.000000e+00> : vector<128xf32>
    %82 = vector.multi_reduction <add>, %80, %cst_55 [0] : vector<256x128xf32> to vector<128xf32>
    %83 = vector.shape_cast %82 : vector<128xf32> to vector<1x128xf32>
    %84 = arith.mulf %80, %80 : vector<256x128xf32>
    %cst_56 = arith.constant dense<0.000000e+00> : vector<128xf32>
    %85 = vector.multi_reduction <add>, %84, %cst_56 [0] : vector<256x128xf32> to vector<128xf32>
    %86 = vector.shape_cast %85 : vector<128xf32> to vector<1x128xf32>
    %87 = vector.shape_cast %83 : vector<1x128xf32> to vector<1x128xf32>
    %88 = vector.broadcast %87 : vector<1x128xf32> to vector<8x128xf32>
    %c0_57 = arith.constant 0 : index
    %c0_58 = arith.constant 0 : index
    %c0_59 = arith.constant 0 : index
    %89 = vector.load %arg6[%c0_57, %c0_58, %c0_59] : memref<1x8x128xf32, #tpu.memory_space<vmem>>, vector<1x8x128xf32>
    %90 = vector.shape_cast %89 : vector<1x8x128xf32> to vector<8x128xf32>
    %91 = vector.shape_cast %88 : vector<8x128xf32> to vector<1x8x128xf32>
    tpu.vector_store %arg6[%c0_57, %c0_58, %c0_59], %91 {strides = array<i32>} : memref<1x8x128xf32, #tpu.memory_space<vmem>>, vector<1x8x128xf32>,
    %92 = vector.shape_cast %86 : vector<1x128xf32> to vector<1x128xf32>
    %93 = vector.broadcast %92 : vector<1x128xf32> to vector<8x128xf32>
    %c0_60 = arith.constant 0 : index
    %c0_61 = arith.constant 0 : index
    %c0_62 = arith.constant 0 : index
    %94 = vector.load %arg7[%c0_60, %c0_61, %c0_62] : memref<1x8x128xf32, #tpu.memory_space<vmem>>, vector<1x8x128xf32>
    %95 = vector.shape_cast %94 : vector<1x8x128xf32> to vector<8x128xf32>
    %96 = vector.shape_cast %93 : vector<8x128xf32> to vector<1x8x128xf32>
    tpu.vector_store %arg7[%c0_60, %c0_61, %c0_62], %96 {strides = array<i32>} : memref<1x8x128xf32, #tpu.memory_space<vmem>>, vector<1x8x128xf32>,
    return
  }
  func.func @transform_0(%arg0: i32) -> (i32, i32, i32, i32) {
    %c0_i32 = arith.constant 0 : i32
    %c0_i32_0 = arith.constant 0 : i32
    %c0_i32_1 = arith.constant 0 : i32
    %c0_i32_2 = arith.constant 0 : i32
    return %arg0, %c0_i32, %c0_i32_0, %c0_i32_1 : i32, i32, i32, i32
  }
  func.func @transform_1(%arg0: i32) -> (i32, i32) {
    %c0_i32 = arith.constant 0 : i32
    %c0_i32_0 = arith.constant 0 : i32
    %c0_i32_1 = arith.constant 0 : i32
    return %c0_i32, %c0_i32_0 : i32, i32
  }
  func.func @transform_2(%arg0: i32) -> (i32, i32) {
    %c0_i32 = arith.constant 0 : i32
    %c0_i32_0 = arith.constant 0 : i32
    %c0_i32_1 = arith.constant 0 : i32
    return %c0_i32, %c0_i32_0 : i32, i32
  }
  func.func @transform_3(%arg0: i32) -> (i32, i32, i32, i32) {
    %c0_i32 = arith.constant 0 : i32
    %c0_i32_0 = arith.constant 0 : i32
    %c0_i32_1 = arith.constant 0 : i32
    %c0_i32_2 = arith.constant 0 : i32
    %c0_i32_3 = arith.constant 0 : i32
    return %c0_i32, %c0_i32_0, %c0_i32_1, %c0_i32_2 : i32, i32, i32, i32
  }
  func.func @transform_4(%arg0: i32) -> (i32, i32) {
    %c0_i32 = arith.constant 0 : i32
    %c0_i32_0 = arith.constant 0 : i32
    return %arg0, %c0_i32 : i32, i32
  }
  func.func @transform_5(%arg0: i32) -> (i32, i32, i32) {
    %c0_i32 = arith.constant 0 : i32
    %c0_i32_0 = arith.constant 0 : i32
    %c0_i32_1 = arith.constant 0 : i32
    return %arg0, %c0_i32, %c0_i32_0 : i32, i32, i32
  }
  func.func @transform_6(%arg0: i32) -> (i32, i32, i32) {
    %c0_i32 = arith.constant 0 : i32
    %c0_i32_0 = arith.constant 0 : i32
    %c0_i32_1 = arith.constant 0 : i32
    return %arg0, %c0_i32, %c0_i32_0 : i32, i32, i32
  }
}

</mosaic_0001>

<llo_original>
// kernel: dense_layer_forward.5
$region0: #{dense_layer_forward.5}
  #allocation0 [shape = 'u32[]', space=smem, size = 0x4, offset = 0x4, fixed_abs, tag = 'smem constant byte address 0x4 - core index']
  #allocation1 [shape = 'u32[72,128]{1,0:T(1,128)}', space=vmem, size = 0x9000, scoped, tag = 'internal scratch']
  %s0 = inlined_call_operand.vmem [shape: f32[512,128], index: 0, kind: input, shape index: {}]
  %s1 = inlined_call_operand.vmem [shape: f32[1,128], index: 1, kind: input, shape index: {}]
  %s2 = inlined_call_operand.vmem [shape: f32[1,128], index: 2, kind: input, shape index: {}]
  %s3 = inlined_call_operand.vmem [shape: f32[512,128], index: 3, kind: output, shape index: {}]
  %s4 = sld [smem:[#allocation0]]
  $region22: #{dense_layer_forward.5} parent=0
    _
  %s6 = ssub.s32 1, %s4
  %s7 = scalar_select 0, %s6, %s4
  // Predicated region
  $region2: #{dense_layer_forward.5} parent=0 // pred_check
    _
  $region3: #{dense_layer_forward.5} parent=0 // pred_check_branch
    %9 = sbr.rel (0) target = $region5
  $region4: #{dense_layer_forward.5} parent=0 // pred_region
    _
  $region5: #{dense_layer_forward.5} parent=0 // pred_fallthru
    _
  // Predicated region
  $region6: #{dense_layer_forward.5} parent=0 // pred_check
    _
  $region7: #{dense_layer_forward.5} parent=0 // pred_check_branch
    %11 = sbr.rel (0) target = $region9
  $region8: #{dense_layer_forward.5} parent=0 // pred_region
    _
  $region9: #{dense_layer_forward.5} parent=0 // pred_fallthru
    _
  // Predicated region
  $region10: #{dense_layer_forward.5} parent=0 // pred_check
    _
  $region11: #{dense_layer_forward.5} parent=0 // pred_check_branch
    %13 = sbr.rel (0) target = $region13
  $region12: #{dense_layer_forward.5} parent=0 // pred_region
    _
  $region13: #{dense_layer_forward.5} parent=0 // pred_fallthru
    _
  %v14 = vld [vmem:[%s0] sm:$0xff]
  %v15 = vld [vmem:[%s0 + $0x8] sm:$0xff]
  %v16 = vld [vmem:[%s0 + $0x10] sm:$0xff]
  %v17 = vld [vmem:[%s0 + $0x18] sm:$0xff]
  %v18 = vld [vmem:[%s0 + $0x20] sm:$0xff]
  %v19 = vld [vmem:[%s0 + $0x28] sm:$0xff]
  %v20 = vld [vmem:[%s0 + $0x30] sm:$0xff]
  %v21 = vld [vmem:[%s0 + $0x38] sm:$0xff]
  %v22 = vld [vmem:[%s0 + $0x40] sm:$0xff]
  %v23 = vld [vmem:[%s0 + $0x48] sm:$0xff]
  %v24 = vld [vmem:[%s0 + $0x50] sm:$0xff]
  %v25 = vld [vmem:[%s0 + $0x58] sm:$0xff]
  %v26 = vld [vmem:[%s0 + $0x60] sm:$0xff]
  %v27 = vld [vmem:[%s0 + $0x68] sm:$0xff]
  %v28 = vld [vmem:[%s0 + $0x70] sm:$0xff]
  %v29 = vld [vmem:[%s0 + $0x78] sm:$0xff]
  %v30 = vld [vmem:[%s0 + $0x80] sm:$0xff]
  %v31 = vld [vmem:[%s0 + $0x88] sm:$0xff]
  %v32 = vld [vmem:[%s0 + $0x90] sm:$0xff]
  %v33 = vld [vmem:[%s0 + $0x98] sm:$0xff]
  %v34 = vld [vmem:[%s0 + $0xa0] sm:$0xff]
  %v35 = vld [vmem:[%s0 + $0xa8] sm:$0xff]
  %v36 = vld [vmem:[%s0 + $0xb0] sm:$0xff]
  %v37 = vld [vmem:[%s0 + $0xb8] sm:$0xff]
  %v38 = vld [vmem:[%s0 + $0xc0] sm:$0xff]
  %v39 = vld [vmem:[%s0 + $0xc8] sm:$0xff]
  %v40 = vld [vmem:[%s0 + $0xd0] sm:$0xff]
  %v41 = vld [vmem:[%s0 + $0xd8] sm:$0xff]
  %v42 = vld [vmem:[%s0 + $0xe0] sm:$0xff]
  %v43 = vld [vmem:[%s0 + $0xe8] sm:$0xff]
  %v44 = vld [vmem:[%s0 + $0xf0] sm:$0xff]
  %v45 = vld [vmem:[%s0 + $0xf8] sm:$0xff]
  %v46 = vld [vmem:[%s0 + $0x100] sm:$0xff]
  %v47 = vld [vmem:[%s0 + $0x108] sm:$0xff]
  %v48 = vld [vmem:[%s0 + $0x110] sm:$0xff]
  %v49 = vld [vmem:[%s0 + $0x118] sm:$0xff]
  %v50 = vld [vmem:[%s0 + $0x120] sm:$0xff]
  %v51 = vld [vmem:[%s0 + $0x128] sm:$0xff]
  %v52 = vld [vmem:[%s0 + $0x130] sm:$0xff]
  %v53 = vld [vmem:[%s0 + $0x138] sm:$0xff]
  %v54 = vld [vmem:[%s0 + $0x140] sm:$0xff]
  %v55 = vld [vmem:[%s0 + $0x148] sm:$0xff]
  %v56 = vld [vmem:[%s0 + $0x150] sm:$0xff]
  %v57 = vld [vmem:[%s0 + $0x158] sm:$0xff]
  %v58 = vld [vmem:[%s0 + $0x160] sm:$0xff]
  %v59 = vld [vmem:[%s0 + $0x168] sm:$0xff]
  %v60 = vld [vmem:[%s0 + $0x170] sm:$0xff]
  %v61 = vld [vmem:[%s0 + $0x178] sm:$0xff]
  %v62 = vld [vmem:[%s0 + $0x180] sm:$0xff]
  %v63 = vld [vmem:[%s0 + $0x188] sm:$0xff]
  %v64 = vld [vmem:[%s0 + $0x190] sm:$0xff]
  %v65 = vld [vmem:[%s0 + $0x198] sm:$0xff]
  %v66 = vld [vmem:[%s0 + $0x1a0] sm:$0xff]
  %v67 = vld [vmem:[%s0 + $0x1a8] sm:$0xff]
  %v68 = vld [vmem:[%s0 + $0x1b0] sm:$0xff]
  %v69 = vld [vmem:[%s0 + $0x1b8] sm:$0xff]
  %v70 = vld [vmem:[%s0 + $0x1c0] sm:$0xff]
  %v71 = vld [vmem:[%s0 + $0x1c8] sm:$0xff]
  %v72 = vld [vmem:[%s0 + $0x1d0] sm:$0xff]
  %v73 = vld [vmem:[%s0 + $0x1d8] sm:$0xff]
  %v74 = vld [vmem:[%s0 + $0x1e0] sm:$0xff]
  %v75 = vld [vmem:[%s0 + $0x1e8] sm:$0xff]
  %v76 = vld [vmem:[%s0 + $0x1f0] sm:$0xff]
  %v77 = vld [vmem:[%s0 + $0x1f8] sm:$0xff]
  %v78 = vld [vmem:[%s1] sm:$0x1]
  %v80 = vperm.slane %v78, 0
  %v82 = vmul.f32 %v14, %v80
  %v83 = vmul.f32 %v15, %v80
  %v84 = vmul.f32 %v16, %v80
  %v85 = vmul.f32 %v17, %v80
  %v86 = vmul.f32 %v18, %v80
  %v87 = vmul.f32 %v19, %v80
  %v88 = vmul.f32 %v20, %v80
  %v89 = vmul.f32 %v21, %v80
  %v90 = vmul.f32 %v22, %v80
  %v91 = vmul.f32 %v23, %v80
  %v92 = vmul.f32 %v24, %v80
  %v93 = vmul.f32 %v25, %v80
  %v94 = vmul.f32 %v26, %v80
  %v95 = vmul.f32 %v27, %v80
  %v96 = vmul.f32 %v28, %v80
  %v97 = vmul.f32 %v29, %v80
  %v98 = vmul.f32 %v30, %v80
  %v99 = vmul.f32 %v31, %v80
  %v100 = vmul.f32 %v32, %v80
  %v101 = vmul.f32 %v33, %v80
  %v102 = vmul.f32 %v34, %v80
  %v103 = vmul.f32 %v35, %v80
  %v104 = vmul.f32 %v36, %v80
  %v105 = vmul.f32 %v37, %v80
  %v106 = vmul.f32 %v38, %v80
  %v107 = vmul.f32 %v39, %v80
  %v108 = vmul.f32 %v40, %v80
  %v109 = vmul.f32 %v41, %v80
  %v110 = vmul.f32 %v42, %v80
  %v111 = vmul.f32 %v43, %v80
  %v112 = vmul.f32 %v44, %v80
  %v113 = vmul.f32 %v45, %v80
  %v114 = vmul.f32 %v46, %v80
  %v115 = vmul.f32 %v47, %v80
  %v116 = vmul.f32 %v48, %v80
  %v117 = vmul.f32 %v49, %v80
  %v118 = vmul.f32 %v50, %v80
  %v119 = vmul.f32 %v51, %v80
  %v120 = vmul.f32 %v52, %v80
  %v121 = vmul.f32 %v53, %v80
  %v122 = vmul.f32 %v54, %v80
  %v123 = vmul.f32 %v55, %v80
  %v124 = vmul.f32 %v56, %v80
  %v125 = vmul.f32 %v57, %v80
  %v126 = vmul.f32 %v58, %v80
  %v127 = vmul.f32 %v59, %v80
  %v128 = vmul.f32 %v60, %v80
  %v129 = vmul.f32 %v61, %v80
  %v130 = vmul.f32 %v62, %v80
  %v131 = vmul.f32 %v63, %v80
  %v132 = vmul.f32 %v64, %v80
  %v133 = vmul.f32 %v65, %v80
  %v134 = vmul.f32 %v66, %v80
  %v135 = vmul.f32 %v67, %v80
  %v136 = vmul.f32 %v68, %v80
  %v137 = vmul.f32 %v69, %v80
  %v138 = vmul.f32 %v70, %v80
  %v139 = vmul.f32 %v71, %v80
  %v140 = vmul.f32 %v72, %v80
  %v141 = vmul.f32 %v73, %v80
  %v142 = vmul.f32 %v74, %v80
  %v143 = vmul.f32 %v75, %v80
  %v144 = vmul.f32 %v76, %v80
  %v145 = vmul.f32 %v77, %v80
  %v146 = vld [vmem:[%s2] sm:$0x1]
  %v148 = vperm.slane %v146, 0
  %v150 = vadd.f32 %v82, %v148
  %v151 = vadd.f32 %v83, %v148
  %v152 = vadd.f32 %v84, %v148
  %v153 = vadd.f32 %v85, %v148
  %v154 = vadd.f32 %v86, %v148
  %v155 = vadd.f32 %v87, %v148
  %v156 = vadd.f32 %v88, %v148
  %v157 = vadd.f32 %v89, %v148
  %v158 = vadd.f32 %v90, %v148
  %v159 = vadd.f32 %v91, %v148
  %v160 = vadd.f32 %v92, %v148
  %v161 = vadd.f32 %v93, %v148
  %v162 = vadd.f32 %v94, %v148
  %v163 = vadd.f32 %v95, %v148
  %v164 = vadd.f32 %v96, %v148
  %v165 = vadd.f32 %v97, %v148
  %v166 = vadd.f32 %v98, %v148
  %v167 = vadd.f32 %v99, %v148
  %v168 = vadd.f32 %v100, %v148
  %v169 = vadd.f32 %v101, %v148
  %v170 = vadd.f32 %v102, %v148
  %v171 = vadd.f32 %v103, %v148
  %v172 = vadd.f32 %v104, %v148
  %v173 = vadd.f32 %v105, %v148
  %v174 = vadd.f32 %v106, %v148
  %v175 = vadd.f32 %v107, %v148
  %v176 = vadd.f32 %v108, %v148
  %v177 = vadd.f32 %v109, %v148
  %v178 = vadd.f32 %v110, %v148
  %v179 = vadd.f32 %v111, %v148
  %v180 = vadd.f32 %v112, %v148
  %v181 = vadd.f32 %v113, %v148
  %v182 = vadd.f32 %v114, %v148
  %v183 = vadd.f32 %v115, %v148
  %v184 = vadd.f32 %v116, %v148
  %v185 = vadd.f32 %v117, %v148
  %v186 = vadd.f32 %v118, %v148
  %v187 = vadd.f32 %v119, %v148
  %v188 = vadd.f32 %v120, %v148
  %v189 = vadd.f32 %v121, %v148
  %v190 = vadd.f32 %v122, %v148
  %v191 = vadd.f32 %v123, %v148
  %v192 = vadd.f32 %v124, %v148
  %v193 = vadd.f32 %v125, %v148
  %v194 = vadd.f32 %v126, %v148
  %v195 = vadd.f32 %v127, %v148
  %v196 = vadd.f32 %v128, %v148
  %v197 = vadd.f32 %v129, %v148
  %v198 = vadd.f32 %v130, %v148
  %v199 = vadd.f32 %v131, %v148
  %v200 = vadd.f32 %v132, %v148
  %v201 = vadd.f32 %v133, %v148
  %v202 = vadd.f32 %v134, %v148
  %v203 = vadd.f32 %v135, %v148
  %v204 = vadd.f32 %v136, %v148
  %v205 = vadd.f32 %v137, %v148
  %v206 = vadd.f32 %v138, %v148
  %v207 = vadd.f32 %v139, %v148
  %v208 = vadd.f32 %v140, %v148
  %v209 = vadd.f32 %v141, %v148
  %v210 = vadd.f32 %v142, %v148
  %v211 = vadd.f32 %v143, %v148
  %v212 = vadd.f32 %v144, %v148
  %v213 = vadd.f32 %v145, %v148
  %214 = vst [vmem:[%s3] sm:$0xff] %v150
  %215 = vst [vmem:[%s3 + $0x8] sm:$0xff] %v151
  %216 = vst [vmem:[%s3 + $0x10] sm:$0xff] %v152
  %217 = vst [vmem:[%s3 + $0x18] sm:$0xff] %v153
  %218 = vst [vmem:[%s3 + $0x20] sm:$0xff] %v154
  %219 = vst [vmem:[%s3 + $0x28] sm:$0xff] %v155
  %220 = vst [vmem:[%s3 + $0x30] sm:$0xff] %v156
  %221 = vst [vmem:[%s3 + $0x38] sm:$0xff] %v157
  %222 = vst [vmem:[%s3 + $0x40] sm:$0xff] %v158
  %223 = vst [vmem:[%s3 + $0x48] sm:$0xff] %v159
  %224 = vst [vmem:[%s3 + $0x50] sm:$0xff] %v160
  %225 = vst [vmem:[%s3 + $0x58] sm:$0xff] %v161
  %226 = vst [vmem:[%s3 + $0x60] sm:$0xff] %v162
  %227 = vst [vmem:[%s3 + $0x68] sm:$0xff] %v163
  %228 = vst [vmem:[%s3 + $0x70] sm:$0xff] %v164
  %229 = vst [vmem:[%s3 + $0x78] sm:$0xff] %v165
  %230 = vst [vmem:[%s3 + $0x80] sm:$0xff] %v166
  %231 = vst [vmem:[%s3 + $0x88] sm:$0xff] %v167
  %232 = vst [vmem:[%s3 + $0x90] sm:$0xff] %v168
  %233 = vst [vmem:[%s3 + $0x98] sm:$0xff] %v169
  %234 = vst [vmem:[%s3 + $0xa0] sm:$0xff] %v170
  %235 = vst [vmem:[%s3 + $0xa8] sm:$0xff] %v171
  %236 = vst [vmem:[%s3 + $0xb0] sm:$0xff] %v172
  %237 = vst [vmem:[%s3 + $0xb8] sm:$0xff] %v173
  %238 = vst [vmem:[%s3 + $0xc0] sm:$0xff] %v174
  %239 = vst [vmem:[%s3 + $0xc8] sm:$0xff] %v175
  %240 = vst [vmem:[%s3 + $0xd0] sm:$0xff] %v176
  %241 = vst [vmem:[%s3 + $0xd8] sm:$0xff] %v177
  %242 = vst [vmem:[%s3 + $0xe0] sm:$0xff] %v178
  %243 = vst [vmem:[%s3 + $0xe8] sm:$0xff] %v179
  %244 = vst [vmem:[%s3 + $0xf0] sm:$0xff] %v180
  %245 = vst [vmem:[%s3 + $0xf8] sm:$0xff] %v181
  %246 = vst [vmem:[%s3 + $0x100] sm:$0xff] %v182
  %247 = vst [vmem:[%s3 + $0x108] sm:$0xff] %v183
  %248 = vst [vmem:[%s3 + $0x110] sm:$0xff] %v184
  %249 = vst [vmem:[%s3 + $0x118] sm:$0xff] %v185
  %250 = vst [vmem:[%s3 + $0x120] sm:$0xff] %v186
  %251 = vst [vmem:[%s3 + $0x128] sm:$0xff] %v187
  %252 = vst [vmem:[%s3 + $0x130] sm:$0xff] %v188
  %253 = vst [vmem:[%s3 + $0x138] sm:$0xff] %v189
  %254 = vst [vmem:[%s3 + $0x140] sm:$0xff] %v190
  %255 = vst [vmem:[%s3 + $0x148] sm:$0xff] %v191
  %256 = vst [vmem:[%s3 + $0x150] sm:$0xff] %v192
  %257 = vst [vmem:[%s3 + $0x158] sm:$0xff] %v193
  %258 = vst [vmem:[%s3 + $0x160] sm:$0xff] %v194
  %259 = vst [vmem:[%s3 + $0x168] sm:$0xff] %v195
  %260 = vst [vmem:[%s3 + $0x170] sm:$0xff] %v196
  %261 = vst [vmem:[%s3 + $0x178] sm:$0xff] %v197
  %262 = vst [vmem:[%s3 + $0x180] sm:$0xff] %v198
  %263 = vst [vmem:[%s3 + $0x188] sm:$0xff] %v199
  %264 = vst [vmem:[%s3 + $0x190] sm:$0xff] %v200
  %265 = vst [vmem:[%s3 + $0x198] sm:$0xff] %v201
  %266 = vst [vmem:[%s3 + $0x1a0] sm:$0xff] %v202
  %267 = vst [vmem:[%s3 + $0x1a8] sm:$0xff] %v203
  %268 = vst [vmem:[%s3 + $0x1b0] sm:$0xff] %v204
  %269 = vst [vmem:[%s3 + $0x1b8] sm:$0xff] %v205
  %270 = vst [vmem:[%s3 + $0x1c0] sm:$0xff] %v206
  %271 = vst [vmem:[%s3 + $0x1c8] sm:$0xff] %v207
  %272 = vst [vmem:[%s3 + $0x1d0] sm:$0xff] %v208
  %273 = vst [vmem:[%s3 + $0x1d8] sm:$0xff] %v209
  %274 = vst [vmem:[%s3 + $0x1e0] sm:$0xff] %v210
  %275 = vst [vmem:[%s3 + $0x1e8] sm:$0xff] %v211
  %276 = vst [vmem:[%s3 + $0x1f0] sm:$0xff] %v212
  %277 = vst [vmem:[%s3 + $0x1f8] sm:$0xff] %v213
  // Predicated region
  $region14: #{dense_layer_forward.5} parent=0 // pred_check
    _
  $region15: #{dense_layer_forward.5} parent=0 // pred_check_branch
    %279 = sbr.rel (0) target = $region17
  $region16: #{dense_layer_forward.5} parent=0 // pred_region
    _
  $region17: #{dense_layer_forward.5} parent=0 // pred_fallthru
    _
  // Predicated region
  $region18: #{dense_layer_forward.5} parent=0 // pred_check
    _
  $region19: #{dense_layer_forward.5} parent=0 // pred_check_branch
    %281 = sbr.rel (0) target = $region21
  $region20: #{dense_layer_forward.5} parent=0 // pred_region
    _
  $region21: #{dense_layer_forward.5} parent=0 // pred_fallthru
    _

// kernel: dense_layer_forward.3
$region0: #{dense_layer_forward.3}
  #allocation0 [shape = 'u32[]', space=smem, size = 0x4, offset = 0x4, fixed_abs, tag = 'smem constant byte address 0x4 - core index']
  #allocation1 [shape = 'u32[72,128]{1,0:T(1,128)}', space=vmem, size = 0x9000, scoped, tag = 'internal scratch']
  %s0 = inlined_call_operand.vmem [shape: f32[2,18,18,128], index: 0, kind: input, shape index: {}]
  %s1 = inlined_call_operand.vmem [shape: bf16[3,3,128,128], index: 1, kind: input, shape index: {}]
  %s2 = inlined_call_operand.vmem [shape: f32[2,18,18,128], index: 2, kind: output, shape index: {0}]
  %s3 = inlined_call_operand.vmem [shape: f32[2,8,128], index: 3, kind: output, shape index: {1}]
  %s4 = inlined_call_operand.vmem [shape: f32[2,8,128], index: 4, kind: output, shape index: {2}]
  %5 = xla_tuple %s2, %s3, %s4
  %s6 = sld [smem:[#allocation0]]
  $region57: #{dense_layer_forward.3} parent=0
    _
  %s8 = ssub.s32 1, %s6
  %s9 = scalar_select 0, %s8, %s6
  loop: start=0, step=1, limit=4
  $region2: #{dense_layer_forward.3} parent=0 // loop_pre_header
    _
  $region3: #{dense_layer_forward.3} parent=0 // loop_header
    %s11 = sphi 0, %s15
    %p12 = scmp.ge.s32.totalorder %s11, 4
    %s21 = sphi 0, %s23
    %s24 = sphi 0, %s21
    %s25 = sphi 0, %s24
    %s41 = sphi 0, %s25
    %s45 = sphi 0, %s45
    %s47 = sphi 0, %s45
    %s48 = sphi 0, %s47
    %s62 = sphi 0, %s48
    %s68 = sphi 0, %s70
    %s71 = sphi 0, %s68
    %s72 = sphi 0, %s71
    %s88 = sphi 0, %s72
    %s94 = sphi 0, %s96
    %s97 = sphi 0, %s94
    %s98 = sphi 0, %s97
    %s114 = sphi 0, %s98
    %s120 = sphi 0, %s122
    %s123 = sphi 0, %s120
    %s124 = sphi 0, %s123
    %s140 = sphi 0, %s124
  $region4: #{dense_layer_forward.3} parent=0 // loop_header_branch
    %14 = sbr.rel (%p12) target = $region8
  $region5: #{dense_layer_forward.3} parent=0 // loop_body
    %s16 = ssub.s32 %s11, 1
    %s17 = ssub.s32 %s11, 2
    %s18 = sadd.s32 %s11, 1
    %s19 = ssub.s32 %s11, %s18
    %p20 = scmp.eq.s32.totalorder %s19, 0
    %s22 = sadd.s32 %s21, 1
    %s23 = scalar_select %p20, %s21, %s22
    %p26 = pneg %p20
    %p27 = scmp.eq.s32.totalorder %s11, 1
    %p28 = por %p26, %p27
    %p29 = scmp.ne.s32.totalorder %s21, %s24
    %p30 = scmp.eq.s32.totalorder %s11, 0
    %p31 = por %p29, %p30
    %p32 = scmp.ne.s32.totalorder %s21, %s24
    %p33 = scmp.eq.s32.totalorder %s16, 1
    %p34 = por %p32, %p33
    %p35 = scmp.ne.s32.totalorder %s24, %s25
    %p36 = scmp.eq.s32.totalorder %s16, 0
    %p37 = por %p35, %p36
    %p38 = scmp.ne.s32.totalorder %s24, %s25
    %p39 = scmp.eq.s32.totalorder %s17, 1
    %p40 = por %p38, %p39
    %p42 = scmp.ne.s32.totalorder %s25, %s41
    %p43 = scmp.eq.s32.totalorder %s17, 0
    %p44 = por %p42, %p43
    %s46 = sadd.s32 %s45, 1
    %p49 = scmp.eq.s32.totalorder %s11, 1
    %p50 = scmp.ne.s32.totalorder %s45, %s47
    %p51 = scmp.eq.s32.totalorder %s11, 0
    %p52 = por %p50, %p51
    %p53 = scmp.ne.s32.totalorder %s45, %s47
    %p54 = scmp.eq.s32.totalorder %s16, 1
    %p55 = por %p53, %p54
    %p56 = scmp.ne.s32.totalorder %s47, %s48
    %p57 = scmp.eq.s32.totalorder %s16, 0
    %p58 = por %p56, %p57
    %p59 = scmp.ne.s32.totalorder %s47, %s48
    %p60 = scmp.eq.s32.totalorder %s17, 1
    %p61 = por %p59, %p60
    %p63 = scmp.ne.s32.totalorder %s48, %s62
    %p64 = scmp.eq.s32.totalorder %s17, 0
    %p65 = por %p63, %p64
    %s66 = ssub.s32 %s11, %s18
    %p67 = scmp.eq.s32.totalorder %s66, 0
    %s69 = sadd.s32 %s68, 1
    %s70 = scalar_select %p67, %s68, %s69
    %p73 = pneg %p67
    %p74 = scmp.eq.s32.totalorder %s11, 1
    %p75 = por %p73, %p74
    %p76 = scmp.ne.s32.totalorder %s68, %s71
    %p77 = scmp.eq.s32.totalorder %s11, 0
    %p78 = por %p76, %p77
    %p79 = scmp.ne.s32.totalorder %s68, %s71
    %p80 = scmp.eq.s32.totalorder %s16, 1
    %p81 = por %p79, %p80
    %p82 = scmp.ne.s32.totalorder %s71, %s72
    %p83 = scmp.eq.s32.totalorder %s16, 0
    %p84 = por %p82, %p83
    %p85 = scmp.ne.s32.totalorder %s71, %s72
    %p86 = scmp.eq.s32.totalorder %s17, 1
    %p87 = por %p85, %p86
    %p89 = scmp.ne.s32.totalorder %s72, %s88
    %p90 = scmp.eq.s32.totalorder %s17, 0
    %p91 = por %p89, %p90
    %s92 = ssub.s32 %s11, %s18
    %p93 = scmp.eq.s32.totalorder %s92, 0
    %s95 = sadd.s32 %s94, 1
    %s96 = scalar_select %p93, %s94, %s95
    %p99 = pneg %p93
    %p100 = scmp.eq.s32.totalorder %s11, 1
    %p101 = por %p99, %p100
    %p102 = scmp.ne.s32.totalorder %s94, %s97
    %p103 = scmp.eq.s32.totalorder %s11, 0
    %p104 = por %p102, %p103
    %p105 = scmp.ne.s32.totalorder %s94, %s97
    %p106 = scmp.eq.s32.totalorder %s16, 1
    %p107 = por %p105, %p106
    %p108 = scmp.ne.s32.totalorder %s97, %s98
    %p109 = scmp.eq.s32.totalorder %s16, 0
    %p110 = por %p108, %p109
    %p111 = scmp.ne.s32.totalorder %s97, %s98
    %p112 = scmp.eq.s32.totalorder %s17, 1
    %p113 = por %p111, %p112
    %p115 = scmp.ne.s32.totalorder %s98, %s114
    %p116 = scmp.eq.s32.totalorder %s17, 0
    %p117 = por %p115, %p116
    %s118 = ssub.s32 %s11, %s18
    %p119 = scmp.eq.s32.totalorder %s118, 0
    %s121 = sadd.s32 %s120, 1
    %s122 = scalar_select %p119, %s120, %s121
    %p125 = pneg %p119
    %p126 = scmp.eq.s32.totalorder %s11, 1
    %p127 = por %p125, %p126
    %p128 = scmp.ne.s32.totalorder %s120, %s123
    %p129 = scmp.eq.s32.totalorder %s11, 0
    %p130 = por %p128, %p129
    %p131 = scmp.ne.s32.totalorder %s120, %s123
    %p132 = scmp.eq.s32.totalorder %s16, 1
    %p133 = por %p131, %p132
    %p134 = scmp.ne.s32.totalorder %s123, %s124
    %p135 = scmp.eq.s32.totalorder %s16, 0
    %p136 = por %p134, %p135
    %p137 = scmp.ne.s32.totalorder %s123, %s124
    %p138 = scmp.eq.s32.totalorder %s17, 1
    %p139 = por %p137, %p138
    %p141 = scmp.ne.s32.totalorder %s124, %s140
    %p142 = scmp.eq.s32.totalorder %s17, 0
    %p143 = por %p141, %p142
    %p144 = scmp.le.s32.totalorder 1, %s11
    %p145 = scmp.lt.s32.totalorder %s11, 3
    %p146 = pnand %p144, %p145
    %p147 = pneg %p146
    // Predicated region
    $region9: #{dense_layer_forward.3} parent=5 // pred_check
      _
    $region10: #{dense_layer_forward.3} parent=5 // pred_check_branch
      %149 = sbr.rel (%p146) target = $region12
    $region11: #{dense_layer_forward.3} parent=5 // pred_region
      %s150 = ssub.s32 %s11, 1
      // Predicated region
      $region13: #{dense_layer_forward.3} parent=11 // pred_check
        %p151 = pneg %p58
      $region14: #{dense_layer_forward.3} parent=11 // pred_check_branch
        %153 = sbr.rel (%p151) target = $region16
      $region15: #{dense_layer_forward.3} parent=11 // pred_region
        _
      $region16: #{dense_layer_forward.3} parent=11 // pred_fallthru
        _
    $region12: #{dense_layer_forward.3} parent=5 // pred_fallthru
      _
    %p154 = scmp.lt.s32.totalorder %s11, 2
    // Predicated region
    $region17: #{dense_layer_forward.3} parent=5 // pred_check
      %p155 = pneg %p154
    $region18: #{dense_layer_forward.3} parent=5 // pred_check_branch
      %157 = sbr.rel (%p155) target = $region20
    $region19: #{dense_layer_forward.3} parent=5 // pred_region
      // Predicated region
      $region21: #{dense_layer_forward.3} parent=19 // pred_check
        %p158 = pneg %p31
      $region22: #{dense_layer_forward.3} parent=19 // pred_check_branch
        %160 = sbr.rel (%p158) target = $region24
      $region23: #{dense_layer_forward.3} parent=19 // pred_region
        %p161 = scmp.lt.s32.totalorder %s11, 1
        %s162 = scalar_select %p161, %s11, 1
        %s163 = smul.addr %s162, 54
        %s164 = smul.addr %s163, 8
        %s165 = scalar_lea.vmem %s0, %s164
      $region24: #{dense_layer_forward.3} parent=19 // pred_fallthru
        _
    $region20: #{dense_layer_forward.3} parent=5 // pred_fallthru
      _
    %p166 = scmp.le.s32.totalorder 1, %s11
    %p167 = scmp.lt.s32.totalorder %s11, 3
    %p168 = pnand %p166, %p167
    %p169 = pneg %p168
    // Predicated region
    $region25: #{dense_layer_forward.3} parent=5 // pred_check
      _
    $region26: #{dense_layer_forward.3} parent=5 // pred_check_branch
      %171 = sbr.rel (%p168) target = $region28
    $region27: #{dense_layer_forward.3} parent=5 // pred_region
      %s172 = ssub.s32 %s11, 1
      %p173 = scmp.lt.s32.totalorder %s16, 1
      %s174 = scalar_select %p173, %s16, 1
      %s175 = smul.addr %s174, 54
      %s176 = smul.addr %s175, 8
      %s177 = scalar_lea.vmem %s0, %s176
      %p178 = pneg %p37
      %p179 = pneg %p34
      %p180 = pneg %p58
      %p181 = pneg %p55
      %p182 = pneg %p84
      %p183 = pneg %p81
      %p184 = scmp.lt.s32.totalorder %s16, 1
      %s185 = scalar_select %p184, %s16, 1
      %s186 = smul.addr %s185, 54
      %s187 = smul.addr %s186, 8
      %s188 = scalar_lea.vmem %s2, %s187
      %p189 = pneg %p110
      %p190 = pneg %p107
      %p191 = scmp.lt.s32.totalorder %s16, 1
      %s192 = scalar_select %p191, %s16, 1
      %s193 = smul.addr %s192, 8
      %s194 = scalar_lea.vmem %s3, %s193
      %p195 = pneg %p136
      %p196 = pneg %p133
      %p197 = scmp.lt.s32.totalorder %s16, 1
      %s198 = scalar_select %p197, %s16, 1
      %s199 = smul.addr %s198, 8
      %s200 = scalar_lea.vmem %s4, %s199
      %p201 = scmp.lt.s32.totalorder %s16, 1
      %s202 = scalar_select %p201, %s16, 1
      %s203 = smul.addr %s202, 54
      %s204 = smul.addr %s203, 8
      %s205 = scalar_lea.vmem %s0, %s204
      %p206 = scmp.lt.s32.totalorder %s16, 1
      %s207 = scalar_select %p206, %s16, 1
      %s208 = smul.addr %s207, 54
      %s209 = smul.addr %s208, 8
      %s210 = scalar_lea.vmem %s2, %s209
      %p211 = scmp.lt.s32.totalorder %s16, 1
      %s212 = scalar_select %p211, %s16, 1
      %s213 = smul.addr %s212, 8
      %s214 = scalar_lea.vmem %s3, %s213
      %p215 = scmp.lt.s32.totalorder %s16, 1
      %s216 = scalar_select %p215, %s16, 1
      %s217 = smul.addr %s216, 8
      %s218 = scalar_lea.vmem %s4, %s217
      %v219 = vld [vmem:[%s205] sm:$0xff]
      %v220 = vld [vmem:[%s205 + $0x8] sm:$0xff]
      %v221 = vld [vmem:[%s205 + $0x10] sm:$0x3]
      %v222 = vld [vmem:[%s205 + $0x18] sm:$0xff]
      %v223 = vld [vmem:[%s205 + $0x20] sm:$0xff]
      %v224 = vld [vmem:[%s205 + $0x28] sm:$0x3]
      %v225 = vld [vmem:[%s205 + $0x30] sm:$0xff]
      %v226 = vld [vmem:[%s205 + $0x38] sm:$0xff]
      %v227 = vld [vmem:[%s205 + $0x40] sm:$0x3]
      %v228 = vld [vmem:[%s205 + $0x48] sm:$0xff]
      %v229 = vld [vmem:[%s205 + $0x50] sm:$0xff]
      %v230 = vld [vmem:[%s205 + $0x58] sm:$0x3]
      %v231 = vld [vmem:[%s205 + $0x60] sm:$0xff]
      %v232 = vld [vmem:[%s205 + $0x68] sm:$0xff]
      %v233 = vld [vmem:[%s205 + $0x70] sm:$0x3]
      %v234 = vld [vmem:[%s205 + $0x78] sm:$0xff]
      %v235 = vld [vmem:[%s205 + $0x80] sm:$0xff]
      %v236 = vld [vmem:[%s205 + $0x88] sm:$0x3]
      %v237 = vld [vmem:[%s205 + $0x90] sm:$0xff]
      %v238 = vld [vmem:[%s205 + $0x98] sm:$0xff]
      %v239 = vld [vmem:[%s205 + $0xa0] sm:$0x3]
      %v240 = vld [vmem:[%s205 + $0xa8] sm:$0xff]
      %v241 = vld [vmem:[%s205 + $0xb0] sm:$0xff]
      %v242 = vld [vmem:[%s205 + $0xb8] sm:$0x3]
      %v243 = vld [vmem:[%s205 + $0xc0] sm:$0xff]
      %v244 = vld [vmem:[%s205 + $0xc8] sm:$0xff]
      %v245 = vld [vmem:[%s205 + $0xd0] sm:$0x3]
      %v246 = vld [vmem:[%s205 + $0xd8] sm:$0xff]
      %v247 = vld [vmem:[%s205 + $0xe0] sm:$0xff]
      %v248 = vld [vmem:[%s205 + $0xe8] sm:$0x3]
      %v249 = vld [vmem:[%s205 + $0xf0] sm:$0xff]
      %v250 = vld [vmem:[%s205 + $0xf8] sm:$0xff]
      %v251 = vld [vmem:[%s205 + $0x100] sm:$0x3]
      %v252 = vld [vmem:[%s205 + $0x108] sm:$0xff]
      %v253 = vld [vmem:[%s205 + $0x110] sm:$0xff]
      %v254 = vld [vmem:[%s205 + $0x118] sm:$0x3]
      %v255 = vld [vmem:[%s205 + $0x120] sm:$0xff]
      %v256 = vld [vmem:[%s205 + $0x128] sm:$0xff]
      %v257 = vld [vmem:[%s205 + $0x130] sm:$0x3]
      %v258 = vld [vmem:[%s205 + $0x138] sm:$0xff]
      %v259 = vld [vmem:[%s205 + $0x140] sm:$0xff]
      %v260 = vld [vmem:[%s205 + $0x148] sm:$0x3]
      %v261 = vld [vmem:[%s205 + $0x150] sm:$0xff]
      %v262 = vld [vmem:[%s205 + $0x158] sm:$0xff]
      %v263 = vld [vmem:[%s205 + $0x160] sm:$0x3]
      %v264 = vld [vmem:[%s205 + $0x168] sm:$0xff]
      %v265 = vld [vmem:[%s205 + $0x170] sm:$0xff]
      %v266 = vld [vmem:[%s205 + $0x178] sm:$0x3]
      %v267 = vld [vmem:[%s205 + $0x180] sm:$0xff]
      %v268 = vld [vmem:[%s205 + $0x188] sm:$0xff]
      %v269 = vld [vmem:[%s205 + $0x190] sm:$0x3]
      %v270 = vld [vmem:[%s205 + $0x198] sm:$0xff]
      %v271 = vld [vmem:[%s205 + $0x1a0] sm:$0xff]
      %v272 = vld [vmem:[%s205 + $0x1a8] sm:$0x3]
      %v273 = vpack.c.bf16 %v219, %v219
      %v274 = vpack.c.bf16 %v220, %v220
      %v275 = vpack.c.bf16 %v221, %v221
      %v276 = vpack.c.bf16 %v222, %v222
      %v277 = vpack.c.bf16 %v223, %v223
      %v278 = vpack.c.bf16 %v224, %v224
      %v279 = vpack.c.bf16 %v225, %v225
      %v280 = vpack.c.bf16 %v226, %v226
      %v281 = vpack.c.bf16 %v227, %v227
      %v282 = vpack.c.bf16 %v228, %v228
      %v283 = vpack.c.bf16 %v229, %v229
      %v284 = vpack.c.bf16 %v230, %v230
      %v285 = vpack.c.bf16 %v231, %v231
      %v286 = vpack.c.bf16 %v232, %v232
      %v287 = vpack.c.bf16 %v233, %v233
      %v288 = vpack.c.bf16 %v234, %v234
      %v289 = vpack.c.bf16 %v235, %v235
      %v290 = vpack.c.bf16 %v236, %v236
      %v291 = vpack.c.bf16 %v237, %v237
      %v292 = vpack.c.bf16 %v238, %v238
      %v293 = vpack.c.bf16 %v239, %v239
      %v294 = vpack.c.bf16 %v240, %v240
      %v295 = vpack.c.bf16 %v241, %v241
      %v296 = vpack.c.bf16 %v242, %v242
      %v297 = vpack.c.bf16 %v243, %v243
      %v298 = vpack.c.bf16 %v244, %v244
      %v299 = vpack.c.bf16 %v245, %v245
      %v300 = vpack.c.bf16 %v246, %v246
      %v301 = vpack.c.bf16 %v247, %v247
      %v302 = vpack.c.bf16 %v248, %v248
      %v303 = vpack.c.bf16 %v249, %v249
      %v304 = vpack.c.bf16 %v250, %v250
      %v305 = vpack.c.bf16 %v251, %v251
      %v306 = vpack.c.bf16 %v252, %v252
      %v307 = vpack.c.bf16 %v253, %v253
      %v308 = vpack.c.bf16 %v254, %v254
      %v309 = vpack.c.bf16 %v255, %v255
      %v310 = vpack.c.bf16 %v256, %v256
      %v311 = vpack.c.bf16 %v257, %v257
      %v312 = vpack.c.bf16 %v258, %v258
      %v313 = vpack.c.bf16 %v259, %v259
      %v314 = vpack.c.bf16 %v260, %v260
      %v315 = vpack.c.bf16 %v261, %v261
      %v316 = vpack.c.bf16 %v262, %v262
      %v317 = vpack.c.bf16 %v263, %v263
      %v318 = vpack.c.bf16 %v264, %v264
      %v319 = vpack.c.bf16 %v265, %v265
      %v320 = vpack.c.bf16 %v266, %v266
      %v321 = vpack.c.bf16 %v267, %v267
      %v322 = vpack.c.bf16 %v268, %v268
      %v323 = vpack.c.bf16 %v269, %v269
      %v324 = vpack.c.bf16 %v270, %v270
      %v325 = vpack.c.bf16 %v271, %v271
      %v326 = vpack.c.bf16 %v272, %v272
      %v327 = vld [vmem:[%s1] sm:$0xf]
      %v328 = vld [vmem:[%s1 + $0x4] sm:$0xf]
      %v329 = vld [vmem:[%s1 + $0x8] sm:$0xf]
      %v330 = vld [vmem:[%s1 + $0xc] sm:$0xf]
      %v331 = vld [vmem:[%s1 + $0x10] sm:$0xf]
      %v332 = vld [vmem:[%s1 + $0x14] sm:$0xf]
      %v333 = vld [vmem:[%s1 + $0x18] sm:$0xf]
      %v334 = vld [vmem:[%s1 + $0x1c] sm:$0xf]
      %v335 = vld [vmem:[%s1 + $0x20] sm:$0xf]
      %v336 = vld [vmem:[%s1 + $0x24] sm:$0xf]
      %v337 = vld [vmem:[%s1 + $0x28] sm:$0xf]
      %v338 = vld [vmem:[%s1 + $0x2c] sm:$0xf]
      %v339 = vld [vmem:[%s1 + $0x30] sm:$0xf]
      %v340 = vld [vmem:[%s1 + $0x34] sm:$0xf]
      %v341 = vld [vmem:[%s1 + $0x38] sm:$0xf]
      %v342 = vld [vmem:[%s1 + $0x3c] sm:$0xf]
      %vm343 = vsmask.f32 3328
      %vm344 = vsmask.f32 7440
      %vm345 = vmor %vm343, %vm344
      %v347 = vshrl.u32 %v273, 16
      %v349 = vrot.slane %v347, 4
      %v350 = vshll.u32 %v273, 16
      %v352 = vrot.slane %v350, 5
      %v353 = vor.u32 %v349, %v352
      %v354 = vrot.slane %v353, 4
      %v356 = vshll.u32 %v274, 16
      %v358 = vrot.slane %v356, 5
      %v359 = vsel %vm345, %v354, %v358
      %v360 = vshrl.u32 %v274, 16
      %v362 = vrot.slane %v360, 4
      %v363 = vor.u32 %v362, %v358
      %v364 = vrot.slane %v363, 4
      %v366 = vshll.u32 %v275, 16
      %v368 = vrot.slane %v366, 5
      %v369 = vsel %vm345, %v364, %v368
      %v371 = vshrl.u32 %v276, 16
      %v373 = vrot.slane %v371, 4
      %v374 = vshll.u32 %v276, 16
      %v376 = vrot.slane %v374, 5
      %v377 = vor.u32 %v373, %v376
      %v378 = vrot.slane %v377, 4
      %v380 = vshll.u32 %v277, 16
      %v382 = vrot.slane %v380, 5
      %v383 = vsel %vm345, %v378, %v382
      %v384 = vshrl.u32 %v277, 16
      %v386 = vrot.slane %v384, 4
      %v387 = vor.u32 %v386, %v382
      %v388 = vrot.slane %v387, 4
      %v390 = vshll.u32 %v278, 16
      %v392 = vrot.slane %v390, 5
      %v393 = vsel %vm345, %v388, %v392
      %v395 = vshrl.u32 %v279, 16
      %v397 = vrot.slane %v395, 4
      %v398 = vshll.u32 %v279, 16
      %v400 = vrot.slane %v398, 5
      %v401 = vor.u32 %v397, %v400
      %v402 = vrot.slane %v401, 4
      %v404 = vshll.u32 %v280, 16
      %v406 = vrot.slane %v404, 5
      %v407 = vsel %vm345, %v402, %v406
      %v408 = vshrl.u32 %v280, 16
      %v410 = vrot.slane %v408, 4
      %v411 = vor.u32 %v410, %v406
      %v412 = vrot.slane %v411, 4
      %v414 = vshll.u32 %v281, 16
      %v416 = vrot.slane %v414, 5
      %v417 = vsel %vm345, %v412, %v416
      %v419 = vshrl.u32 %v282, 16
      %v421 = vrot.slane %v419, 4
      %v422 = vshll.u32 %v282, 16
      %v424 = vrot.slane %v422, 5
      %v425 = vor.u32 %v421, %v424
      %v426 = vrot.slane %v425, 4
      %v428 = vshll.u32 %v283, 16
      %v430 = vrot.slane %v428, 5
      %v431 = vsel %vm345, %v426, %v430
      %v432 = vshrl.u32 %v283, 16
      %v434 = vrot.slane %v432, 4
      %v435 = vor.u32 %v434, %v430
      %v436 = vrot.slane %v435, 4
      %v438 = vshll.u32 %v284, 16
      %v440 = vrot.slane %v438, 5
      %v441 = vsel %vm345, %v436, %v440
      %v443 = vshrl.u32 %v285, 16
      %v445 = vrot.slane %v443, 4
      %v446 = vshll.u32 %v285, 16
      %v448 = vrot.slane %v446, 5
      %v449 = vor.u32 %v445, %v448
      %v450 = vrot.slane %v449, 4
      %v452 = vshll.u32 %v286, 16
      %v454 = vrot.slane %v452, 5
      %v455 = vsel %vm345, %v450, %v454
      %v456 = vshrl.u32 %v286, 16
      %v458 = vrot.slane %v456, 4
      %v459 = vor.u32 %v458, %v454
      %v460 = vrot.slane %v459, 4
      %v462 = vshll.u32 %v287, 16
      %v464 = vrot.slane %v462, 5
      %v465 = vsel %vm345, %v460, %v464
      %v467 = vshrl.u32 %v288, 16
      %v469 = vrot.slane %v467, 4
      %v470 = vshll.u32 %v288, 16
      %v472 = vrot.slane %v470, 5
      %v473 = vor.u32 %v469, %v472
      %v474 = vrot.slane %v473, 4
      %v476 = vshll.u32 %v289, 16
      %v478 = vrot.slane %v476, 5
      %v479 = vsel %vm345, %v474, %v478
      %v480 = vshrl.u32 %v289, 16
      %v482 = vrot.slane %v480, 4
      %v483 = vor.u32 %v482, %v478
      %v484 = vrot.slane %v483, 4
      %v486 = vshll.u32 %v290, 16
      %v488 = vrot.slane %v486, 5
      %v489 = vsel %vm345, %v484, %v488
      %v491 = vshrl.u32 %v291, 16
      %v493 = vrot.slane %v491, 4
      %v494 = vshll.u32 %v291, 16
      %v496 = vrot.slane %v494, 5
      %v497 = vor.u32 %v493, %v496
      %v498 = vrot.slane %v497, 4
      %v500 = vshll.u32 %v292, 16
      %v502 = vrot.slane %v500, 5
      %v503 = vsel %vm345, %v498, %v502
      %v504 = vshrl.u32 %v292, 16
      %v506 = vrot.slane %v504, 4
      %v507 = vor.u32 %v506, %v502
      %v508 = vrot.slane %v507, 4
      %v510 = vshll.u32 %v293, 16
      %v512 = vrot.slane %v510, 5
      %v513 = vsel %vm345, %v508, %v512
      %v515 = vshrl.u32 %v294, 16
      %v517 = vrot.slane %v515, 4
      %v518 = vshll.u32 %v294, 16
      %v520 = vrot.slane %v518, 5
      %v521 = vor.u32 %v517, %v520
      %v522 = vrot.slane %v521, 4
      %v524 = vshll.u32 %v295, 16
      %v526 = vrot.slane %v524, 5
      %v527 = vsel %vm345, %v522, %v526
      %v528 = vshrl.u32 %v295, 16
      %v530 = vrot.slane %v528, 4
      %v531 = vor.u32 %v530, %v526
      %v532 = vrot.slane %v531, 4
      %v534 = vshll.u32 %v296, 16
      %v536 = vrot.slane %v534, 5
      %v537 = vsel %vm345, %v532, %v536
      %v539 = vshrl.u32 %v297, 16
      %v541 = vrot.slane %v539, 4
      %v542 = vshll.u32 %v297, 16
      %v544 = vrot.slane %v542, 5
      %v545 = vor.u32 %v541, %v544
      %v546 = vrot.slane %v545, 4
      %v548 = vshll.u32 %v298, 16
      %v550 = vrot.slane %v548, 5
      %v551 = vsel %vm345, %v546, %v550
      %v552 = vshrl.u32 %v298, 16
      %v554 = vrot.slane %v552, 4
      %v555 = vor.u32 %v554, %v550
      %v556 = vrot.slane %v555, 4
      %v558 = vshll.u32 %v299, 16
      %v560 = vrot.slane %v558, 5
      %v561 = vsel %vm345, %v556, %v560
      %v563 = vshrl.u32 %v300, 16
      %v565 = vrot.slane %v563, 4
      %v566 = vshll.u32 %v300, 16
      %v568 = vrot.slane %v566, 5
      %v569 = vor.u32 %v565, %v568
      %v570 = vrot.slane %v569, 4
      %v572 = vshll.u32 %v301, 16
      %v574 = vrot.slane %v572, 5
      %v575 = vsel %vm345, %v570, %v574
      %v576 = vshrl.u32 %v301, 16
      %v578 = vrot.slane %v576, 4
      %v579 = vor.u32 %v578, %v574
      %v580 = vrot.slane %v579, 4
      %v582 = vshll.u32 %v302, 16
      %v584 = vrot.slane %v582, 5
      %v585 = vsel %vm345, %v580, %v584
      %v587 = vshrl.u32 %v303, 16
      %v589 = vrot.slane %v587, 4
      %v590 = vshll.u32 %v303, 16
      %v592 = vrot.slane %v590, 5
      %v593 = vor.u32 %v589, %v592
      %v594 = vrot.slane %v593, 4
      %v596 = vshll.u32 %v304, 16
      %v598 = vrot.slane %v596, 5
      %v599 = vsel %vm345, %v594, %v598
      %v600 = vshrl.u32 %v304, 16
      %v602 = vrot.slane %v600, 4
      %v603 = vor.u32 %v602, %v598
      %v604 = vrot.slane %v603, 4
      %v606 = vshll.u32 %v305, 16
      %v608 = vrot.slane %v606, 5
      %v609 = vsel %vm345, %v604, %v608
      %v611 = vshrl.u32 %v306, 16
      %v613 = vrot.slane %v611, 4
      %v614 = vshll.u32 %v306, 16
      %v616 = vrot.slane %v614, 5
      %v617 = vor.u32 %v613, %v616
      %v618 = vrot.slane %v617, 4
      %v620 = vshll.u32 %v307, 16
      %v622 = vrot.slane %v620, 5
      %v623 = vsel %vm345, %v618, %v622
      %v624 = vshrl.u32 %v307, 16
      %v626 = vrot.slane %v624, 4
      %v627 = vor.u32 %v626, %v622
      %v628 = vrot.slane %v627, 4
      %v630 = vshll.u32 %v308, 16
      %v632 = vrot.slane %v630, 5
      %v633 = vsel %vm345, %v628, %v632
      %v635 = vshrl.u32 %v309, 16
      %v637 = vrot.slane %v635, 4
      %v638 = vshll.u32 %v309, 16
      %v640 = vrot.slane %v638, 5
      %v641 = vor.u32 %v637, %v640
      %v642 = vrot.slane %v641, 4
      %v644 = vshll.u32 %v310, 16
      %v646 = vrot.slane %v644, 5
      %v647 = vsel %vm345, %v642, %v646
      %v648 = vshrl.u32 %v310, 16
      %v650 = vrot.slane %v648, 4
      %v651 = vor.u32 %v650, %v646
      %v652 = vrot.slane %v651, 4
      %v654 = vshll.u32 %v311, 16
      %v656 = vrot.slane %v654, 5
      %v657 = vsel %vm345, %v652, %v656
      %v659 = vshrl.u32 %v312, 16
      %v661 = vrot.slane %v659, 4
      %v662 = vshll.u32 %v312, 16
      %v664 = vrot.slane %v662, 5
      %v665 = vor.u32 %v661, %v664
      %v666 = vrot.slane %v665, 4
      %v668 = vshll.u32 %v313, 16
      %v670 = vrot.slane %v668, 5
      %v671 = vsel %vm345, %v666, %v670
      %v672 = vshrl.u32 %v313, 16
      %v674 = vrot.slane %v672, 4
      %v675 = vor.u32 %v674, %v670
      %v676 = vrot.slane %v675, 4
      %v678 = vshll.u32 %v314, 16
      %v680 = vrot.slane %v678, 5
      %v681 = vsel %vm345, %v676, %v680
      %v683 = vshrl.u32 %v315, 16
      %v685 = vrot.slane %v683, 4
      %v686 = vshll.u32 %v315, 16
      %v688 = vrot.slane %v686, 5
      %v689 = vor.u32 %v685, %v688
      %v690 = vrot.slane %v689, 4
      %v692 = vshll.u32 %v316, 16
      %v694 = vrot.slane %v692, 5
      %v695 = vsel %vm345, %v690, %v694
      %v696 = vshrl.u32 %v316, 16
      %v698 = vrot.slane %v696, 4
      %v699 = vor.u32 %v698, %v694
      %v700 = vrot.slane %v699, 4
      %v702 = vshll.u32 %v317, 16
      %v704 = vrot.slane %v702, 5
      %v705 = vsel %vm345, %v700, %v704
      %v707 = vshrl.u32 %v318, 16
      %v709 = vrot.slane %v707, 4
      %v710 = vshll.u32 %v318, 16
      %v712 = vrot.slane %v710, 5
      %v713 = vor.u32 %v709, %v712
      %v714 = vrot.slane %v713, 4
      %v716 = vshll.u32 %v319, 16
      %v718 = vrot.slane %v716, 5
      %v719 = vsel %vm345, %v714, %v718
      %v720 = vshrl.u32 %v319, 16
      %v722 = vrot.slane %v720, 4
      %v723 = vor.u32 %v722, %v718
      %v724 = vrot.slane %v723, 4
      %v726 = vshll.u32 %v320, 16
      %v728 = vrot.slane %v726, 5
      %v729 = vsel %vm345, %v724, %v728
      %s730 = scalar_lea.vmem %s1, 64
      %v731 = vld [vmem:[%s730] sm:$0xf]
      %v732 = vld [vmem:[%s730 + $0x4] sm:$0xf]
      %v733 = vld [vmem:[%s730 + $0x8] sm:$0xf]
      %v734 = vld [vmem:[%s730 + $0xc] sm:$0xf]
      %v735 = vld [vmem:[%s730 + $0x10] sm:$0xf]
      %v736 = vld [vmem:[%s730 + $0x14] sm:$0xf]
      %v737 = vld [vmem:[%s730 + $0x18] sm:$0xf]
      %v738 = vld [vmem:[%s730 + $0x1c] sm:$0xf]
      %v739 = vld [vmem:[%s730 + $0x20] sm:$0xf]
      %v740 = vld [vmem:[%s730 + $0x24] sm:$0xf]
      %v741 = vld [vmem:[%s730 + $0x28] sm:$0xf]
      %v742 = vld [vmem:[%s730 + $0x2c] sm:$0xf]
      %v743 = vld [vmem:[%s730 + $0x30] sm:$0xf]
      %v744 = vld [vmem:[%s730 + $0x34] sm:$0xf]
      %v745 = vld [vmem:[%s730 + $0x38] sm:$0xf]
      %v746 = vld [vmem:[%s730 + $0x3c] sm:$0xf]
      %v747 = vunpack.c.l.b16 %v359
      %v748 = vunpack.c.l.b16 %v369
      %v749 = vunpack.c.l.b16 %v383
      %v750 = vunpack.c.l.b16 %v393
      %v751 = vunpack.c.l.b16 %v407
      %v752 = vunpack.c.l.b16 %v417
      %v753 = vunpack.c.l.b16 %v431
      %v754 = vunpack.c.l.b16 %v441
      %v755 = vunpack.c.l.b16 %v455
      %v756 = vunpack.c.l.b16 %v465
      %v757 = vunpack.c.l.b16 %v479
      %v758 = vunpack.c.l.b16 %v489
      %v759 = vunpack.c.l.b16 %v503
      %v760 = vunpack.c.l.b16 %v513
      %v761 = vunpack.c.l.b16 %v527
      %v762 = vunpack.c.l.b16 %v537
      %v763 = vunpack.c.l.b16 %v551
      %v764 = vunpack.c.l.b16 %v561
      %v765 = vunpack.c.l.b16 %v575
      %v766 = vunpack.c.l.b16 %v585
      %v767 = vunpack.c.l.b16 %v599
      %v768 = vunpack.c.l.b16 %v609
      %v769 = vunpack.c.l.b16 %v623
      %v770 = vunpack.c.l.b16 %v633
      %v771 = vunpack.c.l.b16 %v647
      %v772 = vunpack.c.l.b16 %v657
      %v773 = vunpack.c.l.b16 %v671
      %v774 = vunpack.c.l.b16 %v681
      %v775 = vunpack.c.l.b16 %v695
      %v776 = vunpack.c.l.b16 %v705
      %v777 = vunpack.c.l.b16 %v719
      %v778 = vunpack.c.l.b16 %v729
      %v779 = vpack.c.b16 %v748, %v747
      %v780 = vpack.c.b16 %v750, %v749
      %v781 = vpack.c.b16 %v752, %v751
      %v782 = vpack.c.b16 %v754, %v753
      %v783 = vpack.c.b16 %v756, %v755
      %v784 = vpack.c.b16 %v758, %v757
      %v785 = vpack.c.b16 %v760, %v759
      %v786 = vpack.c.b16 %v762, %v761
      %v787 = vpack.c.b16 %v764, %v763
      %v788 = vpack.c.b16 %v766, %v765
      %v789 = vpack.c.b16 %v768, %v767
      %v790 = vpack.c.b16 %v770, %v769
      %v791 = vpack.c.b16 %v772, %v771
      %v792 = vpack.c.b16 %v774, %v773
      %v793 = vpack.c.b16 %v776, %v775
      %v794 = vpack.c.b16 %v778, %v777
      %v827 = vunpack.c.l.b16 %v731
      %v828 = vunpack.c.l.b16 %v732
      %v829 = vunpack.c.l.b16 %v733
      %v830 = vunpack.c.l.b16 %v734
      %v831 = vunpack.c.l.b16 %v735
      %v832 = vunpack.c.l.b16 %v736
      %v833 = vunpack.c.l.b16 %v737
      %v834 = vunpack.c.l.b16 %v738
      %v835 = vunpack.c.l.b16 %v739
      %v836 = vunpack.c.l.b16 %v740
      %v837 = vunpack.c.l.b16 %v741
      %v838 = vunpack.c.l.b16 %v742
      %v839 = vunpack.c.l.b16 %v743
      %v840 = vunpack.c.l.b16 %v744
      %v841 = vunpack.c.l.b16 %v745
      %v842 = vunpack.c.l.b16 %v746
      %v843 = vpack.c.b16 %v828, %v827
      %v844 = vpack.c.b16 %v830, %v829
      %v845 = vpack.c.b16 %v832, %v831
      %v846 = vpack.c.b16 %v834, %v833
      %v847 = vpack.c.b16 %v836, %v835
      %v848 = vpack.c.b16 %v838, %v837
      %v849 = vpack.c.b16 %v840, %v839
      %v850 = vpack.c.b16 %v842, %v841
      %859 = vmatpush.bf16.msra.mxu0 %v850
      %860 = vmatpush.bf16.msra.mxu0 %v849
      %861 = vmatpush.bf16.msra.mxu0 %v848
      %862 = vmatpush.bf16.msra.mxu0 %v847
      %863 = vmatpush.bf16.msra.mxu0 %v846
      %864 = vmatpush.bf16.msra.mxu0 %v845
      %865 = vmatpush.bf16.msra.mxu0 %v844
      %866 = vmatpush.bf16.msra.mxu0 %v843
      %867 = vmatmul.bf16.gmra.mxu0 %v779
      %v868 = vpop.f32.mrf.mxu0
      %v869 = vadd.f32 0.0, %v868
      %v870 = vpop.f32.mrf.mxu0
      %v871 = vadd.f32 0.0, %v870
      %872 = vmatmul.bf16.gmra.mxu0 %v780
      %v873 = vpop.f32.mrf.mxu0
      %v874 = vadd.f32 0.0, %v873
      %v875 = vpop.f32.mrf.mxu0
      %v876 = vadd.f32 0.0, %v875
      %877 = vmatmul.bf16.gmra.mxu0 %v781
      %v878 = vpop.f32.mrf.mxu0
      %v879 = vadd.f32 0.0, %v878
      %v880 = vpop.f32.mrf.mxu0
      %v881 = vadd.f32 0.0, %v880
      %882 = vmatmul.bf16.gmra.mxu0 %v782
      %v883 = vpop.f32.mrf.mxu0
      %v884 = vadd.f32 0.0, %v883
      %v885 = vpop.f32.mrf.mxu0
      %v886 = vadd.f32 0.0, %v885
      %887 = vmatmul.bf16.gmra.mxu0 %v783
      %v888 = vpop.f32.mrf.mxu0
      %v889 = vadd.f32 0.0, %v888
      %v890 = vpop.f32.mrf.mxu0
      %v891 = vadd.f32 0.0, %v890
      %892 = vmatmul.bf16.gmra.mxu0 %v784
      %v893 = vpop.f32.mrf.mxu0
      %v894 = vadd.f32 0.0, %v893
      %v895 = vpop.f32.mrf.mxu0
      %v896 = vadd.f32 0.0, %v895
      %897 = vmatmul.bf16.gmra.mxu0 %v785
      %v898 = vpop.f32.mrf.mxu0
      %v899 = vadd.f32 0.0, %v898
      %v900 = vpop.f32.mrf.mxu0
      %v901 = vadd.f32 0.0, %v900
      %902 = vmatmul.bf16.gmra.mxu0 %v786
      %v903 = vpop.f32.mrf.mxu0
      %v904 = vadd.f32 0.0, %v903
      %v905 = vpop.f32.mrf.mxu0
      %v906 = vadd.f32 0.0, %v905
      %907 = vmatmul.bf16.gmra.mxu0 %v787
      %v908 = vpop.f32.mrf.mxu0
      %v909 = vadd.f32 0.0, %v908
      %v910 = vpop.f32.mrf.mxu0
      %v911 = vadd.f32 0.0, %v910
      %912 = vmatmul.bf16.gmra.mxu0 %v788
      %v913 = vpop.f32.mrf.mxu0
      %v914 = vadd.f32 0.0, %v913
      %v915 = vpop.f32.mrf.mxu0
      %v916 = vadd.f32 0.0, %v915
      %917 = vmatmul.bf16.gmra.mxu0 %v789
      %v918 = vpop.f32.mrf.mxu0
      %v919 = vadd.f32 0.0, %v918
      %v920 = vpop.f32.mrf.mxu0
      %v921 = vadd.f32 0.0, %v920
      %922 = vmatmul.bf16.gmra.mxu0 %v790
      %v923 = vpop.f32.mrf.mxu0
      %v924 = vadd.f32 0.0, %v923
      %v925 = vpop.f32.mrf.mxu0
      %v926 = vadd.f32 0.0, %v925
      %927 = vmatmul.bf16.gmra.mxu0 %v791
      %v928 = vpop.f32.mrf.mxu0
      %v929 = vadd.f32 0.0, %v928
      %v930 = vpop.f32.mrf.mxu0
      %v931 = vadd.f32 0.0, %v930
      %932 = vmatmul.bf16.gmra.mxu0 %v792
      %v933 = vpop.f32.mrf.mxu0
      %v934 = vadd.f32 0.0, %v933
      %v935 = vpop.f32.mrf.mxu0
      %v936 = vadd.f32 0.0, %v935
      %937 = vmatmul.bf16.gmra.mxu0 %v793
      %v938 = vpop.f32.mrf.mxu0
      %v939 = vadd.f32 0.0, %v938
      %v940 = vpop.f32.mrf.mxu0
      %v941 = vadd.f32 0.0, %v940
      %942 = vmatmul.bf16.gmra.mxu0 %v794
      %v943 = vpop.f32.mrf.mxu0
      %v944 = vadd.f32 0.0, %v943
      %v945 = vpop.f32.mrf.mxu0
      %v946 = vadd.f32 0.0, %v945
      %947 = vdwg.mxu0
      %v980 = vunpack.c.l.b16 %v273
      %v981 = vunpack.c.l.b16 %v274
      %v982 = vunpack.c.l.b16 %v276
      %v983 = vunpack.c.l.b16 %v277
      %v984 = vunpack.c.l.b16 %v279
      %v985 = vunpack.c.l.b16 %v280
      %v986 = vunpack.c.l.b16 %v282
      %v987 = vunpack.c.l.b16 %v283
      %v988 = vunpack.c.l.b16 %v285
      %v989 = vunpack.c.l.b16 %v286
      %v990 = vunpack.c.l.b16 %v288
      %v991 = vunpack.c.l.b16 %v289
      %v992 = vunpack.c.l.b16 %v291
      %v993 = vunpack.c.l.b16 %v292
      %v994 = vunpack.c.l.b16 %v294
      %v995 = vunpack.c.l.b16 %v295
      %v996 = vunpack.c.l.b16 %v297
      %v997 = vunpack.c.l.b16 %v298
      %v998 = vunpack.c.l.b16 %v300
      %v999 = vunpack.c.l.b16 %v301
      %v1000 = vunpack.c.l.b16 %v303
      %v1001 = vunpack.c.l.b16 %v304
      %v1002 = vunpack.c.l.b16 %v306
      %v1003 = vunpack.c.l.b16 %v307
      %v1004 = vunpack.c.l.b16 %v309
      %v1005 = vunpack.c.l.b16 %v310
      %v1006 = vunpack.c.l.b16 %v312
      %v1007 = vunpack.c.l.b16 %v313
      %v1008 = vunpack.c.l.b16 %v315
      %v1009 = vunpack.c.l.b16 %v316
      %v1010 = vunpack.c.l.b16 %v318
      %v1011 = vunpack.c.l.b16 %v319
      %v1012 = vpack.c.b16 %v981, %v980
      %v1013 = vpack.c.b16 %v983, %v982
      %v1014 = vpack.c.b16 %v985, %v984
      %v1015 = vpack.c.b16 %v987, %v986
      %v1016 = vpack.c.b16 %v989, %v988
      %v1017 = vpack.c.b16 %v991, %v990
      %v1018 = vpack.c.b16 %v993, %v992
      %v1019 = vpack.c.b16 %v995, %v994
      %v1020 = vpack.c.b16 %v997, %v996
      %v1021 = vpack.c.b16 %v999, %v998
      %v1022 = vpack.c.b16 %v1001, %v1000
      %v1023 = vpack.c.b16 %v1003, %v1002
      %v1024 = vpack.c.b16 %v1005, %v1004
      %v1025 = vpack.c.b16 %v1007, %v1006
      %v1026 = vpack.c.b16 %v1009, %v1008
      %v1027 = vpack.c.b16 %v1011, %v1010
      %v1060 = vunpack.c.l.b16 %v327
      %v1061 = vunpack.c.l.b16 %v328
      %v1062 = vunpack.c.l.b16 %v329
      %v1063 = vunpack.c.l.b16 %v330
      %v1064 = vunpack.c.l.b16 %v331
      %v1065 = vunpack.c.l.b16 %v332
      %v1066 = vunpack.c.l.b16 %v333
      %v1067 = vunpack.c.l.b16 %v334
      %v1068 = vunpack.c.l.b16 %v335
      %v1069 = vunpack.c.l.b16 %v336
      %v1070 = vunpack.c.l.b16 %v337
      %v1071 = vunpack.c.l.b16 %v338
      %v1072 = vunpack.c.l.b16 %v339
      %v1073 = vunpack.c.l.b16 %v340
      %v1074 = vunpack.c.l.b16 %v341
      %v1075 = vunpack.c.l.b16 %v342
      %v1076 = vpack.c.b16 %v1061, %v1060
      %v1077 = vpack.c.b16 %v1063, %v1062
      %v1078 = vpack.c.b16 %v1065, %v1064
      %v1079 = vpack.c.b16 %v1067, %v1066
      %v1080 = vpack.c.b16 %v1069, %v1068
      %v1081 = vpack.c.b16 %v1071, %v1070
      %v1082 = vpack.c.b16 %v1073, %v1072
      %v1083 = vpack.c.b16 %v1075, %v1074
      %1092 = vmatpush.bf16.msra.mxu0 %v1083
      %1093 = vmatpush.bf16.msra.mxu0 %v1082
      %1094 = vmatpush.bf16.msra.mxu0 %v1081
      %1095 = vmatpush.bf16.msra.mxu0 %v1080
      %1096 = vmatpush.bf16.msra.mxu0 %v1079
      %1097 = vmatpush.bf16.msra.mxu0 %v1078
      %1098 = vmatpush.bf16.msra.mxu0 %v1077
      %1099 = vmatpush.bf16.msra.mxu0 %v1076
      %1100 = vmatmul.bf16.gmra.mxu0 %v1012
      %v1101 = vpop.f32.mrf.mxu0
      %v1102 = vadd.f32 %v869, %v1101
      %v1103 = vpop.f32.mrf.mxu0
      %v1104 = vadd.f32 %v871, %v1103
      %1105 = vmatmul.bf16.gmra.mxu0 %v1013
      %v1106 = vpop.f32.mrf.mxu0
      %v1107 = vadd.f32 %v874, %v1106
      %v1108 = vpop.f32.mrf.mxu0
      %v1109 = vadd.f32 %v876, %v1108
      %1110 = vmatmul.bf16.gmra.mxu0 %v1014
      %v1111 = vpop.f32.mrf.mxu0
      %v1112 = vadd.f32 %v879, %v1111
      %v1113 = vpop.f32.mrf.mxu0
      %v1114 = vadd.f32 %v881, %v1113
      %1115 = vmatmul.bf16.gmra.mxu0 %v1015
      %v1116 = vpop.f32.mrf.mxu0
      %v1117 = vadd.f32 %v884, %v1116
      %v1118 = vpop.f32.mrf.mxu0
      %v1119 = vadd.f32 %v886, %v1118
      %1120 = vmatmul.bf16.gmra.mxu0 %v1016
      %v1121 = vpop.f32.mrf.mxu0
      %v1122 = vadd.f32 %v889, %v1121
      %v1123 = vpop.f32.mrf.mxu0
      %v1124 = vadd.f32 %v891, %v1123
      %1125 = vmatmul.bf16.gmra.mxu0 %v1017
      %v1126 = vpop.f32.mrf.mxu0
      %v1127 = vadd.f32 %v894, %v1126
      %v1128 = vpop.f32.mrf.mxu0
      %v1129 = vadd.f32 %v896, %v1128
      %1130 = vmatmul.bf16.gmra.mxu0 %v1018
      %v1131 = vpop.f32.mrf.mxu0
      %v1132 = vadd.f32 %v899, %v1131
      %v1133 = vpop.f32.mrf.mxu0
      %v1134 = vadd.f32 %v901, %v1133
      %1135 = vmatmul.bf16.gmra.mxu0 %v1019
      %v1136 = vpop.f32.mrf.mxu0
      %v1137 = vadd.f32 %v904, %v1136
      %v1138 = vpop.f32.mrf.mxu0
      %v1139 = vadd.f32 %v906, %v1138
      %1140 = vmatmul.bf16.gmra.mxu0 %v1020
      %v1141 = vpop.f32.mrf.mxu0
      %v1142 = vadd.f32 %v909, %v1141
      %v1143 = vpop.f32.mrf.mxu0
      %v1144 = vadd.f32 %v911, %v1143
      %1145 = vmatmul.bf16.gmra.mxu0 %v1021
      %v1146 = vpop.f32.mrf.mxu0
      %v1147 = vadd.f32 %v914, %v1146
      %v1148 = vpop.f32.mrf.mxu0
      %v1149 = vadd.f32 %v916, %v1148
      %1150 = vmatmul.bf16.gmra.mxu0 %v1022
      %v1151 = vpop.f32.mrf.mxu0
      %v1152 = vadd.f32 %v919, %v1151
      %v1153 = vpop.f32.mrf.mxu0
      %v1154 = vadd.f32 %v921, %v1153
      %1155 = vmatmul.bf16.gmra.mxu0 %v1023
      %v1156 = vpop.f32.mrf.mxu0
      %v1157 = vadd.f32 %v924, %v1156
      %v1158 = vpop.f32.mrf.mxu0
      %v1159 = vadd.f32 %v926, %v1158
      %1160 = vmatmul.bf16.gmra.mxu0 %v1024
      %v1161 = vpop.f32.mrf.mxu0
      %v1162 = vadd.f32 %v929, %v1161
      %v1163 = vpop.f32.mrf.mxu0
      %v1164 = vadd.f32 %v931, %v1163
      %1165 = vmatmul.bf16.gmra.mxu0 %v1025
      %v1166 = vpop.f32.mrf.mxu0
      %v1167 = vadd.f32 %v934, %v1166
      %v1168 = vpop.f32.mrf.mxu0
      %v1169 = vadd.f32 %v936, %v1168
      %1170 = vmatmul.bf16.gmra.mxu0 %v1026
      %v1171 = vpop.f32.mrf.mxu0
      %v1172 = vadd.f32 %v939, %v1171
      %v1173 = vpop.f32.mrf.mxu0
      %v1174 = vadd.f32 %v941, %v1173
      %1175 = vmatmul.bf16.gmra.mxu0 %v1027
      %v1176 = vpop.f32.mrf.mxu0
      %v1177 = vadd.f32 %v944, %v1176
      %v1178 = vpop.f32.mrf.mxu0
      %v1179 = vadd.f32 %v946, %v1178
      %1180 = vdwg.mxu0
      %vm1197 = vcmask 1042432
      %vm1198 = vcmask 1046532
      %vm1199 = vmor %vm1197, %vm1198
      %v1200 = vrot.slane %v273, 5
      %v1201 = vrot.slane %v1200, 4
      %v1202 = vrot.slane %v274, 5
      %v1203 = vsel %vm1199, %v1201, %v1202
      %v1204 = vrot.slane %v1202, 4
      %v1205 = vrot.slane %v275, 5
      %v1206 = vsel %vm1199, %v1204, %v1205
      %v1207 = vrot.slane %v276, 5
      %v1208 = vrot.slane %v1207, 4
      %v1209 = vrot.slane %v277, 5
      %v1210 = vsel %vm1199, %v1208, %v1209
      %v1211 = vrot.slane %v1209, 4
      %v1212 = vrot.slane %v278, 5
      %v1213 = vsel %vm1199, %v1211, %v1212
      %v1214 = vrot.slane %v279, 5
      %v1215 = vrot.slane %v1214, 4
      %v1216 = vrot.slane %v280, 5
      %v1217 = vsel %vm1199, %v1215, %v1216
      %v1218 = vrot.slane %v1216, 4
      %v1219 = vrot.slane %v281, 5
      %v1220 = vsel %vm1199, %v1218, %v1219
      %v1221 = vrot.slane %v282, 5
      %v1222 = vrot.slane %v1221, 4
      %v1223 = vrot.slane %v283, 5
      %v1224 = vsel %vm1199, %v1222, %v1223
      %v1225 = vrot.slane %v1223, 4
      %v1226 = vrot.slane %v284, 5
      %v1227 = vsel %vm1199, %v1225, %v1226
      %v1228 = vrot.slane %v285, 5
      %v1229 = vrot.slane %v1228, 4
      %v1230 = vrot.slane %v286, 5
      %v1231 = vsel %vm1199, %v1229, %v1230
      %v1232 = vrot.slane %v1230, 4
      %v1233 = vrot.slane %v287, 5
      %v1234 = vsel %vm1199, %v1232, %v1233
      %v1235 = vrot.slane %v288, 5
      %v1236 = vrot.slane %v1235, 4
      %v1237 = vrot.slane %v289, 5
      %v1238 = vsel %vm1199, %v1236, %v1237
      %v1239 = vrot.slane %v1237, 4
      %v1240 = vrot.slane %v290, 5
      %v1241 = vsel %vm1199, %v1239, %v1240
      %v1242 = vrot.slane %v291, 5
      %v1243 = vrot.slane %v1242, 4
      %v1244 = vrot.slane %v292, 5
      %v1245 = vsel %vm1199, %v1243, %v1244
      %v1246 = vrot.slane %v1244, 4
      %v1247 = vrot.slane %v293, 5
      %v1248 = vsel %vm1199, %v1246, %v1247
      %v1249 = vrot.slane %v294, 5
      %v1250 = vrot.slane %v1249, 4
      %v1251 = vrot.slane %v295, 5
      %v1252 = vsel %vm1199, %v1250, %v1251
      %v1253 = vrot.slane %v1251, 4
      %v1254 = vrot.slane %v296, 5
      %v1255 = vsel %vm1199, %v1253, %v1254
      %v1256 = vrot.slane %v297, 5
      %v1257 = vrot.slane %v1256, 4
      %v1258 = vrot.slane %v298, 5
      %v1259 = vsel %vm1199, %v1257, %v1258
      %v1260 = vrot.slane %v1258, 4
      %v1261 = vrot.slane %v299, 5
      %v1262 = vsel %vm1199, %v1260, %v1261
      %v1263 = vrot.slane %v300, 5
      %v1264 = vrot.slane %v1263, 4
      %v1265 = vrot.slane %v301, 5
      %v1266 = vsel %vm1199, %v1264, %v1265
      %v1267 = vrot.slane %v1265, 4
      %v1268 = vrot.slane %v302, 5
      %v1269 = vsel %vm1199, %v1267, %v1268
      %v1270 = vrot.slane %v303, 5
      %v1271 = vrot.slane %v1270, 4
      %v1272 = vrot.slane %v304, 5
      %v1273 = vsel %vm1199, %v1271, %v1272
      %v1274 = vrot.slane %v1272, 4
      %v1275 = vrot.slane %v305, 5
      %v1276 = vsel %vm1199, %v1274, %v1275
      %v1277 = vrot.slane %v306, 5
      %v1278 = vrot.slane %v1277, 4
      %v1279 = vrot.slane %v307, 5
      %v1280 = vsel %vm1199, %v1278, %v1279
      %v1281 = vrot.slane %v1279, 4
      %v1282 = vrot.slane %v308, 5
      %v1283 = vsel %vm1199, %v1281, %v1282
      %v1284 = vrot.slane %v309, 5
      %v1285 = vrot.slane %v1284, 4
      %v1286 = vrot.slane %v310, 5
      %v1287 = vsel %vm1199, %v1285, %v1286
      %v1288 = vrot.slane %v1286, 4
      %v1289 = vrot.slane %v311, 5
      %v1290 = vsel %vm1199, %v1288, %v1289
      %v1291 = vrot.slane %v312, 5
      %v1292 = vrot.slane %v1291, 4
      %v1293 = vrot.slane %v313, 5
      %v1294 = vsel %vm1199, %v1292, %v1293
      %v1295 = vrot.slane %v1293, 4
      %v1296 = vrot.slane %v314, 5
      %v1297 = vsel %vm1199, %v1295, %v1296
      %v1298 = vrot.slane %v315, 5
      %v1299 = vrot.slane %v1298, 4
      %v1300 = vrot.slane %v316, 5
      %v1301 = vsel %vm1199, %v1299, %v1300
      %v1302 = vrot.slane %v1300, 4
      %v1303 = vrot.slane %v317, 5
      %v1304 = vsel %vm1199, %v1302, %v1303
      %v1305 = vrot.slane %v318, 5
      %v1306 = vrot.slane %v1305, 4
      %v1307 = vrot.slane %v319, 5
      %v1308 = vsel %vm1199, %v1306, %v1307
      %v1309 = vrot.slane %v1307, 4
      %v1310 = vrot.slane %v320, 5
      %v1311 = vsel %vm1199, %v1309, %v1310
      %s1312 = scalar_lea.vmem %s1, 128
      %v1313 = vld [vmem:[%s1312] sm:$0xf]
      %v1314 = vld [vmem:[%s1312 + $0x4] sm:$0xf]
      %v1315 = vld [vmem:[%s1312 + $0x8] sm:$0xf]
      %v1316 = vld [vmem:[%s1312 + $0xc] sm:$0xf]
      %v1317 = vld [vmem:[%s1312 + $0x10] sm:$0xf]
      %v1318 = vld [vmem:[%s1312 + $0x14] sm:$0xf]
      %v1319 = vld [vmem:[%s1312 + $0x18] sm:$0xf]
      %v1320 = vld [vmem:[%s1312 + $0x1c] sm:$0xf]
      %v1321 = vld [vmem:[%s1312 + $0x20] sm:$0xf]
      %v1322 = vld [vmem:[%s1312 + $0x24] sm:$0xf]
      %v1323 = vld [vmem:[%s1312 + $0x28] sm:$0xf]
      %v1324 = vld [vmem:[%s1312 + $0x2c] sm:$0xf]
      %v1325 = vld [vmem:[%s1312 + $0x30] sm:$0xf]
      %v1326 = vld [vmem:[%s1312 + $0x34] sm:$0xf]
      %v1327 = vld [vmem:[%s1312 + $0x38] sm:$0xf]
      %v1328 = vld [vmem:[%s1312 + $0x3c] sm:$0xf]
      %v1329 = vunpack.c.l.b16 %v1203
      %v1330 = vunpack.c.l.b16 %v1206
      %v1331 = vunpack.c.l.b16 %v1210
      %v1332 = vunpack.c.l.b16 %v1213
      %v1333 = vunpack.c.l.b16 %v1217
      %v1334 = vunpack.c.l.b16 %v1220
      %v1335 = vunpack.c.l.b16 %v1224
      %v1336 = vunpack.c.l.b16 %v1227
      %v1337 = vunpack.c.l.b16 %v1231
      %v1338 = vunpack.c.l.b16 %v1234
      %v1339 = vunpack.c.l.b16 %v1238
      %v1340 = vunpack.c.l.b16 %v1241
      %v1341 = vunpack.c.l.b16 %v1245
      %v1342 = vunpack.c.l.b16 %v1248
      %v1343 = vunpack.c.l.b16 %v1252
      %v1344 = vunpack.c.l.b16 %v1255
      %v1345 = vunpack.c.l.b16 %v1259
      %v1346 = vunpack.c.l.b16 %v1262
      %v1347 = vunpack.c.l.b16 %v1266
      %v1348 = vunpack.c.l.b16 %v1269
      %v1349 = vunpack.c.l.b16 %v1273
      %v1350 = vunpack.c.l.b16 %v1276
      %v1351 = vunpack.c.l.b16 %v1280
      %v1352 = vunpack.c.l.b16 %v1283
      %v1353 = vunpack.c.l.b16 %v1287
      %v1354 = vunpack.c.l.b16 %v1290
      %v1355 = vunpack.c.l.b16 %v1294
      %v1356 = vunpack.c.l.b16 %v1297
      %v1357 = vunpack.c.l.b16 %v1301
      %v1358 = vunpack.c.l.b16 %v1304
      %v1359 = vunpack.c.l.b16 %v1308
      %v1360 = vunpack.c.l.b16 %v1311
      %v1361 = vpack.c.b16 %v1330, %v1329
      %v1362 = vpack.c.b16 %v1332, %v1331
      %v1363 = vpack.c.b16 %v1334, %v1333
      %v1364 = vpack.c.b16 %v1336, %v1335
      %v1365 = vpack.c.b16 %v1338, %v1337
      %v1366 = vpack.c.b16 %v1340, %v1339
      %v1367 = vpack.c.b16 %v1342, %v1341
      %v1368 = vpack.c.b16 %v1344, %v1343
      %v1369 = vpack.c.b16 %v1346, %v1345
      %v1370 = vpack.c.b16 %v1348, %v1347
      %v1371 = vpack.c.b16 %v1350, %v1349
      %v1372 = vpack.c.b16 %v1352, %v1351
      %v1373 = vpack.c.b16 %v1354, %v1353
      %v1374 = vpack.c.b16 %v1356, %v1355
      %v1375 = vpack.c.b16 %v1358, %v1357
      %v1376 = vpack.c.b16 %v1360, %v1359
      %v1409 = vunpack.c.l.b16 %v1313
      %v1410 = vunpack.c.l.b16 %v1314
      %v1411 = vunpack.c.l.b16 %v1315
      %v1412 = vunpack.c.l.b16 %v1316
      %v1413 = vunpack.c.l.b16 %v1317
      %v1414 = vunpack.c.l.b16 %v1318
      %v1415 = vunpack.c.l.b16 %v1319
      %v1416 = vunpack.c.l.b16 %v1320
      %v1417 = vunpack.c.l.b16 %v1321
      %v1418 = vunpack.c.l.b16 %v1322
      %v1419 = vunpack.c.l.b16 %v1323
      %v1420 = vunpack.c.l.b16 %v1324
      %v1421 = vunpack.c.l.b16 %v1325
      %v1422 = vunpack.c.l.b16 %v1326
      %v1423 = vunpack.c.l.b16 %v1327
      %v1424 = vunpack.c.l.b16 %v1328
      %v1425 = vpack.c.b16 %v1410, %v1409
      %v1426 = vpack.c.b16 %v1412, %v1411
      %v1427 = vpack.c.b16 %v1414, %v1413
      %v1428 = vpack.c.b16 %v1416, %v1415
      %v1429 = vpack.c.b16 %v1418, %v1417
      %v1430 = vpack.c.b16 %v1420, %v1419
      %v1431 = vpack.c.b16 %v1422, %v1421
      %v1432 = vpack.c.b16 %v1424, %v1423
      %1441 = vmatpush.bf16.msra.mxu0 %v1432
      %1442 = vmatpush.bf16.msra.mxu0 %v1431
      %1443 = vmatpush.bf16.msra.mxu0 %v1430
      %1444 = vmatpush.bf16.msra.mxu0 %v1429
      %1445 = vmatpush.bf16.msra.mxu0 %v1428
      %1446 = vmatpush.bf16.msra.mxu0 %v1427
      %1447 = vmatpush.bf16.msra.mxu0 %v1426
      %1448 = vmatpush.bf16.msra.mxu0 %v1425
      %1449 = vmatmul.bf16.gmra.mxu0 %v1361
      %v1450 = vpop.f32.mrf.mxu0
      %v1451 = vadd.f32 0.0, %v1450
      %v1452 = vpop.f32.mrf.mxu0
      %v1453 = vadd.f32 0.0, %v1452
      %1454 = vmatmul.bf16.gmra.mxu0 %v1362
      %v1455 = vpop.f32.mrf.mxu0
      %v1456 = vadd.f32 0.0, %v1455
      %v1457 = vpop.f32.mrf.mxu0
      %v1458 = vadd.f32 0.0, %v1457
      %1459 = vmatmul.bf16.gmra.mxu0 %v1363
      %v1460 = vpop.f32.mrf.mxu0
      %v1461 = vadd.f32 0.0, %v1460
      %v1462 = vpop.f32.mrf.mxu0
      %v1463 = vadd.f32 0.0, %v1462
      %1464 = vmatmul.bf16.gmra.mxu0 %v1364
      %v1465 = vpop.f32.mrf.mxu0
      %v1466 = vadd.f32 0.0, %v1465
      %v1467 = vpop.f32.mrf.mxu0
      %v1468 = vadd.f32 0.0, %v1467
      %1469 = vmatmul.bf16.gmra.mxu0 %v1365
      %v1470 = vpop.f32.mrf.mxu0
      %v1471 = vadd.f32 0.0, %v1470
      %v1472 = vpop.f32.mrf.mxu0
      %v1473 = vadd.f32 0.0, %v1472
      %1474 = vmatmul.bf16.gmra.mxu0 %v1366
      %v1475 = vpop.f32.mrf.mxu0
      %v1476 = vadd.f32 0.0, %v1475
      %v1477 = vpop.f32.mrf.mxu0
      %v1478 = vadd.f32 0.0, %v1477
      %1479 = vmatmul.bf16.gmra.mxu0 %v1367
      %v1480 = vpop.f32.mrf.mxu0
      %v1481 = vadd.f32 0.0, %v1480
      %v1482 = vpop.f32.mrf.mxu0
      %v1483 = vadd.f32 0.0, %v1482
      %1484 = vmatmul.bf16.gmra.mxu0 %v1368
      %v1485 = vpop.f32.mrf.mxu0
      %v1486 = vadd.f32 0.0, %v1485
      %v1487 = vpop.f32.mrf.mxu0
      %v1488 = vadd.f32 0.0, %v1487
      %1489 = vmatmul.bf16.gmra.mxu0 %v1369
      %v1490 = vpop.f32.mrf.mxu0
      %v1491 = vadd.f32 0.0, %v1490
      %v1492 = vpop.f32.mrf.mxu0
      %v1493 = vadd.f32 0.0, %v1492
      %1494 = vmatmul.bf16.gmra.mxu0 %v1370
      %v1495 = vpop.f32.mrf.mxu0
      %v1496 = vadd.f32 0.0, %v1495
      %v1497 = vpop.f32.mrf.mxu0
      %v1498 = vadd.f32 0.0, %v1497
      %1499 = vmatmul.bf16.gmra.mxu0 %v1371
      %v1500 = vpop.f32.mrf.mxu0
      %v1501 = vadd.f32 0.0, %v1500
      %v1502 = vpop.f32.mrf.mxu0
      %v1503 = vadd.f32 0.0, %v1502
      %1504 = vmatmul.bf16.gmra.mxu0 %v1372
      %v1505 = vpop.f32.mrf.mxu0
      %v1506 = vadd.f32 0.0, %v1505
      %v1507 = vpop.f32.mrf.mxu0
      %v1508 = vadd.f32 0.0, %v1507
      %1509 = vmatmul.bf16.gmra.mxu0 %v1373
      %v1510 = vpop.f32.mrf.mxu0
      %v1511 = vadd.f32 0.0, %v1510
      %v1512 = vpop.f32.mrf.mxu0
      %v1513 = vadd.f32 0.0, %v1512
      %1514 = vmatmul.bf16.gmra.mxu0 %v1374
      %v1515 = vpop.f32.mrf.mxu0
      %v1516 = vadd.f32 0.0, %v1515
      %v1517 = vpop.f32.mrf.mxu0
      %v1518 = vadd.f32 0.0, %v1517
      %1519 = vmatmul.bf16.gmra.mxu0 %v1375
      %v1520 = vpop.f32.mrf.mxu0
      %v1521 = vadd.f32 0.0, %v1520
      %v1522 = vpop.f32.mrf.mxu0
      %v1523 = vadd.f32 0.0, %v1522
      %1524 = vmatmul.bf16.gmra.mxu0 %v1376
      %v1525 = vpop.f32.mrf.mxu0
      %v1526 = vadd.f32 0.0, %v1525
      %v1527 = vpop.f32.mrf.mxu0
      %v1528 = vadd.f32 0.0, %v1527
      %1529 = vdwg.mxu0
      %v1530 = vadd.f32 %v1102, %v1451
      %v1531 = vadd.f32 %v1104, %v1453
      %v1532 = vadd.f32 %v1107, %v1456
      %v1533 = vadd.f32 %v1109, %v1458
      %v1534 = vadd.f32 %v1112, %v1461
      %v1535 = vadd.f32 %v1114, %v1463
      %v1536 = vadd.f32 %v1117, %v1466
      %v1537 = vadd.f32 %v1119, %v1468
      %v1538 = vadd.f32 %v1122, %v1471
      %v1539 = vadd.f32 %v1124, %v1473
      %v1540 = vadd.f32 %v1127, %v1476
      %v1541 = vadd.f32 %v1129, %v1478
      %v1542 = vadd.f32 %v1132, %v1481
      %v1543 = vadd.f32 %v1134, %v1483
      %v1544 = vadd.f32 %v1137, %v1486
      %v1545 = vadd.f32 %v1139, %v1488
      %v1546 = vadd.f32 %v1142, %v1491
      %v1547 = vadd.f32 %v1144, %v1493
      %v1548 = vadd.f32 %v1147, %v1496
      %v1549 = vadd.f32 %v1149, %v1498
      %v1550 = vadd.f32 %v1152, %v1501
      %v1551 = vadd.f32 %v1154, %v1503
      %v1552 = vadd.f32 %v1157, %v1506
      %v1553 = vadd.f32 %v1159, %v1508
      %v1554 = vadd.f32 %v1162, %v1511
      %v1555 = vadd.f32 %v1164, %v1513
      %v1556 = vadd.f32 %v1167, %v1516
      %v1557 = vadd.f32 %v1169, %v1518
      %v1558 = vadd.f32 %v1172, %v1521
      %v1559 = vadd.f32 %v1174, %v1523
      %v1560 = vadd.f32 %v1177, %v1526
      %v1561 = vadd.f32 %v1179, %v1528
      %s1562 = scalar_lea.vmem %s1, 192
      %v1563 = vld [vmem:[%s1562] sm:$0xf]
      %v1564 = vld [vmem:[%s1562 + $0x4] sm:$0xf]
      %v1565 = vld [vmem:[%s1562 + $0x8] sm:$0xf]
      %v1566 = vld [vmem:[%s1562 + $0xc] sm:$0xf]
      %v1567 = vld [vmem:[%s1562 + $0x10] sm:$0xf]
      %v1568 = vld [vmem:[%s1562 + $0x14] sm:$0xf]
      %v1569 = vld [vmem:[%s1562 + $0x18] sm:$0xf]
      %v1570 = vld [vmem:[%s1562 + $0x1c] sm:$0xf]
      %v1571 = vld [vmem:[%s1562 + $0x20] sm:$0xf]
      %v1572 = vld [vmem:[%s1562 + $0x24] sm:$0xf]
      %v1573 = vld [vmem:[%s1562 + $0x28] sm:$0xf]
      %v1574 = vld [vmem:[%s1562 + $0x2c] sm:$0xf]
      %v1575 = vld [vmem:[%s1562 + $0x30] sm:$0xf]
      %v1576 = vld [vmem:[%s1562 + $0x34] sm:$0xf]
      %v1577 = vld [vmem:[%s1562 + $0x38] sm:$0xf]
      %v1578 = vld [vmem:[%s1562 + $0x3c] sm:$0xf]
      %v1581 = vunpack.c.l.b16 %v321
      %v1582 = vunpack.c.l.b16 %v322
      %v1583 = vpack.c.b16 %v1582, %v1581
      %v1601 = vunpack.c.l.b16 %v1563
      %v1602 = vunpack.c.l.b16 %v1564
      %v1603 = vunpack.c.l.b16 %v1565
      %v1604 = vunpack.c.l.b16 %v1566
      %v1605 = vunpack.c.l.b16 %v1567
      %v1606 = vunpack.c.l.b16 %v1568
      %v1607 = vunpack.c.l.b16 %v1569
      %v1608 = vunpack.c.l.b16 %v1570
      %v1609 = vunpack.c.l.b16 %v1571
      %v1610 = vunpack.c.l.b16 %v1572
      %v1611 = vunpack.c.l.b16 %v1573
      %v1612 = vunpack.c.l.b16 %v1574
      %v1613 = vunpack.c.l.b16 %v1575
      %v1614 = vunpack.c.l.b16 %v1576
      %v1615 = vunpack.c.l.b16 %v1577
      %v1616 = vunpack.c.l.b16 %v1578
      %v1617 = vpack.c.b16 %v1602, %v1601
      %v1618 = vpack.c.b16 %v1604, %v1603
      %v1619 = vpack.c.b16 %v1606, %v1605
      %v1620 = vpack.c.b16 %v1608, %v1607
      %v1621 = vpack.c.b16 %v1610, %v1609
      %v1622 = vpack.c.b16 %v1612, %v1611
      %v1623 = vpack.c.b16 %v1614, %v1613
      %v1624 = vpack.c.b16 %v1616, %v1615
      %1633 = vmatpush.bf16.msra.mxu0 %v1624
      %1634 = vmatpush.bf16.msra.mxu0 %v1623
      %1635 = vmatpush.bf16.msra.mxu0 %v1622
      %1636 = vmatpush.bf16.msra.mxu0 %v1621
      %1637 = vmatpush.bf16.msra.mxu0 %v1620
      %1638 = vmatpush.bf16.msra.mxu0 %v1619
      %1639 = vmatpush.bf16.msra.mxu0 %v1618
      %1640 = vmatpush.bf16.msra.mxu0 %v1617
      %1641 = vmatmul.bf16.gmra.mxu0 %v1013
      %v1642 = vpop.f32.mrf.mxu0
      %v1643 = vadd.f32 0.0, %v1642
      %v1644 = vpop.f32.mrf.mxu0
      %v1645 = vadd.f32 0.0, %v1644
      %1646 = vmatmul.bf16.gmra.mxu0 %v1014
      %v1647 = vpop.f32.mrf.mxu0
      %v1648 = vadd.f32 0.0, %v1647
      %v1649 = vpop.f32.mrf.mxu0
      %v1650 = vadd.f32 0.0, %v1649
      %1651 = vmatmul.bf16.gmra.mxu0 %v1015
      %v1652 = vpop.f32.mrf.mxu0
      %v1653 = vadd.f32 0.0, %v1652
      %v1654 = vpop.f32.mrf.mxu0
      %v1655 = vadd.f32 0.0, %v1654
      %1656 = vmatmul.bf16.gmra.mxu0 %v1016
      %v1657 = vpop.f32.mrf.mxu0
      %v1658 = vadd.f32 0.0, %v1657
      %v1659 = vpop.f32.mrf.mxu0
      %v1660 = vadd.f32 0.0, %v1659
      %1661 = vmatmul.bf16.gmra.mxu0 %v1017
      %v1662 = vpop.f32.mrf.mxu0
      %v1663 = vadd.f32 0.0, %v1662
      %v1664 = vpop.f32.mrf.mxu0
      %v1665 = vadd.f32 0.0, %v1664
      %1666 = vmatmul.bf16.gmra.mxu0 %v1018
      %v1667 = vpop.f32.mrf.mxu0
      %v1668 = vadd.f32 0.0, %v1667
      %v1669 = vpop.f32.mrf.mxu0
      %v1670 = vadd.f32 0.0, %v1669
      %1671 = vmatmul.bf16.gmra.mxu0 %v1019
      %v1672 = vpop.f32.mrf.mxu0
      %v1673 = vadd.f32 0.0, %v1672
      %v1674 = vpop.f32.mrf.mxu0
      %v1675 = vadd.f32 0.0, %v1674
      %1676 = vmatmul.bf16.gmra.mxu0 %v1020
      %v1677 = vpop.f32.mrf.mxu0
      %v1678 = vadd.f32 0.0, %v1677
      %v1679 = vpop.f32.mrf.mxu0
      %v1680 = vadd.f32 0.0, %v1679
      %1681 = vmatmul.bf16.gmra.mxu0 %v1021
      %v1682 = vpop.f32.mrf.mxu0
      %v1683 = vadd.f32 0.0, %v1682
      %v1684 = vpop.f32.mrf.mxu0
      %v1685 = vadd.f32 0.0, %v1684
      %1686 = vmatmul.bf16.gmra.mxu0 %v1022
      %v1687 = vpop.f32.mrf.mxu0
      %v1688 = vadd.f32 0.0, %v1687
      %v1689 = vpop.f32.mrf.mxu0
      %v1690 = vadd.f32 0.0, %v1689
      %1691 = vmatmul.bf16.gmra.mxu0 %v1023
      %v1692 = vpop.f32.mrf.mxu0
      %v1693 = vadd.f32 0.0, %v1692
      %v1694 = vpop.f32.mrf.mxu0
      %v1695 = vadd.f32 0.0, %v1694
      %1696 = vmatmul.bf16.gmra.mxu0 %v1024
      %v1697 = vpop.f32.mrf.mxu0
      %v1698 = vadd.f32 0.0, %v1697
      %v1699 = vpop.f32.mrf.mxu0
      %v1700 = vadd.f32 0.0, %v1699
      %1701 = vmatmul.bf16.gmra.mxu0 %v1025
      %v1702 = vpop.f32.mrf.mxu0
      %v1703 = vadd.f32 0.0, %v1702
      %v1704 = vpop.f32.mrf.mxu0
      %v1705 = vadd.f32 0.0, %v1704
      %1706 = vmatmul.bf16.gmra.mxu0 %v1026
      %v1707 = vpop.f32.mrf.mxu0
      %v1708 = vadd.f32 0.0, %v1707
      %v1709 = vpop.f32.mrf.mxu0
      %v1710 = vadd.f32 0.0, %v1709
      %1711 = vmatmul.bf16.gmra.mxu0 %v1027
      %v1712 = vpop.f32.mrf.mxu0
      %v1713 = vadd.f32 0.0, %v1712
      %v1714 = vpop.f32.mrf.mxu0
      %v1715 = vadd.f32 0.0, %v1714
      %1716 = vmatmul.bf16.gmra.mxu0 %v1583
      %v1717 = vpop.f32.mrf.mxu0
      %v1718 = vadd.f32 0.0, %v1717
      %v1719 = vpop.f32.mrf.mxu0
      %v1720 = vadd.f32 0.0, %v1719
      %1721 = vdwg.mxu0
      %v1722 = vadd.f32 %v1530, %v1643
      %v1723 = vadd.f32 %v1531, %v1645
      %v1724 = vadd.f32 %v1532, %v1648
      %v1725 = vadd.f32 %v1533, %v1650
      %v1726 = vadd.f32 %v1534, %v1653
      %v1727 = vadd.f32 %v1535, %v1655
      %v1728 = vadd.f32 %v1536, %v1658
      %v1729 = vadd.f32 %v1537, %v1660
      %v1730 = vadd.f32 %v1538, %v1663
      %v1731 = vadd.f32 %v1539, %v1665
      %v1732 = vadd.f32 %v1540, %v1668
      %v1733 = vadd.f32 %v1541, %v1670
      %v1734 = vadd.f32 %v1542, %v1673
      %v1735 = vadd.f32 %v1543, %v1675
      %v1736 = vadd.f32 %v1544, %v1678
      %v1737 = vadd.f32 %v1545, %v1680
      %v1738 = vadd.f32 %v1546, %v1683
      %v1739 = vadd.f32 %v1547, %v1685
      %v1740 = vadd.f32 %v1548, %v1688
      %v1741 = vadd.f32 %v1549, %v1690
      %v1742 = vadd.f32 %v1550, %v1693
      %v1743 = vadd.f32 %v1551, %v1695
      %v1744 = vadd.f32 %v1552, %v1698
      %v1745 = vadd.f32 %v1553, %v1700
      %v1746 = vadd.f32 %v1554, %v1703
      %v1747 = vadd.f32 %v1555, %v1705
      %v1748 = vadd.f32 %v1556, %v1708
      %v1749 = vadd.f32 %v1557, %v1710
      %v1750 = vadd.f32 %v1558, %v1713
      %v1751 = vadd.f32 %v1559, %v1715
      %v1752 = vadd.f32 %v1560, %v1718
      %v1753 = vadd.f32 %v1561, %v1720
      %v1755 = vshrl.u32 %v321, 16
      %v1757 = vrot.slane %v1755, 4
      %v1758 = vshll.u32 %v321, 16
      %v1760 = vrot.slane %v1758, 5
      %v1761 = vor.u32 %v1757, %v1760
      %v1762 = vrot.slane %v1761, 4
      %v1764 = vshll.u32 %v322, 16
      %v1766 = vrot.slane %v1764, 5
      %v1767 = vsel %vm345, %v1762, %v1766
      %v1768 = vshrl.u32 %v322, 16
      %v1770 = vrot.slane %v1768, 4
      %v1771 = vor.u32 %v1770, %v1766
      %v1772 = vrot.slane %v1771, 4
      %v1774 = vshll.u32 %v323, 16
      %v1776 = vrot.slane %v1774, 5
      %v1777 = vsel %vm345, %v1772, %v1776
      %s1778 = scalar_lea.vmem %s1, 256
      %v1779 = vld [vmem:[%s1778] sm:$0xf]
      %v1780 = vld [vmem:[%s1778 + $0x4] sm:$0xf]
      %v1781 = vld [vmem:[%s1778 + $0x8] sm:$0xf]
      %v1782 = vld [vmem:[%s1778 + $0xc] sm:$0xf]
      %v1783 = vld [vmem:[%s1778 + $0x10] sm:$0xf]
      %v1784 = vld [vmem:[%s1778 + $0x14] sm:$0xf]
      %v1785 = vld [vmem:[%s1778 + $0x18] sm:$0xf]
      %v1786 = vld [vmem:[%s1778 + $0x1c] sm:$0xf]
      %v1787 = vld [vmem:[%s1778 + $0x20] sm:$0xf]
      %v1788 = vld [vmem:[%s1778 + $0x24] sm:$0xf]
      %v1789 = vld [vmem:[%s1778 + $0x28] sm:$0xf]
      %v1790 = vld [vmem:[%s1778 + $0x2c] sm:$0xf]
      %v1791 = vld [vmem:[%s1778 + $0x30] sm:$0xf]
      %v1792 = vld [vmem:[%s1778 + $0x34] sm:$0xf]
      %v1793 = vld [vmem:[%s1778 + $0x38] sm:$0xf]
      %v1794 = vld [vmem:[%s1778 + $0x3c] sm:$0xf]
      %v1795 = vunpack.c.l.b16 %v1767
      %v1796 = vunpack.c.l.b16 %v1777
      %v1797 = vpack.c.b16 %v1796, %v1795
      %v1815 = vunpack.c.l.b16 %v1779
      %v1816 = vunpack.c.l.b16 %v1780
      %v1817 = vunpack.c.l.b16 %v1781
      %v1818 = vunpack.c.l.b16 %v1782
      %v1819 = vunpack.c.l.b16 %v1783
      %v1820 = vunpack.c.l.b16 %v1784
      %v1821 = vunpack.c.l.b16 %v1785
      %v1822 = vunpack.c.l.b16 %v1786
      %v1823 = vunpack.c.l.b16 %v1787
      %v1824 = vunpack.c.l.b16 %v1788
      %v1825 = vunpack.c.l.b16 %v1789
      %v1826 = vunpack.c.l.b16 %v1790
      %v1827 = vunpack.c.l.b16 %v1791
      %v1828 = vunpack.c.l.b16 %v1792
      %v1829 = vunpack.c.l.b16 %v1793
      %v1830 = vunpack.c.l.b16 %v1794
      %v1831 = vpack.c.b16 %v1816, %v1815
      %v1832 = vpack.c.b16 %v1818, %v1817
      %v1833 = vpack.c.b16 %v1820, %v1819
      %v1834 = vpack.c.b16 %v1822, %v1821
      %v1835 = vpack.c.b16 %v1824, %v1823
      %v1836 = vpack.c.b16 %v1826, %v1825
      %v1837 = vpack.c.b16 %v1828, %v1827
      %v1838 = vpack.c.b16 %v1830, %v1829
      %1847 = vmatpush.bf16.msra.mxu0 %v1838
      %1848 = vmatpush.bf16.msra.mxu0 %v1837
      %1849 = vmatpush.bf16.msra.mxu0 %v1836
      %1850 = vmatpush.bf16.msra.mxu0 %v1835
      %1851 = vmatpush.bf16.msra.mxu0 %v1834
      %1852 = vmatpush.bf16.msra.mxu0 %v1833
      %1853 = vmatpush.bf16.msra.mxu0 %v1832
      %1854 = vmatpush.bf16.msra.mxu0 %v1831
      %1855 = vmatmul.bf16.gmra.mxu0 %v780
      %v1856 = vpop.f32.mrf.mxu0
      %v1857 = vadd.f32 0.0, %v1856
      %v1858 = vpop.f32.mrf.mxu0
      %v1859 = vadd.f32 0.0, %v1858
      %1860 = vmatmul.bf16.gmra.mxu0 %v781
      %v1861 = vpop.f32.mrf.mxu0
      %v1862 = vadd.f32 0.0, %v1861
      %v1863 = vpop.f32.mrf.mxu0
      %v1864 = vadd.f32 0.0, %v1863
      %1865 = vmatmul.bf16.gmra.mxu0 %v782
      %v1866 = vpop.f32.mrf.mxu0
      %v1867 = vadd.f32 0.0, %v1866
      %v1868 = vpop.f32.mrf.mxu0
      %v1869 = vadd.f32 0.0, %v1868
      %1870 = vmatmul.bf16.gmra.mxu0 %v783
      %v1871 = vpop.f32.mrf.mxu0
      %v1872 = vadd.f32 0.0, %v1871
      %v1873 = vpop.f32.mrf.mxu0
      %v1874 = vadd.f32 0.0, %v1873
      %1875 = vmatmul.bf16.gmra.mxu0 %v784
      %v1876 = vpop.f32.mrf.mxu0
      %v1877 = vadd.f32 0.0, %v1876
      %v1878 = vpop.f32.mrf.mxu0
      %v1879 = vadd.f32 0.0, %v1878
      %1880 = vmatmul.bf16.gmra.mxu0 %v785
      %v1881 = vpop.f32.mrf.mxu0
      %v1882 = vadd.f32 0.0, %v1881
      %v1883 = vpop.f32.mrf.mxu0
      %v1884 = vadd.f32 0.0, %v1883
      %1885 = vmatmul.bf16.gmra.mxu0 %v786
      %v1886 = vpop.f32.mrf.mxu0
      %v1887 = vadd.f32 0.0, %v1886
      %v1888 = vpop.f32.mrf.mxu0
      %v1889 = vadd.f32 0.0, %v1888
      %1890 = vmatmul.bf16.gmra.mxu0 %v787
      %v1891 = vpop.f32.mrf.mxu0
      %v1892 = vadd.f32 0.0, %v1891
      %v1893 = vpop.f32.mrf.mxu0
      %v1894 = vadd.f32 0.0, %v1893
      %1895 = vmatmul.bf16.gmra.mxu0 %v788
      %v1896 = vpop.f32.mrf.mxu0
      %v1897 = vadd.f32 0.0, %v1896
      %v1898 = vpop.f32.mrf.mxu0
      %v1899 = vadd.f32 0.0, %v1898
      %1900 = vmatmul.bf16.gmra.mxu0 %v789
      %v1901 = vpop.f32.mrf.mxu0
      %v1902 = vadd.f32 0.0, %v1901
      %v1903 = vpop.f32.mrf.mxu0
      %v1904 = vadd.f32 0.0, %v1903
      %1905 = vmatmul.bf16.gmra.mxu0 %v790
      %v1906 = vpop.f32.mrf.mxu0
      %v1907 = vadd.f32 0.0, %v1906
      %v1908 = vpop.f32.mrf.mxu0
      %v1909 = vadd.f32 0.0, %v1908
      %1910 = vmatmul.bf16.gmra.mxu0 %v791
      %v1911 = vpop.f32.mrf.mxu0
      %v1912 = vadd.f32 0.0, %v1911
      %v1913 = vpop.f32.mrf.mxu0
      %v1914 = vadd.f32 0.0, %v1913
      %1915 = vmatmul.bf16.gmra.mxu0 %v792
      %v1916 = vpop.f32.mrf.mxu0
      %v1917 = vadd.f32 0.0, %v1916
      %v1918 = vpop.f32.mrf.mxu0
      %v1919 = vadd.f32 0.0, %v1918
      %1920 = vmatmul.bf16.gmra.mxu0 %v793
      %v1921 = vpop.f32.mrf.mxu0
      %v1922 = vadd.f32 0.0, %v1921
      %v1923 = vpop.f32.mrf.mxu0
      %v1924 = vadd.f32 0.0, %v1923
      %1925 = vmatmul.bf16.gmra.mxu0 %v794
      %v1926 = vpop.f32.mrf.mxu0
      %v1927 = vadd.f32 0.0, %v1926
      %v1928 = vpop.f32.mrf.mxu0
      %v1929 = vadd.f32 0.0, %v1928
      %1930 = vmatmul.bf16.gmra.mxu0 %v1797
      %v1931 = vpop.f32.mrf.mxu0
      %v1932 = vadd.f32 0.0, %v1931
      %v1933 = vpop.f32.mrf.mxu0
      %v1934 = vadd.f32 0.0, %v1933
      %1935 = vdwg.mxu0
      %v1936 = vadd.f32 %v1722, %v1857
      %v1937 = vadd.f32 %v1723, %v1859
      %v1938 = vadd.f32 %v1724, %v1862
      %v1939 = vadd.f32 %v1725, %v1864
      %v1940 = vadd.f32 %v1726, %v1867
      %v1941 = vadd.f32 %v1727, %v1869
      %v1942 = vadd.f32 %v1728, %v1872
      %v1943 = vadd.f32 %v1729, %v1874
      %v1944 = vadd.f32 %v1730, %v1877
      %v1945 = vadd.f32 %v1731, %v1879
      %v1946 = vadd.f32 %v1732, %v1882
      %v1947 = vadd.f32 %v1733, %v1884
      %v1948 = vadd.f32 %v1734, %v1887
      %v1949 = vadd.f32 %v1735, %v1889
      %v1950 = vadd.f32 %v1736, %v1892
      %v1951 = vadd.f32 %v1737, %v1894
      %v1952 = vadd.f32 %v1738, %v1897
      %v1953 = vadd.f32 %v1739, %v1899
      %v1954 = vadd.f32 %v1740, %v1902
      %v1955 = vadd.f32 %v1741, %v1904
      %v1956 = vadd.f32 %v1742, %v1907
      %v1957 = vadd.f32 %v1743, %v1909
      %v1958 = vadd.f32 %v1744, %v1912
      %v1959 = vadd.f32 %v1745, %v1914
      %v1960 = vadd.f32 %v1746, %v1917
      %v1961 = vadd.f32 %v1747, %v1919
      %v1962 = vadd.f32 %v1748, %v1922
      %v1963 = vadd.f32 %v1749, %v1924
      %v1964 = vadd.f32 %v1750, %v1927
      %v1965 = vadd.f32 %v1751, %v1929
      %v1966 = vadd.f32 %v1752, %v1932
      %v1967 = vadd.f32 %v1753, %v1934
      %v1969 = vrot.slane %v321, 5
      %v1970 = vrot.slane %v1969, 4
      %v1971 = vrot.slane %v322, 5
      %v1972 = vsel %vm1199, %v1970, %v1971
      %v1973 = vrot.slane %v1971, 4
      %v1974 = vrot.slane %v323, 5
      %v1975 = vsel %vm1199, %v1973, %v1974
      %s1976 = scalar_lea.vmem %s1, 320
      %v1977 = vld [vmem:[%s1976] sm:$0xf]
      %v1978 = vld [vmem:[%s1976 + $0x4] sm:$0xf]
      %v1979 = vld [vmem:[%s1976 + $0x8] sm:$0xf]
      %v1980 = vld [vmem:[%s1976 + $0xc] sm:$0xf]
      %v1981 = vld [vmem:[%s1976 + $0x10] sm:$0xf]
      %v1982 = vld [vmem:[%s1976 + $0x14] sm:$0xf]
      %v1983 = vld [vmem:[%s1976 + $0x18] sm:$0xf]
      %v1984 = vld [vmem:[%s1976 + $0x1c] sm:$0xf]
      %v1985 = vld [vmem:[%s1976 + $0x20] sm:$0xf]
      %v1986 = vld [vmem:[%s1976 + $0x24] sm:$0xf]
      %v1987 = vld [vmem:[%s1976 + $0x28] sm:$0xf]
      %v1988 = vld [vmem:[%s1976 + $0x2c] sm:$0xf]
      %v1989 = vld [vmem:[%s1976 + $0x30] sm:$0xf]
      %v1990 = vld [vmem:[%s1976 + $0x34] sm:$0xf]
      %v1991 = vld [vmem:[%s1976 + $0x38] sm:$0xf]
      %v1992 = vld [vmem:[%s1976 + $0x3c] sm:$0xf]
      %v1993 = vunpack.c.l.b16 %v1972
      %v1994 = vunpack.c.l.b16 %v1975
      %v1995 = vpack.c.b16 %v1994, %v1993
      %v2013 = vunpack.c.l.b16 %v1977
      %v2014 = vunpack.c.l.b16 %v1978
      %v2015 = vunpack.c.l.b16 %v1979
      %v2016 = vunpack.c.l.b16 %v1980
      %v2017 = vunpack.c.l.b16 %v1981
      %v2018 = vunpack.c.l.b16 %v1982
      %v2019 = vunpack.c.l.b16 %v1983
      %v2020 = vunpack.c.l.b16 %v1984
      %v2021 = vunpack.c.l.b16 %v1985
      %v2022 = vunpack.c.l.b16 %v1986
      %v2023 = vunpack.c.l.b16 %v1987
      %v2024 = vunpack.c.l.b16 %v1988
      %v2025 = vunpack.c.l.b16 %v1989
      %v2026 = vunpack.c.l.b16 %v1990
      %v2027 = vunpack.c.l.b16 %v1991
      %v2028 = vunpack.c.l.b16 %v1992
      %v2029 = vpack.c.b16 %v2014, %v2013
      %v2030 = vpack.c.b16 %v2016, %v2015
      %v2031 = vpack.c.b16 %v2018, %v2017
      %v2032 = vpack.c.b16 %v2020, %v2019
      %v2033 = vpack.c.b16 %v2022, %v2021
      %v2034 = vpack.c.b16 %v2024, %v2023
      %v2035 = vpack.c.b16 %v2026, %v2025
      %v2036 = vpack.c.b16 %v2028, %v2027
      %2045 = vmatpush.bf16.msra.mxu0 %v2036
      %2046 = vmatpush.bf16.msra.mxu0 %v2035
      %2047 = vmatpush.bf16.msra.mxu0 %v2034
      %2048 = vmatpush.bf16.msra.mxu0 %v2033
      %2049 = vmatpush.bf16.msra.mxu0 %v2032
      %2050 = vmatpush.bf16.msra.mxu0 %v2031
      %2051 = vmatpush.bf16.msra.mxu0 %v2030
      %2052 = vmatpush.bf16.msra.mxu0 %v2029
      %2053 = vmatmul.bf16.gmra.mxu0 %v1362
      %v2054 = vpop.f32.mrf.mxu0
      %v2055 = vadd.f32 0.0, %v2054
      %v2056 = vpop.f32.mrf.mxu0
      %v2057 = vadd.f32 0.0, %v2056
      %2058 = vmatmul.bf16.gmra.mxu0 %v1363
      %v2059 = vpop.f32.mrf.mxu0
      %v2060 = vadd.f32 0.0, %v2059
      %v2061 = vpop.f32.mrf.mxu0
      %v2062 = vadd.f32 0.0, %v2061
      %2063 = vmatmul.bf16.gmra.mxu0 %v1364
      %v2064 = vpop.f32.mrf.mxu0
      %v2065 = vadd.f32 0.0, %v2064
      %v2066 = vpop.f32.mrf.mxu0
      %v2067 = vadd.f32 0.0, %v2066
      %2068 = vmatmul.bf16.gmra.mxu0 %v1365
      %v2069 = vpop.f32.mrf.mxu0
      %v2070 = vadd.f32 0.0, %v2069
      %v2071 = vpop.f32.mrf.mxu0
      %v2072 = vadd.f32 0.0, %v2071
      %2073 = vmatmul.bf16.gmra.mxu0 %v1366
      %v2074 = vpop.f32.mrf.mxu0
      %v2075 = vadd.f32 0.0, %v2074
      %v2076 = vpop.f32.mrf.mxu0
      %v2077 = vadd.f32 0.0, %v2076
      %2078 = vmatmul.bf16.gmra.mxu0 %v1367
      %v2079 = vpop.f32.mrf.mxu0
      %v2080 = vadd.f32 0.0, %v2079
      %v2081 = vpop.f32.mrf.mxu0
      %v2082 = vadd.f32 0.0, %v2081
      %2083 = vmatmul.bf16.gmra.mxu0 %v1368
      %v2084 = vpop.f32.mrf.mxu0
      %v2085 = vadd.f32 0.0, %v2084
      %v2086 = vpop.f32.mrf.mxu0
      %v2087 = vadd.f32 0.0, %v2086
      %2088 = vmatmul.bf16.gmra.mxu0 %v1369
      %v2089 = vpop.f32.mrf.mxu0
      %v2090 = vadd.f32 0.0, %v2089
      %v2091 = vpop.f32.mrf.mxu0
      %v2092 = vadd.f32 0.0, %v2091
      %2093 = vmatmul.bf16.gmra.mxu0 %v1370
      %v2094 = vpop.f32.mrf.mxu0
      %v2095 = vadd.f32 0.0, %v2094
      %v2096 = vpop.f32.mrf.mxu0
      %v2097 = vadd.f32 0.0, %v2096
      %2098 = vmatmul.bf16.gmra.mxu0 %v1371
      %v2099 = vpop.f32.mrf.mxu0
      %v2100 = vadd.f32 0.0, %v2099
      %v2101 = vpop.f32.mrf.mxu0
      %v2102 = vadd.f32 0.0, %v2101
      %2103 = vmatmul.bf16.gmra.mxu0 %v1372
      %v2104 = vpop.f32.mrf.mxu0
      %v2105 = vadd.f32 0.0, %v2104
      %v2106 = vpop.f32.mrf.mxu0
      %v2107 = vadd.f32 0.0, %v2106
      %2108 = vmatmul.bf16.gmra.mxu0 %v1373
      %v2109 = vpop.f32.mrf.mxu0
      %v2110 = vadd.f32 0.0, %v2109
      %v2111 = vpop.f32.mrf.mxu0
      %v2112 = vadd.f32 0.0, %v2111
      %2113 = vmatmul.bf16.gmra.mxu0 %v1374
      %v2114 = vpop.f32.mrf.mxu0
      %v2115 = vadd.f32 0.0, %v2114
      %v2116 = vpop.f32.mrf.mxu0
      %v2117 = vadd.f32 0.0, %v2116
      %2118 = vmatmul.bf16.gmra.mxu0 %v1375
      %v2119 = vpop.f32.mrf.mxu0
      %v2120 = vadd.f32 0.0, %v2119
      %v2121 = vpop.f32.mrf.mxu0
      %v2122 = vadd.f32 0.0, %v2121
      %2123 = vmatmul.bf16.gmra.mxu0 %v1376
      %v2124 = vpop.f32.mrf.mxu0
      %v2125 = vadd.f32 0.0, %v2124
      %v2126 = vpop.f32.mrf.mxu0
      %v2127 = vadd.f32 0.0, %v2126
      %2128 = vmatmul.bf16.gmra.mxu0 %v1995
      %v2129 = vpop.f32.mrf.mxu0
      %v2130 = vadd.f32 0.0, %v2129
      %v2131 = vpop.f32.mrf.mxu0
      %v2132 = vadd.f32 0.0, %v2131
      %2133 = vdwg.mxu0
      %v2134 = vadd.f32 %v1936, %v2055
      %v2135 = vadd.f32 %v1937, %v2057
      %v2136 = vadd.f32 %v1938, %v2060
      %v2137 = vadd.f32 %v1939, %v2062
      %v2138 = vadd.f32 %v1940, %v2065
      %v2139 = vadd.f32 %v1941, %v2067
      %v2140 = vadd.f32 %v1942, %v2070
      %v2141 = vadd.f32 %v1943, %v2072
      %v2142 = vadd.f32 %v1944, %v2075
      %v2143 = vadd.f32 %v1945, %v2077
      %v2144 = vadd.f32 %v1946, %v2080
      %v2145 = vadd.f32 %v1947, %v2082
      %v2146 = vadd.f32 %v1948, %v2085
      %v2147 = vadd.f32 %v1949, %v2087
      %v2148 = vadd.f32 %v1950, %v2090
      %v2149 = vadd.f32 %v1951, %v2092
      %v2150 = vadd.f32 %v1952, %v2095
      %v2151 = vadd.f32 %v1953, %v2097
      %v2152 = vadd.f32 %v1954, %v2100
      %v2153 = vadd.f32 %v1955, %v2102
      %v2154 = vadd.f32 %v1956, %v2105
      %v2155 = vadd.f32 %v1957, %v2107
      %v2156 = vadd.f32 %v1958, %v2110
      %v2157 = vadd.f32 %v1959, %v2112
      %v2158 = vadd.f32 %v1960, %v2115
      %v2159 = vadd.f32 %v1961, %v2117
      %v2160 = vadd.f32 %v1962, %v2120
      %v2161 = vadd.f32 %v1963, %v2122
      %v2162 = vadd.f32 %v1964, %v2125
      %v2163 = vadd.f32 %v1965, %v2127
      %v2164 = vadd.f32 %v1966, %v2130
      %v2165 = vadd.f32 %v1967, %v2132
      %s2166 = scalar_lea.vmem %s1, 384
      %v2167 = vld [vmem:[%s2166] sm:$0xf]
      %v2168 = vld [vmem:[%s2166 + $0x4] sm:$0xf]
      %v2169 = vld [vmem:[%s2166 + $0x8] sm:$0xf]
      %v2170 = vld [vmem:[%s2166 + $0xc] sm:$0xf]
      %v2171 = vld [vmem:[%s2166 + $0x10] sm:$0xf]
      %v2172 = vld [vmem:[%s2166 + $0x14] sm:$0xf]
      %v2173 = vld [vmem:[%s2166 + $0x18] sm:$0xf]
      %v2174 = vld [vmem:[%s2166 + $0x1c] sm:$0xf]
      %v2175 = vld [vmem:[%s2166 + $0x20] sm:$0xf]
      %v2176 = vld [vmem:[%s2166 + $0x24] sm:$0xf]
      %v2177 = vld [vmem:[%s2166 + $0x28] sm:$0xf]
      %v2178 = vld [vmem:[%s2166 + $0x2c] sm:$0xf]
      %v2179 = vld [vmem:[%s2166 + $0x30] sm:$0xf]
      %v2180 = vld [vmem:[%s2166 + $0x34] sm:$0xf]
      %v2181 = vld [vmem:[%s2166 + $0x38] sm:$0xf]
      %v2182 = vld [vmem:[%s2166 + $0x3c] sm:$0xf]
      %v2185 = vunpack.c.l.b16 %v324
      %v2186 = vunpack.c.l.b16 %v325
      %v2187 = vpack.c.b16 %v2186, %v2185
      %v2205 = vunpack.c.l.b16 %v2167
      %v2206 = vunpack.c.l.b16 %v2168
      %v2207 = vunpack.c.l.b16 %v2169
      %v2208 = vunpack.c.l.b16 %v2170
      %v2209 = vunpack.c.l.b16 %v2171
      %v2210 = vunpack.c.l.b16 %v2172
      %v2211 = vunpack.c.l.b16 %v2173
      %v2212 = vunpack.c.l.b16 %v2174
      %v2213 = vunpack.c.l.b16 %v2175
      %v2214 = vunpack.c.l.b16 %v2176
      %v2215 = vunpack.c.l.b16 %v2177
      %v2216 = vunpack.c.l.b16 %v2178
      %v2217 = vunpack.c.l.b16 %v2179
      %v2218 = vunpack.c.l.b16 %v2180
      %v2219 = vunpack.c.l.b16 %v2181
      %v2220 = vunpack.c.l.b16 %v2182
      %v2221 = vpack.c.b16 %v2206, %v2205
      %v2222 = vpack.c.b16 %v2208, %v2207
      %v2223 = vpack.c.b16 %v2210, %v2209
      %v2224 = vpack.c.b16 %v2212, %v2211
      %v2225 = vpack.c.b16 %v2214, %v2213
      %v2226 = vpack.c.b16 %v2216, %v2215
      %v2227 = vpack.c.b16 %v2218, %v2217
      %v2228 = vpack.c.b16 %v2220, %v2219
      %2237 = vmatpush.bf16.msra.mxu0 %v2228
      %2238 = vmatpush.bf16.msra.mxu0 %v2227
      %2239 = vmatpush.bf16.msra.mxu0 %v2226
      %2240 = vmatpush.bf16.msra.mxu0 %v2225
      %2241 = vmatpush.bf16.msra.mxu0 %v2224
      %2242 = vmatpush.bf16.msra.mxu0 %v2223
      %2243 = vmatpush.bf16.msra.mxu0 %v2222
      %2244 = vmatpush.bf16.msra.mxu0 %v2221
      %2245 = vmatmul.bf16.gmra.mxu0 %v1014
      %v2246 = vpop.f32.mrf.mxu0
      %v2247 = vadd.f32 0.0, %v2246
      %v2248 = vpop.f32.mrf.mxu0
      %v2249 = vadd.f32 0.0, %v2248
      %2250 = vmatmul.bf16.gmra.mxu0 %v1015
      %v2251 = vpop.f32.mrf.mxu0
      %v2252 = vadd.f32 0.0, %v2251
      %v2253 = vpop.f32.mrf.mxu0
      %v2254 = vadd.f32 0.0, %v2253
      %2255 = vmatmul.bf16.gmra.mxu0 %v1016
      %v2256 = vpop.f32.mrf.mxu0
      %v2257 = vadd.f32 0.0, %v2256
      %v2258 = vpop.f32.mrf.mxu0
      %v2259 = vadd.f32 0.0, %v2258
      %2260 = vmatmul.bf16.gmra.mxu0 %v1017
      %v2261 = vpop.f32.mrf.mxu0
      %v2262 = vadd.f32 0.0, %v2261
      %v2263 = vpop.f32.mrf.mxu0
      %v2264 = vadd.f32 0.0, %v2263
      %2265 = vmatmul.bf16.gmra.mxu0 %v1018
      %v2266 = vpop.f32.mrf.mxu0
      %v2267 = vadd.f32 0.0, %v2266
      %v2268 = vpop.f32.mrf.mxu0
      %v2269 = vadd.f32 0.0, %v2268
      %2270 = vmatmul.bf16.gmra.mxu0 %v1019
      %v2271 = vpop.f32.mrf.mxu0
      %v2272 = vadd.f32 0.0, %v2271
      %v2273 = vpop.f32.mrf.mxu0
      %v2274 = vadd.f32 0.0, %v2273
      %2275 = vmatmul.bf16.gmra.mxu0 %v1020
      %v2276 = vpop.f32.mrf.mxu0
      %v2277 = vadd.f32 0.0, %v2276
      %v2278 = vpop.f32.mrf.mxu0
      %v2279 = vadd.f32 0.0, %v2278
      %2280 = vmatmul.bf16.gmra.mxu0 %v1021
      %v2281 = vpop.f32.mrf.mxu0
      %v2282 = vadd.f32 0.0, %v2281
      %v2283 = vpop.f32.mrf.mxu0
      %v2284 = vadd.f32 0.0, %v2283
      %2285 = vmatmul.bf16.gmra.mxu0 %v1022
      %v2286 = vpop.f32.mrf.mxu0
      %v2287 = vadd.f32 0.0, %v2286
      %v2288 = vpop.f32.mrf.mxu0
      %v2289 = vadd.f32 0.0, %v2288
      %2290 = vmatmul.bf16.gmra.mxu0 %v1023
      %v2291 = vpop.f32.mrf.mxu0
      %v2292 = vadd.f32 0.0, %v2291
      %v2293 = vpop.f32.mrf.mxu0
      %v2294 = vadd.f32 0.0, %v2293
      %2295 = vmatmul.bf16.gmra.mxu0 %v1024
      %v2296 = vpop.f32.mrf.mxu0
      %v2297 = vadd.f32 0.0, %v2296
      %v2298 = vpop.f32.mrf.mxu0
      %v2299 = vadd.f32 0.0, %v2298
      %2300 = vmatmul.bf16.gmra.mxu0 %v1025
      %v2301 = vpop.f32.mrf.mxu0
      %v2302 = vadd.f32 0.0, %v2301
      %v2303 = vpop.f32.mrf.mxu0
      %v2304 = vadd.f32 0.0, %v2303
      %2305 = vmatmul.bf16.gmra.mxu0 %v1026
      %v2306 = vpop.f32.mrf.mxu0
      %v2307 = vadd.f32 0.0, %v2306
      %v2308 = vpop.f32.mrf.mxu0
      %v2309 = vadd.f32 0.0, %v2308
      %2310 = vmatmul.bf16.gmra.mxu0 %v1027
      %v2311 = vpop.f32.mrf.mxu0
      %v2312 = vadd.f32 0.0, %v2311
      %v2313 = vpop.f32.mrf.mxu0
      %v2314 = vadd.f32 0.0, %v2313
      %2315 = vmatmul.bf16.gmra.mxu0 %v1583
      %v2316 = vpop.f32.mrf.mxu0
      %v2317 = vadd.f32 0.0, %v2316
      %v2318 = vpop.f32.mrf.mxu0
      %v2319 = vadd.f32 0.0, %v2318
      %2320 = vmatmul.bf16.gmra.mxu0 %v2187
      %v2321 = vpop.f32.mrf.mxu0
      %v2322 = vadd.f32 0.0, %v2321
      %v2323 = vpop.f32.mrf.mxu0
      %v2324 = vadd.f32 0.0, %v2323
      %2325 = vdwg.mxu0
      %v2326 = vadd.f32 %v2134, %v2247
      %v2327 = vadd.f32 %v2135, %v2249
      %v2328 = vadd.f32 %v2136, %v2252
      %v2329 = vadd.f32 %v2137, %v2254
      %v2330 = vadd.f32 %v2138, %v2257
      %v2331 = vadd.f32 %v2139, %v2259
      %v2332 = vadd.f32 %v2140, %v2262
      %v2333 = vadd.f32 %v2141, %v2264
      %v2334 = vadd.f32 %v2142, %v2267
      %v2335 = vadd.f32 %v2143, %v2269
      %v2336 = vadd.f32 %v2144, %v2272
      %v2337 = vadd.f32 %v2145, %v2274
      %v2338 = vadd.f32 %v2146, %v2277
      %v2339 = vadd.f32 %v2147, %v2279
      %v2340 = vadd.f32 %v2148, %v2282
      %v2341 = vadd.f32 %v2149, %v2284
      %v2342 = vadd.f32 %v2150, %v2287
      %v2343 = vadd.f32 %v2151, %v2289
      %v2344 = vadd.f32 %v2152, %v2292
      %v2345 = vadd.f32 %v2153, %v2294
      %v2346 = vadd.f32 %v2154, %v2297
      %v2347 = vadd.f32 %v2155, %v2299
      %v2348 = vadd.f32 %v2156, %v2302
      %v2349 = vadd.f32 %v2157, %v2304
      %v2350 = vadd.f32 %v2158, %v2307
      %v2351 = vadd.f32 %v2159, %v2309
      %v2352 = vadd.f32 %v2160, %v2312
      %v2353 = vadd.f32 %v2161, %v2314
      %v2354 = vadd.f32 %v2162, %v2317
      %v2355 = vadd.f32 %v2163, %v2319
      %v2356 = vadd.f32 %v2164, %v2322
      %v2357 = vadd.f32 %v2165, %v2324
      %v2359 = vshrl.u32 %v324, 16
      %v2361 = vrot.slane %v2359, 4
      %v2362 = vshll.u32 %v324, 16
      %v2364 = vrot.slane %v2362, 5
      %v2365 = vor.u32 %v2361, %v2364
      %v2366 = vrot.slane %v2365, 4
      %v2368 = vshll.u32 %v325, 16
      %v2370 = vrot.slane %v2368, 5
      %v2371 = vsel %vm345, %v2366, %v2370
      %v2372 = vshrl.u32 %v325, 16
      %v2374 = vrot.slane %v2372, 4
      %v2375 = vor.u32 %v2374, %v2370
      %v2376 = vrot.slane %v2375, 4
      %v2378 = vshll.u32 %v326, 16
      %v2380 = vrot.slane %v2378, 5
      %v2381 = vsel %vm345, %v2376, %v2380
      %s2382 = scalar_lea.vmem %s1, 448
      %v2383 = vld [vmem:[%s2382] sm:$0xf]
      %v2384 = vld [vmem:[%s2382 + $0x4] sm:$0xf]
      %v2385 = vld [vmem:[%s2382 + $0x8] sm:$0xf]
      %v2386 = vld [vmem:[%s2382 + $0xc] sm:$0xf]
      %v2387 = vld [vmem:[%s2382 + $0x10] sm:$0xf]
      %v2388 = vld [vmem:[%s2382 + $0x14] sm:$0xf]
      %v2389 = vld [vmem:[%s2382 + $0x18] sm:$0xf]
      %v2390 = vld [vmem:[%s2382 + $0x1c] sm:$0xf]
      %v2391 = vld [vmem:[%s2382 + $0x20] sm:$0xf]
      %v2392 = vld [vmem:[%s2382 + $0x24] sm:$0xf]
      %v2393 = vld [vmem:[%s2382 + $0x28] sm:$0xf]
      %v2394 = vld [vmem:[%s2382 + $0x2c] sm:$0xf]
      %v2395 = vld [vmem:[%s2382 + $0x30] sm:$0xf]
      %v2396 = vld [vmem:[%s2382 + $0x34] sm:$0xf]
      %v2397 = vld [vmem:[%s2382 + $0x38] sm:$0xf]
      %v2398 = vld [vmem:[%s2382 + $0x3c] sm:$0xf]
      %v2399 = vunpack.c.l.b16 %v2371
      %v2400 = vunpack.c.l.b16 %v2381
      %v2401 = vpack.c.b16 %v2400, %v2399
      %v2419 = vunpack.c.l.b16 %v2383
      %v2420 = vunpack.c.l.b16 %v2384
      %v2421 = vunpack.c.l.b16 %v2385
      %v2422 = vunpack.c.l.b16 %v2386
      %v2423 = vunpack.c.l.b16 %v2387
      %v2424 = vunpack.c.l.b16 %v2388
      %v2425 = vunpack.c.l.b16 %v2389
      %v2426 = vunpack.c.l.b16 %v2390
      %v2427 = vunpack.c.l.b16 %v2391
      %v2428 = vunpack.c.l.b16 %v2392
      %v2429 = vunpack.c.l.b16 %v2393
      %v2430 = vunpack.c.l.b16 %v2394
      %v2431 = vunpack.c.l.b16 %v2395
      %v2432 = vunpack.c.l.b16 %v2396
      %v2433 = vunpack.c.l.b16 %v2397
      %v2434 = vunpack.c.l.b16 %v2398
      %v2435 = vpack.c.b16 %v2420, %v2419
      %v2436 = vpack.c.b16 %v2422, %v2421
      %v2437 = vpack.c.b16 %v2424, %v2423
      %v2438 = vpack.c.b16 %v2426, %v2425
      %v2439 = vpack.c.b16 %v2428, %v2427
      %v2440 = vpack.c.b16 %v2430, %v2429
      %v2441 = vpack.c.b16 %v2432, %v2431
      %v2442 = vpack.c.b16 %v2434, %v2433
      %2451 = vmatpush.bf16.msra.mxu0 %v2442
      %2452 = vmatpush.bf16.msra.mxu0 %v2441
      %2453 = vmatpush.bf16.msra.mxu0 %v2440
      %2454 = vmatpush.bf16.msra.mxu0 %v2439
      %2455 = vmatpush.bf16.msra.mxu0 %v2438
      %2456 = vmatpush.bf16.msra.mxu0 %v2437
      %2457 = vmatpush.bf16.msra.mxu0 %v2436
      %2458 = vmatpush.bf16.msra.mxu0 %v2435
      %2459 = vmatmul.bf16.gmra.mxu0 %v781
      %v2460 = vpop.f32.mrf.mxu0
      %v2461 = vadd.f32 0.0, %v2460
      %v2462 = vpop.f32.mrf.mxu0
      %v2463 = vadd.f32 0.0, %v2462
      %2464 = vmatmul.bf16.gmra.mxu0 %v782
      %v2465 = vpop.f32.mrf.mxu0
      %v2466 = vadd.f32 0.0, %v2465
      %v2467 = vpop.f32.mrf.mxu0
      %v2468 = vadd.f32 0.0, %v2467
      %2469 = vmatmul.bf16.gmra.mxu0 %v783
      %v2470 = vpop.f32.mrf.mxu0
      %v2471 = vadd.f32 0.0, %v2470
      %v2472 = vpop.f32.mrf.mxu0
      %v2473 = vadd.f32 0.0, %v2472
      %2474 = vmatmul.bf16.gmra.mxu0 %v784
      %v2475 = vpop.f32.mrf.mxu0
      %v2476 = vadd.f32 0.0, %v2475
      %v2477 = vpop.f32.mrf.mxu0
      %v2478 = vadd.f32 0.0, %v2477
      %2479 = vmatmul.bf16.gmra.mxu0 %v785
      %v2480 = vpop.f32.mrf.mxu0
      %v2481 = vadd.f32 0.0, %v2480
      %v2482 = vpop.f32.mrf.mxu0
      %v2483 = vadd.f32 0.0, %v2482
      %2484 = vmatmul.bf16.gmra.mxu0 %v786
      %v2485 = vpop.f32.mrf.mxu0
      %v2486 = vadd.f32 0.0, %v2485
      %v2487 = vpop.f32.mrf.mxu0
      %v2488 = vadd.f32 0.0, %v2487
      %2489 = vmatmul.bf16.gmra.mxu0 %v787
      %v2490 = vpop.f32.mrf.mxu0
      %v2491 = vadd.f32 0.0, %v2490
      %v2492 = vpop.f32.mrf.mxu0
      %v2493 = vadd.f32 0.0, %v2492
      %2494 = vmatmul.bf16.gmra.mxu0 %v788
      %v2495 = vpop.f32.mrf.mxu0
      %v2496 = vadd.f32 0.0, %v2495
      %v2497 = vpop.f32.mrf.mxu0
      %v2498 = vadd.f32 0.0, %v2497
      %2499 = vmatmul.bf16.gmra.mxu0 %v789
      %v2500 = vpop.f32.mrf.mxu0
      %v2501 = vadd.f32 0.0, %v2500
      %v2502 = vpop.f32.mrf.mxu0
      %v2503 = vadd.f32 0.0, %v2502
      %2504 = vmatmul.bf16.gmra.mxu0 %v790
      %v2505 = vpop.f32.mrf.mxu0
      %v2506 = vadd.f32 0.0, %v2505
      %v2507 = vpop.f32.mrf.mxu0
      %v2508 = vadd.f32 0.0, %v2507
      %2509 = vmatmul.bf16.gmra.mxu0 %v791
      %v2510 = vpop.f32.mrf.mxu0
      %v2511 = vadd.f32 0.0, %v2510
      %v2512 = vpop.f32.mrf.mxu0
      %v2513 = vadd.f32 0.0, %v2512
      %2514 = vmatmul.bf16.gmra.mxu0 %v792
      %v2515 = vpop.f32.mrf.mxu0
      %v2516 = vadd.f32 0.0, %v2515
      %v2517 = vpop.f32.mrf.mxu0
      %v2518 = vadd.f32 0.0, %v2517
      %2519 = vmatmul.bf16.gmra.mxu0 %v793
      %v2520 = vpop.f32.mrf.mxu0
      %v2521 = vadd.f32 0.0, %v2520
      %v2522 = vpop.f32.mrf.mxu0
      %v2523 = vadd.f32 0.0, %v2522
      %2524 = vmatmul.bf16.gmra.mxu0 %v794
      %v2525 = vpop.f32.mrf.mxu0
      %v2526 = vadd.f32 0.0, %v2525
      %v2527 = vpop.f32.mrf.mxu0
      %v2528 = vadd.f32 0.0, %v2527
      %2529 = vmatmul.bf16.gmra.mxu0 %v1797
      %v2530 = vpop.f32.mrf.mxu0
      %v2531 = vadd.f32 0.0, %v2530
      %v2532 = vpop.f32.mrf.mxu0
      %v2533 = vadd.f32 0.0, %v2532
      %2534 = vmatmul.bf16.gmra.mxu0 %v2401
      %v2535 = vpop.f32.mrf.mxu0
      %v2536 = vadd.f32 0.0, %v2535
      %v2537 = vpop.f32.mrf.mxu0
      %v2538 = vadd.f32 0.0, %v2537
      %2539 = vdwg.mxu0
      %v2540 = vadd.f32 %v2326, %v2461
      %v2541 = vadd.f32 %v2327, %v2463
      %v2542 = vadd.f32 %v2328, %v2466
      %v2543 = vadd.f32 %v2329, %v2468
      %v2544 = vadd.f32 %v2330, %v2471
      %v2545 = vadd.f32 %v2331, %v2473
      %v2546 = vadd.f32 %v2332, %v2476
      %v2547 = vadd.f32 %v2333, %v2478
      %v2548 = vadd.f32 %v2334, %v2481
      %v2549 = vadd.f32 %v2335, %v2483
      %v2550 = vadd.f32 %v2336, %v2486
      %v2551 = vadd.f32 %v2337, %v2488
      %v2552 = vadd.f32 %v2338, %v2491
      %v2553 = vadd.f32 %v2339, %v2493
      %v2554 = vadd.f32 %v2340, %v2496
      %v2555 = vadd.f32 %v2341, %v2498
      %v2556 = vadd.f32 %v2342, %v2501
      %v2557 = vadd.f32 %v2343, %v2503
      %v2558 = vadd.f32 %v2344, %v2506
      %v2559 = vadd.f32 %v2345, %v2508
      %v2560 = vadd.f32 %v2346, %v2511
      %v2561 = vadd.f32 %v2347, %v2513
      %v2562 = vadd.f32 %v2348, %v2516
      %v2563 = vadd.f32 %v2349, %v2518
      %v2564 = vadd.f32 %v2350, %v2521
      %v2565 = vadd.f32 %v2351, %v2523
      %v2566 = vadd.f32 %v2352, %v2526
      %v2567 = vadd.f32 %v2353, %v2528
      %v2568 = vadd.f32 %v2354, %v2531
      %v2569 = vadd.f32 %v2355, %v2533
      %v2570 = vadd.f32 %v2356, %v2536
      %v2571 = vadd.f32 %v2357, %v2538
      %v2573 = vrot.slane %v324, 5
      %v2574 = vrot.slane %v2573, 4
      %v2575 = vrot.slane %v325, 5
      %v2576 = vsel %vm1199, %v2574, %v2575
      %v2577 = vrot.slane %v2575, 4
      %v2578 = vrot.slane %v326, 5
      %v2579 = vsel %vm1199, %v2577, %v2578
      %s2580 = scalar_lea.vmem %s1, 512
      %v2581 = vld [vmem:[%s2580] sm:$0xf]
      %v2582 = vld [vmem:[%s2580 + $0x4] sm:$0xf]
      %v2583 = vld [vmem:[%s2580 + $0x8] sm:$0xf]
      %v2584 = vld [vmem:[%s2580 + $0xc] sm:$0xf]
      %v2585 = vld [vmem:[%s2580 + $0x10] sm:$0xf]
      %v2586 = vld [vmem:[%s2580 + $0x14] sm:$0xf]
      %v2587 = vld [vmem:[%s2580 + $0x18] sm:$0xf]
      %v2588 = vld [vmem:[%s2580 + $0x1c] sm:$0xf]
      %v2589 = vld [vmem:[%s2580 + $0x20] sm:$0xf]
      %v2590 = vld [vmem:[%s2580 + $0x24] sm:$0xf]
      %v2591 = vld [vmem:[%s2580 + $0x28] sm:$0xf]
      %v2592 = vld [vmem:[%s2580 + $0x2c] sm:$0xf]
      %v2593 = vld [vmem:[%s2580 + $0x30] sm:$0xf]
      %v2594 = vld [vmem:[%s2580 + $0x34] sm:$0xf]
      %v2595 = vld [vmem:[%s2580 + $0x38] sm:$0xf]
      %v2596 = vld [vmem:[%s2580 + $0x3c] sm:$0xf]
      %v2597 = vunpack.c.l.b16 %v2576
      %v2598 = vunpack.c.l.b16 %v2579
      %v2599 = vpack.c.b16 %v2598, %v2597
      %v2617 = vunpack.c.l.b16 %v2581
      %v2618 = vunpack.c.l.b16 %v2582
      %v2619 = vunpack.c.l.b16 %v2583
      %v2620 = vunpack.c.l.b16 %v2584
      %v2621 = vunpack.c.l.b16 %v2585
      %v2622 = vunpack.c.l.b16 %v2586
      %v2623 = vunpack.c.l.b16 %v2587
      %v2624 = vunpack.c.l.b16 %v2588
      %v2625 = vunpack.c.l.b16 %v2589
      %v2626 = vunpack.c.l.b16 %v2590
      %v2627 = vunpack.c.l.b16 %v2591
      %v2628 = vunpack.c.l.b16 %v2592
      %v2629 = vunpack.c.l.b16 %v2593
      %v2630 = vunpack.c.l.b16 %v2594
      %v2631 = vunpack.c.l.b16 %v2595
      %v2632 = vunpack.c.l.b16 %v2596
      %v2633 = vpack.c.b16 %v2618, %v2617
      %v2634 = vpack.c.b16 %v2620, %v2619
      %v2635 = vpack.c.b16 %v2622, %v2621
      %v2636 = vpack.c.b16 %v2624, %v2623
      %v2637 = vpack.c.b16 %v2626, %v2625
      %v2638 = vpack.c.b16 %v2628, %v2627
      %v2639 = vpack.c.b16 %v2630, %v2629
      %v2640 = vpack.c.b16 %v2632, %v2631
      %2649 = vmatpush.bf16.msra.mxu0 %v2640
      %2650 = vmatpush.bf16.msra.mxu0 %v2639
      %2651 = vmatpush.bf16.msra.mxu0 %v2638
      %2652 = vmatpush.bf16.msra.mxu0 %v2637
      %2653 = vmatpush.bf16.msra.mxu0 %v2636
      %2654 = vmatpush.bf16.msra.mxu0 %v2635
      %2655 = vmatpush.bf16.msra.mxu0 %v2634
      %2656 = vmatpush.bf16.msra.mxu0 %v2633
      %2657 = vmatmul.bf16.gmra.mxu0 %v1363
      %v2658 = vpop.f32.mrf.mxu0
      %v2659 = vadd.f32 0.0, %v2658
      %v2660 = vpop.f32.mrf.mxu0
      %v2661 = vadd.f32 0.0, %v2660
      %2662 = vmatmul.bf16.gmra.mxu0 %v1364
      %v2663 = vpop.f32.mrf.mxu0
      %v2664 = vadd.f32 0.0, %v2663
      %v2665 = vpop.f32.mrf.mxu0
      %v2666 = vadd.f32 0.0, %v2665
      %2667 = vmatmul.bf16.gmra.mxu0 %v1365
      %v2668 = vpop.f32.mrf.mxu0
      %v2669 = vadd.f32 0.0, %v2668
      %v2670 = vpop.f32.mrf.mxu0
      %v2671 = vadd.f32 0.0, %v2670
      %2672 = vmatmul.bf16.gmra.mxu0 %v1366
      %v2673 = vpop.f32.mrf.mxu0
      %v2674 = vadd.f32 0.0, %v2673
      %v2675 = vpop.f32.mrf.mxu0
      %v2676 = vadd.f32 0.0, %v2675
      %2677 = vmatmul.bf16.gmra.mxu0 %v1367
      %v2678 = vpop.f32.mrf.mxu0
      %v2679 = vadd.f32 0.0, %v2678
      %v2680 = vpop.f32.mrf.mxu0
      %v2681 = vadd.f32 0.0, %v2680
      %2682 = vmatmul.bf16.gmra.mxu0 %v1368
      %v2683 = vpop.f32.mrf.mxu0
      %v2684 = vadd.f32 0.0, %v2683
      %v2685 = vpop.f32.mrf.mxu0
      %v2686 = vadd.f32 0.0, %v2685
      %2687 = vmatmul.bf16.gmra.mxu0 %v1369
      %v2688 = vpop.f32.mrf.mxu0
      %v2689 = vadd.f32 0.0, %v2688
      %v2690 = vpop.f32.mrf.mxu0
      %v2691 = vadd.f32 0.0, %v2690
      %2692 = vmatmul.bf16.gmra.mxu0 %v1370
      %v2693 = vpop.f32.mrf.mxu0
      %v2694 = vadd.f32 0.0, %v2693
      %v2695 = vpop.f32.mrf.mxu0
      %v2696 = vadd.f32 0.0, %v2695
      %2697 = vmatmul.bf16.gmra.mxu0 %v1371
      %v2698 = vpop.f32.mrf.mxu0
      %v2699 = vadd.f32 0.0, %v2698
      %v2700 = vpop.f32.mrf.mxu0
      %v2701 = vadd.f32 0.0, %v2700
      %2702 = vmatmul.bf16.gmra.mxu0 %v1372
      %v2703 = vpop.f32.mrf.mxu0
      %v2704 = vadd.f32 0.0, %v2703
      %v2705 = vpop.f32.mrf.mxu0
      %v2706 = vadd.f32 0.0, %v2705
      %2707 = vmatmul.bf16.gmra.mxu0 %v1373
      %v2708 = vpop.f32.mrf.mxu0
      %v2709 = vadd.f32 0.0, %v2708
      %v2710 = vpop.f32.mrf.mxu0
      %v2711 = vadd.f32 0.0, %v2710
      %2712 = vmatmul.bf16.gmra.mxu0 %v1374
      %v2713 = vpop.f32.mrf.mxu0
      %v2714 = vadd.f32 0.0, %v2713
      %v2715 = vpop.f32.mrf.mxu0
      %v2716 = vadd.f32 0.0, %v2715
      %2717 = vmatmul.bf16.gmra.mxu0 %v1375
      %v2718 = vpop.f32.mrf.mxu0
      %v2719 = vadd.f32 0.0, %v2718
      %v2720 = vpop.f32.mrf.mxu0
      %v2721 = vadd.f32 0.0, %v2720
      %2722 = vmatmul.bf16.gmra.mxu0 %v1376
      %v2723 = vpop.f32.mrf.mxu0
      %v2724 = vadd.f32 0.0, %v2723
      %v2725 = vpop.f32.mrf.mxu0
      %v2726 = vadd.f32 0.0, %v2725
      %2727 = vmatmul.bf16.gmra.mxu0 %v1995
      %v2728 = vpop.f32.mrf.mxu0
      %v2729 = vadd.f32 0.0, %v2728
      %v2730 = vpop.f32.mrf.mxu0
      %v2731 = vadd.f32 0.0, %v2730
      %2732 = vmatmul.bf16.gmra.mxu0 %v2599
      %v2733 = vpop.f32.mrf.mxu0
      %v2734 = vadd.f32 0.0, %v2733
      %v2735 = vpop.f32.mrf.mxu0
      %v2736 = vadd.f32 0.0, %v2735
      %2737 = vdwg.mxu0
      %v2738 = vadd.f32 %v2540, %v2659
      %v2739 = vadd.f32 %v2541, %v2661
      %v2740 = vadd.f32 %v2542, %v2664
      %v2741 = vadd.f32 %v2543, %v2666
      %v2742 = vadd.f32 %v2544, %v2669
      %v2743 = vadd.f32 %v2545, %v2671
      %v2744 = vadd.f32 %v2546, %v2674
      %v2745 = vadd.f32 %v2547, %v2676
      %v2746 = vadd.f32 %v2548, %v2679
      %v2747 = vadd.f32 %v2549, %v2681
      %v2748 = vadd.f32 %v2550, %v2684
      %v2749 = vadd.f32 %v2551, %v2686
      %v2750 = vadd.f32 %v2552, %v2689
      %v2751 = vadd.f32 %v2553, %v2691
      %v2752 = vadd.f32 %v2554, %v2694
      %v2753 = vadd.f32 %v2555, %v2696
      %v2754 = vadd.f32 %v2556, %v2699
      %v2755 = vadd.f32 %v2557, %v2701
      %v2756 = vadd.f32 %v2558, %v2704
      %v2757 = vadd.f32 %v2559, %v2706
      %v2758 = vadd.f32 %v2560, %v2709
      %v2759 = vadd.f32 %v2561, %v2711
      %v2760 = vadd.f32 %v2562, %v2714
      %v2761 = vadd.f32 %v2563, %v2716
      %v2762 = vadd.f32 %v2564, %v2719
      %v2763 = vadd.f32 %v2565, %v2721
      %v2764 = vadd.f32 %v2566, %v2724
      %v2765 = vadd.f32 %v2567, %v2726
      %v2766 = vadd.f32 %v2568, %v2729
      %v2767 = vadd.f32 %v2569, %v2731
      %v2768 = vadd.f32 %v2570, %v2734
      %v2769 = vadd.f32 %v2571, %v2736
      %2770 = vst [vmem:[%s210] sm:$0xff] 0.0
      %2771 = vst [vmem:[%s210 + $0x8] sm:$0xff] 0.0
      %2772 = vst [vmem:[%s210 + $0x10] sm:$0x3] 0.0
      %2773 = vst [vmem:[%s210 + $0x18] sm:$0xff] 0.0
      %2774 = vst [vmem:[%s210 + $0x20] sm:$0xff] 0.0
      %2775 = vst [vmem:[%s210 + $0x28] sm:$0x3] 0.0
      %2776 = vst [vmem:[%s210 + $0x30] sm:$0xff] 0.0
      %2777 = vst [vmem:[%s210 + $0x38] sm:$0xff] 0.0
      %2778 = vst [vmem:[%s210 + $0x40] sm:$0x3] 0.0
      %2779 = vst [vmem:[%s210 + $0x48] sm:$0xff] 0.0
      %2780 = vst [vmem:[%s210 + $0x50] sm:$0xff] 0.0
      %2781 = vst [vmem:[%s210 + $0x58] sm:$0x3] 0.0
      %2782 = vst [vmem:[%s210 + $0x60] sm:$0xff] 0.0
      %2783 = vst [vmem:[%s210 + $0x68] sm:$0xff] 0.0
      %2784 = vst [vmem:[%s210 + $0x70] sm:$0x3] 0.0
      %2785 = vst [vmem:[%s210 + $0x78] sm:$0xff] 0.0
      %2786 = vst [vmem:[%s210 + $0x80] sm:$0xff] 0.0
      %2787 = vst [vmem:[%s210 + $0x88] sm:$0x3] 0.0
      %2788 = vst [vmem:[%s210 + $0x90] sm:$0xff] 0.0
      %2789 = vst [vmem:[%s210 + $0x98] sm:$0xff] 0.0
      %2790 = vst [vmem:[%s210 + $0xa0] sm:$0x3] 0.0
      %2791 = vst [vmem:[%s210 + $0xa8] sm:$0xff] 0.0
      %2792 = vst [vmem:[%s210 + $0xb0] sm:$0xff] 0.0
      %2793 = vst [vmem:[%s210 + $0xb8] sm:$0x3] 0.0
      %2794 = vst [vmem:[%s210 + $0xc0] sm:$0xff] 0.0
      %2795 = vst [vmem:[%s210 + $0xc8] sm:$0xff] 0.0
      %2796 = vst [vmem:[%s210 + $0xd0] sm:$0x3] 0.0
      %2797 = vst [vmem:[%s210 + $0xd8] sm:$0xff] 0.0
      %2798 = vst [vmem:[%s210 + $0xe0] sm:$0xff] 0.0
      %2799 = vst [vmem:[%s210 + $0xe8] sm:$0x3] 0.0
      %2800 = vst [vmem:[%s210 + $0xf0] sm:$0xff] 0.0
      %2801 = vst [vmem:[%s210 + $0xf8] sm:$0xff] 0.0
      %2802 = vst [vmem:[%s210 + $0x100] sm:$0x3] 0.0
      %2803 = vst [vmem:[%s210 + $0x108] sm:$0xff] 0.0
      %2804 = vst [vmem:[%s210 + $0x110] sm:$0xff] 0.0
      %2805 = vst [vmem:[%s210 + $0x118] sm:$0x3] 0.0
      %2806 = vst [vmem:[%s210 + $0x120] sm:$0xff] 0.0
      %2807 = vst [vmem:[%s210 + $0x128] sm:$0xff] 0.0
      %2808 = vst [vmem:[%s210 + $0x130] sm:$0x3] 0.0
      %2809 = vst [vmem:[%s210 + $0x138] sm:$0xff] 0.0
      %2810 = vst [vmem:[%s210 + $0x140] sm:$0xff] 0.0
      %2811 = vst [vmem:[%s210 + $0x148] sm:$0x3] 0.0
      %2812 = vst [vmem:[%s210 + $0x150] sm:$0xff] 0.0
      %2813 = vst [vmem:[%s210 + $0x158] sm:$0xff] 0.0
      %2814 = vst [vmem:[%s210 + $0x160] sm:$0x3] 0.0
      %2815 = vst [vmem:[%s210 + $0x168] sm:$0xff] 0.0
      %2816 = vst [vmem:[%s210 + $0x170] sm:$0xff] 0.0
      %2817 = vst [vmem:[%s210 + $0x178] sm:$0x3] 0.0
      %2818 = vst [vmem:[%s210 + $0x180] sm:$0xff] 0.0
      %2819 = vst [vmem:[%s210 + $0x188] sm:$0xff] 0.0
      %2820 = vst [vmem:[%s210 + $0x190] sm:$0x3] 0.0
      %2821 = vst [vmem:[%s210 + $0x198] sm:$0xff] 0.0
      %2822 = vst [vmem:[%s210 + $0x1a0] sm:$0xff] 0.0
      %2823 = vst [vmem:[%s210 + $0x1a8] sm:$0x3] 0.0
      %s2824 = scalar_lea.vmem %s210, 24
      %2825 = vst [vmem:[%s2824 + $0x1] sm:$0xff] %v2738
      %2826 = vst [vmem:[%s2824 + $0x9] sm:$0xff] %v2739
      %2827 = vst [vmem:[%s2824 + $0x19] sm:$0xff] %v2740
      %2828 = vst [vmem:[%s2824 + $0x21] sm:$0xff] %v2741
      %2829 = vst [vmem:[%s2824 + $0x31] sm:$0xff] %v2742
      %2830 = vst [vmem:[%s2824 + $0x39] sm:$0xff] %v2743
      %2831 = vst [vmem:[%s2824 + $0x49] sm:$0xff] %v2744
      %2832 = vst [vmem:[%s2824 + $0x51] sm:$0xff] %v2745
      %2833 = vst [vmem:[%s2824 + $0x61] sm:$0xff] %v2746
      %2834 = vst [vmem:[%s2824 + $0x69] sm:$0xff] %v2747
      %2835 = vst [vmem:[%s2824 + $0x79] sm:$0xff] %v2748
      %2836 = vst [vmem:[%s2824 + $0x81] sm:$0xff] %v2749
      %2837 = vst [vmem:[%s2824 + $0x91] sm:$0xff] %v2750
      %2838 = vst [vmem:[%s2824 + $0x99] sm:$0xff] %v2751
      %2839 = vst [vmem:[%s2824 + $0xa9] sm:$0xff] %v2752
      %2840 = vst [vmem:[%s2824 + $0xb1] sm:$0xff] %v2753
      %2841 = vst [vmem:[%s2824 + $0xc1] sm:$0xff] %v2754
      %2842 = vst [vmem:[%s2824 + $0xc9] sm:$0xff] %v2755
      %2843 = vst [vmem:[%s2824 + $0xd9] sm:$0xff] %v2756
      %2844 = vst [vmem:[%s2824 + $0xe1] sm:$0xff] %v2757
      %2845 = vst [vmem:[%s2824 + $0xf1] sm:$0xff] %v2758
      %2846 = vst [vmem:[%s2824 + $0xf9] sm:$0xff] %v2759
      %2847 = vst [vmem:[%s2824 + $0x109] sm:$0xff] %v2760
      %2848 = vst [vmem:[%s2824 + $0x111] sm:$0xff] %v2761
      %2849 = vst [vmem:[%s2824 + $0x121] sm:$0xff] %v2762
      %2850 = vst [vmem:[%s2824 + $0x129] sm:$0xff] %v2763
      %2851 = vst [vmem:[%s2824 + $0x139] sm:$0xff] %v2764
      %2852 = vst [vmem:[%s2824 + $0x141] sm:$0xff] %v2765
      %2853 = vst [vmem:[%s2824 + $0x151] sm:$0xff] %v2766
      %2854 = vst [vmem:[%s2824 + $0x159] sm:$0xff] %v2767
      %2855 = vst [vmem:[%s2824 + $0x169] sm:$0xff] %v2768
      %2856 = vst [vmem:[%s2824 + $0x171] sm:$0xff] %v2769
      %v2857 = vadd.f32 %v2738, %v2739
      %v2858 = vadd.f32 %v2857, %v2740
      %v2859 = vadd.f32 %v2858, %v2741
      %v2860 = vadd.f32 %v2859, %v2742
      %v2861 = vadd.f32 %v2860, %v2743
      %v2862 = vadd.f32 %v2861, %v2744
      %v2863 = vadd.f32 %v2862, %v2745
      %v2864 = vadd.f32 %v2863, %v2746
      %v2865 = vadd.f32 %v2864, %v2747
      %v2866 = vadd.f32 %v2865, %v2748
      %v2867 = vadd.f32 %v2866, %v2749
      %v2868 = vadd.f32 %v2867, %v2750
      %v2869 = vadd.f32 %v2868, %v2751
      %v2870 = vadd.f32 %v2869, %v2752
      %v2871 = vadd.f32 %v2870, %v2753
      %v2872 = vadd.f32 %v2871, %v2754
      %v2873 = vadd.f32 %v2872, %v2755
      %v2874 = vadd.f32 %v2873, %v2756
      %v2875 = vadd.f32 %v2874, %v2757
      %v2876 = vadd.f32 %v2875, %v2758
      %v2877 = vadd.f32 %v2876, %v2759
      %v2878 = vadd.f32 %v2877, %v2760
      %v2879 = vadd.f32 %v2878, %v2761
      %v2880 = vadd.f32 %v2879, %v2762
      %v2881 = vadd.f32 %v2880, %v2763
      %v2882 = vadd.f32 %v2881, %v2764
      %v2883 = vadd.f32 %v2882, %v2765
      %v2884 = vadd.f32 %v2883, %v2766
      %v2885 = vadd.f32 %v2884, %v2767
      %v2886 = vadd.f32 %v2885, %v2768
      %v2887 = vadd.f32 %v2886, %v2769
      %v2888 = vrot.slane %v2887, 4
      %v2889 = vadd.f32 %v2887, %v2888
      %v2890 = vrot.slane %v2889, 2
      %v2891 = vadd.f32 %v2889, %v2890
      %v2892 = vrot.slane %v2891, 1
      %v2893 = vadd.f32 %v2891, %v2892
      %v2894 = vmul.f32 %v2738, %v2738
      %v2895 = vmul.f32 %v2739, %v2739
      %v2896 = vmul.f32 %v2740, %v2740
      %v2897 = vmul.f32 %v2741, %v2741
      %v2898 = vmul.f32 %v2742, %v2742
      %v2899 = vmul.f32 %v2743, %v2743
      %v2900 = vmul.f32 %v2744, %v2744
      %v2901 = vmul.f32 %v2745, %v2745
      %v2902 = vmul.f32 %v2746, %v2746
      %v2903 = vmul.f32 %v2747, %v2747
      %v2904 = vmul.f32 %v2748, %v2748
      %v2905 = vmul.f32 %v2749, %v2749
      %v2906 = vmul.f32 %v2750, %v2750
      %v2907 = vmul.f32 %v2751, %v2751
      %v2908 = vmul.f32 %v2752, %v2752
      %v2909 = vmul.f32 %v2753, %v2753
      %v2910 = vmul.f32 %v2754, %v2754
      %v2911 = vmul.f32 %v2755, %v2755
      %v2912 = vmul.f32 %v2756, %v2756
      %v2913 = vmul.f32 %v2757, %v2757
      %v2914 = vmul.f32 %v2758, %v2758
      %v2915 = vmul.f32 %v2759, %v2759
      %v2916 = vmul.f32 %v2760, %v2760
      %v2917 = vmul.f32 %v2761, %v2761
      %v2918 = vmul.f32 %v2762, %v2762
      %v2919 = vmul.f32 %v2763, %v2763
      %v2920 = vmul.f32 %v2764, %v2764
      %v2921 = vmul.f32 %v2765, %v2765
      %v2922 = vmul.f32 %v2766, %v2766
      %v2923 = vmul.f32 %v2767, %v2767
      %v2924 = vmul.f32 %v2768, %v2768
      %v2925 = vmul.f32 %v2769, %v2769
      %v2926 = vadd.f32 %v2894, %v2895
      %v2927 = vadd.f32 %v2926, %v2896
      %v2928 = vadd.f32 %v2927, %v2897
      %v2929 = vadd.f32 %v2928, %v2898
      %v2930 = vadd.f32 %v2929, %v2899
      %v2931 = vadd.f32 %v2930, %v2900
      %v2932 = vadd.f32 %v2931, %v2901
      %v2933 = vadd.f32 %v2932, %v2902
      %v2934 = vadd.f32 %v2933, %v2903
      %v2935 = vadd.f32 %v2934, %v2904
      %v2936 = vadd.f32 %v2935, %v2905
      %v2937 = vadd.f32 %v2936, %v2906
      %v2938 = vadd.f32 %v2937, %v2907
      %v2939 = vadd.f32 %v2938, %v2908
      %v2940 = vadd.f32 %v2939, %v2909
      %v2941 = vadd.f32 %v2940, %v2910
      %v2942 = vadd.f32 %v2941, %v2911
      %v2943 = vadd.f32 %v2942, %v2912
      %v2944 = vadd.f32 %v2943, %v2913
      %v2945 = vadd.f32 %v2944, %v2914
      %v2946 = vadd.f32 %v2945, %v2915
      %v2947 = vadd.f32 %v2946, %v2916
      %v2948 = vadd.f32 %v2947, %v2917
      %v2949 = vadd.f32 %v2948, %v2918
      %v2950 = vadd.f32 %v2949, %v2919
      %v2951 = vadd.f32 %v2950, %v2920
      %v2952 = vadd.f32 %v2951, %v2921
      %v2953 = vadd.f32 %v2952, %v2922
      %v2954 = vadd.f32 %v2953, %v2923
      %v2955 = vadd.f32 %v2954, %v2924
      %v2956 = vadd.f32 %v2955, %v2925
      %v2957 = vrot.slane %v2956, 4
      %v2958 = vadd.f32 %v2956, %v2957
      %v2959 = vrot.slane %v2958, 2
      %v2960 = vadd.f32 %v2958, %v2959
      %v2961 = vrot.slane %v2960, 1
      %v2962 = vadd.f32 %v2960, %v2961
      %2963 = vst [vmem:[%s214] sm:$0xff] %v2893
      %2964 = vst [vmem:[%s218] sm:$0xff] %v2962
      %p2965 = scmp.lt.s32.totalorder %s16, 1
      %s2966 = scalar_select %p2965, %s16, 1
      %s2967 = smul.addr %s2966, 54
      %s2968 = smul.addr %s2967, 8
      %s2969 = scalar_lea.vmem %s2, %s2968
      %p2970 = scmp.lt.s32.totalorder %s16, 1
      %s2971 = scalar_select %p2970, %s16, 1
      %s2972 = smul.addr %s2971, 8
      %s2973 = scalar_lea.vmem %s3, %s2972
      %p2974 = scmp.lt.s32.totalorder %s16, 1
      %s2975 = scalar_select %p2974, %s16, 1
      %s2976 = smul.addr %s2975, 8
      %s2977 = scalar_lea.vmem %s4, %s2976
      // Predicated region
      $region29: #{dense_layer_forward.3} parent=27 // pred_check
        %p2978 = pneg %p81
      $region30: #{dense_layer_forward.3} parent=27 // pred_check_branch
        %2980 = sbr.rel (%p2978) target = $region32
      $region31: #{dense_layer_forward.3} parent=27 // pred_region
        _
      $region32: #{dense_layer_forward.3} parent=27 // pred_fallthru
        _
      // Predicated region
      $region33: #{dense_layer_forward.3} parent=27 // pred_check
        %p2981 = pneg %p107
      $region34: #{dense_layer_forward.3} parent=27 // pred_check_branch
        %2983 = sbr.rel (%p2981) target = $region36
      $region35: #{dense_layer_forward.3} parent=27 // pred_region
        _
      $region36: #{dense_layer_forward.3} parent=27 // pred_fallthru
        _
      // Predicated region
      $region37: #{dense_layer_forward.3} parent=27 // pred_check
        %p2984 = pneg %p133
      $region38: #{dense_layer_forward.3} parent=27 // pred_check_branch
        %2986 = sbr.rel (%p2984) target = $region40
      $region39: #{dense_layer_forward.3} parent=27 // pred_region
        _
      $region40: #{dense_layer_forward.3} parent=27 // pred_fallthru
        _
    $region28: #{dense_layer_forward.3} parent=5 // pred_fallthru
      _
    %p2987 = scmp.le.s32.totalorder 2, %s11
    // Predicated region
    $region41: #{dense_layer_forward.3} parent=5 // pred_check
      %p2988 = pneg %p2987
    $region42: #{dense_layer_forward.3} parent=5 // pred_check_branch
      %2990 = sbr.rel (%p2988) target = $region44
    $region43: #{dense_layer_forward.3} parent=5 // pred_region
      %s2991 = ssub.s32 %s11, 2
      // Predicated region
      $region45: #{dense_layer_forward.3} parent=43 // pred_check
        %p2992 = pneg %p87
      $region46: #{dense_layer_forward.3} parent=43 // pred_check_branch
        %2994 = sbr.rel (%p2992) target = $region48
      $region47: #{dense_layer_forward.3} parent=43 // pred_region
        %p2995 = scmp.lt.s32.totalorder %s17, 1
        %s2996 = scalar_select %p2995, %s17, 1
        %s2997 = smul.addr %s2996, 54
        %s2998 = smul.addr %s2997, 8
        %s2999 = scalar_lea.vmem %s2, %s2998
      $region48: #{dense_layer_forward.3} parent=43 // pred_fallthru
        _
      // Predicated region
      $region49: #{dense_layer_forward.3} parent=43 // pred_check
        %p3000 = pneg %p113
      $region50: #{dense_layer_forward.3} parent=43 // pred_check_branch
        %3002 = sbr.rel (%p3000) target = $region52
      $region51: #{dense_layer_forward.3} parent=43 // pred_region
        %p3003 = scmp.lt.s32.totalorder %s17, 1
        %s3004 = scalar_select %p3003, %s17, 1
        %s3005 = smul.addr %s3004, 8
        %s3006 = scalar_lea.vmem %s3, %s3005
      $region52: #{dense_layer_forward.3} parent=43 // pred_fallthru
        _
      // Predicated region
      $region53: #{dense_layer_forward.3} parent=43 // pred_check
        %p3007 = pneg %p139
      $region54: #{dense_layer_forward.3} parent=43 // pred_check_branch
        %3009 = sbr.rel (%p3007) target = $region56
      $region55: #{dense_layer_forward.3} parent=43 // pred_region
        %p3010 = scmp.lt.s32.totalorder %s17, 1
        %s3011 = scalar_select %p3010, %s17, 1
        %s3012 = smul.addr %s3011, 8
        %s3013 = scalar_lea.vmem %s4, %s3012
      $region56: #{dense_layer_forward.3} parent=43 // pred_fallthru
        _
    $region44: #{dense_layer_forward.3} parent=5 // pred_fallthru
      _
  $region6: #{dense_layer_forward.3} parent=0 // loop_footer
    %s15 = sadd.s32 1, %s11
  $region7: #{dense_layer_forward.3} parent=0 // loop_footer_branch
    %10 = sbr.rel target = $region3
  $region8: #{dense_layer_forward.3} parent=0 // loop_exit
    _

// kernel: dense_layer_forward.4
$region0: #{dense_layer_forward.4}
  #allocation0 [shape = 'u32[]', space=smem, size = 0x4, offset = 0x4, fixed_abs, tag = 'smem constant byte address 0x4 - core index']
  #allocation1 [shape = 'u32[72,128]{1,0:T(1,128)}', space=vmem, size = 0x9000, scoped, tag = 'internal scratch']
  %s0 = inlined_call_operand.vmem [shape: f32[2,18,18,128], index: 0, kind: input, shape index: {}]
  %s1 = inlined_call_operand.vmem [shape: f32[1,128], index: 1, kind: input, shape index: {}]
  %s2 = inlined_call_operand.vmem [shape: f32[1,128], index: 2, kind: input, shape index: {}]
  %s3 = inlined_call_operand.vmem [shape: bf16[3,3,128,128], index: 3, kind: input, shape index: {}]
  %s4 = inlined_call_operand.vmem [shape: f32[512,128], index: 4, kind: output, shape index: {0}]
  %s5 = inlined_call_operand.vmem [shape: f32[2,8,128], index: 5, kind: output, shape index: {1}]
  %s6 = inlined_call_operand.vmem [shape: f32[2,8,128], index: 6, kind: output, shape index: {2}]
  %7 = xla_tuple %s4, %s5, %s6
  %s8 = sld [smem:[#allocation0]]
  $region65: #{dense_layer_forward.4} parent=0
    _
  %s10 = ssub.s32 1, %s8
  %s11 = scalar_select 0, %s10, %s8
  loop: start=0, step=1, limit=4
  $region2: #{dense_layer_forward.4} parent=0 // loop_pre_header
    _
  $region3: #{dense_layer_forward.4} parent=0 // loop_header
    %s13 = sphi 0, %s17
    %p14 = scmp.ge.s32.totalorder %s13, 4
    %s23 = sphi 0, %s25
    %s26 = sphi 0, %s23
    %s27 = sphi 0, %s26
    %s43 = sphi 0, %s27
    %s47 = sphi 0, %s47
    %s49 = sphi 0, %s47
    %s50 = sphi 0, %s49
    %s64 = sphi 0, %s50
    %s68 = sphi 0, %s68
    %s70 = sphi 0, %s68
    %s71 = sphi 0, %s70
    %s85 = sphi 0, %s71
    %s89 = sphi 0, %s89
    %s91 = sphi 0, %s89
    %s92 = sphi 0, %s91
    %s106 = sphi 0, %s92
    %s112 = sphi 0, %s114
    %s115 = sphi 0, %s112
    %s116 = sphi 0, %s115
    %s132 = sphi 0, %s116
    %s138 = sphi 0, %s140
    %s141 = sphi 0, %s138
    %s142 = sphi 0, %s141
    %s158 = sphi 0, %s142
    %s164 = sphi 0, %s166
    %s167 = sphi 0, %s164
    %s168 = sphi 0, %s167
    %s184 = sphi 0, %s168
  $region4: #{dense_layer_forward.4} parent=0 // loop_header_branch
    %16 = sbr.rel (%p14) target = $region8
  $region5: #{dense_layer_forward.4} parent=0 // loop_body
    %s18 = ssub.s32 %s13, 1
    %s19 = ssub.s32 %s13, 2
    %s20 = sadd.s32 %s13, 1
    %s21 = ssub.s32 %s13, %s20
    %p22 = scmp.eq.s32.totalorder %s21, 0
    %s24 = sadd.s32 %s23, 1
    %s25 = scalar_select %p22, %s23, %s24
    %p28 = pneg %p22
    %p29 = scmp.eq.s32.totalorder %s13, 1
    %p30 = por %p28, %p29
    %p31 = scmp.ne.s32.totalorder %s23, %s26
    %p32 = scmp.eq.s32.totalorder %s13, 0
    %p33 = por %p31, %p32
    %p34 = scmp.ne.s32.totalorder %s23, %s26
    %p35 = scmp.eq.s32.totalorder %s18, 1
    %p36 = por %p34, %p35
    %p37 = scmp.ne.s32.totalorder %s26, %s27
    %p38 = scmp.eq.s32.totalorder %s18, 0
    %p39 = por %p37, %p38
    %p40 = scmp.ne.s32.totalorder %s26, %s27
    %p41 = scmp.eq.s32.totalorder %s19, 1
    %p42 = por %p40, %p41
    %p44 = scmp.ne.s32.totalorder %s27, %s43
    %p45 = scmp.eq.s32.totalorder %s19, 0
    %p46 = por %p44, %p45
    %s48 = sadd.s32 %s47, 1
    %p51 = scmp.eq.s32.totalorder %s13, 1
    %p52 = scmp.ne.s32.totalorder %s47, %s49
    %p53 = scmp.eq.s32.totalorder %s13, 0
    %p54 = por %p52, %p53
    %p55 = scmp.ne.s32.totalorder %s47, %s49
    %p56 = scmp.eq.s32.totalorder %s18, 1
    %p57 = por %p55, %p56
    %p58 = scmp.ne.s32.totalorder %s49, %s50
    %p59 = scmp.eq.s32.totalorder %s18, 0
    %p60 = por %p58, %p59
    %p61 = scmp.ne.s32.totalorder %s49, %s50
    %p62 = scmp.eq.s32.totalorder %s19, 1
    %p63 = por %p61, %p62
    %p65 = scmp.ne.s32.totalorder %s50, %s64
    %p66 = scmp.eq.s32.totalorder %s19, 0
    %p67 = por %p65, %p66
    %s69 = sadd.s32 %s68, 1
    %p72 = scmp.eq.s32.totalorder %s13, 1
    %p73 = scmp.ne.s32.totalorder %s68, %s70
    %p74 = scmp.eq.s32.totalorder %s13, 0
    %p75 = por %p73, %p74
    %p76 = scmp.ne.s32.totalorder %s68, %s70
    %p77 = scmp.eq.s32.totalorder %s18, 1
    %p78 = por %p76, %p77
    %p79 = scmp.ne.s32.totalorder %s70, %s71
    %p80 = scmp.eq.s32.totalorder %s18, 0
    %p81 = por %p79, %p80
    %p82 = scmp.ne.s32.totalorder %s70, %s71
    %p83 = scmp.eq.s32.totalorder %s19, 1
    %p84 = por %p82, %p83
    %p86 = scmp.ne.s32.totalorder %s71, %s85
    %p87 = scmp.eq.s32.totalorder %s19, 0
    %p88 = por %p86, %p87
    %s90 = sadd.s32 %s89, 1
    %p93 = scmp.eq.s32.totalorder %s13, 1
    %p94 = scmp.ne.s32.totalorder %s89, %s91
    %p95 = scmp.eq.s32.totalorder %s13, 0
    %p96 = por %p94, %p95
    %p97 = scmp.ne.s32.totalorder %s89, %s91
    %p98 = scmp.eq.s32.totalorder %s18, 1
    %p99 = por %p97, %p98
    %p100 = scmp.ne.s32.totalorder %s91, %s92
    %p101 = scmp.eq.s32.totalorder %s18, 0
    %p102 = por %p100, %p101
    %p103 = scmp.ne.s32.totalorder %s91, %s92
    %p104 = scmp.eq.s32.totalorder %s19, 1
    %p105 = por %p103, %p104
    %p107 = scmp.ne.s32.totalorder %s92, %s106
    %p108 = scmp.eq.s32.totalorder %s19, 0
    %p109 = por %p107, %p108
    %s110 = ssub.s32 %s13, %s20
    %p111 = scmp.eq.s32.totalorder %s110, 0
    %s113 = sadd.s32 %s112, 1
    %s114 = scalar_select %p111, %s112, %s113
    %p117 = pneg %p111
    %p118 = scmp.eq.s32.totalorder %s13, 1
    %p119 = por %p117, %p118
    %p120 = scmp.ne.s32.totalorder %s112, %s115
    %p121 = scmp.eq.s32.totalorder %s13, 0
    %p122 = por %p120, %p121
    %p123 = scmp.ne.s32.totalorder %s112, %s115
    %p124 = scmp.eq.s32.totalorder %s18, 1
    %p125 = por %p123, %p124
    %p126 = scmp.ne.s32.totalorder %s115, %s116
    %p127 = scmp.eq.s32.totalorder %s18, 0
    %p128 = por %p126, %p127
    %p129 = scmp.ne.s32.totalorder %s115, %s116
    %p130 = scmp.eq.s32.totalorder %s19, 1
    %p131 = por %p129, %p130
    %p133 = scmp.ne.s32.totalorder %s116, %s132
    %p134 = scmp.eq.s32.totalorder %s19, 0
    %p135 = por %p133, %p134
    %s136 = ssub.s32 %s13, %s20
    %p137 = scmp.eq.s32.totalorder %s136, 0
    %s139 = sadd.s32 %s138, 1
    %s140 = scalar_select %p137, %s138, %s139
    %p143 = pneg %p137
    %p144 = scmp.eq.s32.totalorder %s13, 1
    %p145 = por %p143, %p144
    %p146 = scmp.ne.s32.totalorder %s138, %s141
    %p147 = scmp.eq.s32.totalorder %s13, 0
    %p148 = por %p146, %p147
    %p149 = scmp.ne.s32.totalorder %s138, %s141
    %p150 = scmp.eq.s32.totalorder %s18, 1
    %p151 = por %p149, %p150
    %p152 = scmp.ne.s32.totalorder %s141, %s142
    %p153 = scmp.eq.s32.totalorder %s18, 0
    %p154 = por %p152, %p153
    %p155 = scmp.ne.s32.totalorder %s141, %s142
    %p156 = scmp.eq.s32.totalorder %s19, 1
    %p157 = por %p155, %p156
    %p159 = scmp.ne.s32.totalorder %s142, %s158
    %p160 = scmp.eq.s32.totalorder %s19, 0
    %p161 = por %p159, %p160
    %s162 = ssub.s32 %s13, %s20
    %p163 = scmp.eq.s32.totalorder %s162, 0
    %s165 = sadd.s32 %s164, 1
    %s166 = scalar_select %p163, %s164, %s165
    %p169 = pneg %p163
    %p170 = scmp.eq.s32.totalorder %s13, 1
    %p171 = por %p169, %p170
    %p172 = scmp.ne.s32.totalorder %s164, %s167
    %p173 = scmp.eq.s32.totalorder %s13, 0
    %p174 = por %p172, %p173
    %p175 = scmp.ne.s32.totalorder %s164, %s167
    %p176 = scmp.eq.s32.totalorder %s18, 1
    %p177 = por %p175, %p176
    %p178 = scmp.ne.s32.totalorder %s167, %s168
    %p179 = scmp.eq.s32.totalorder %s18, 0
    %p180 = por %p178, %p179
    %p181 = scmp.ne.s32.totalorder %s167, %s168
    %p182 = scmp.eq.s32.totalorder %s19, 1
    %p183 = por %p181, %p182
    %p185 = scmp.ne.s32.totalorder %s168, %s184
    %p186 = scmp.eq.s32.totalorder %s19, 0
    %p187 = por %p185, %p186
    %p188 = scmp.le.s32.totalorder 1, %s13
    %p189 = scmp.lt.s32.totalorder %s13, 3
    %p190 = pnand %p188, %p189
    %p191 = pneg %p190
    // Predicated region
    $region9: #{dense_layer_forward.4} parent=5 // pred_check
      _
    $region10: #{dense_layer_forward.4} parent=5 // pred_check_branch
      %193 = sbr.rel (%p190) target = $region12
    $region11: #{dense_layer_forward.4} parent=5 // pred_region
      %s194 = ssub.s32 %s13, 1
      // Predicated region
      $region13: #{dense_layer_forward.4} parent=11 // pred_check
        %p195 = pneg %p60
      $region14: #{dense_layer_forward.4} parent=11 // pred_check_branch
        %197 = sbr.rel (%p195) target = $region16
      $region15: #{dense_layer_forward.4} parent=11 // pred_region
        _
      $region16: #{dense_layer_forward.4} parent=11 // pred_fallthru
        _
      // Predicated region
      $region17: #{dense_layer_forward.4} parent=11 // pred_check
        %p198 = pneg %p81
      $region18: #{dense_layer_forward.4} parent=11 // pred_check_branch
        %200 = sbr.rel (%p198) target = $region20
      $region19: #{dense_layer_forward.4} parent=11 // pred_region
        _
      $region20: #{dense_layer_forward.4} parent=11 // pred_fallthru
        _
      // Predicated region
      $region21: #{dense_layer_forward.4} parent=11 // pred_check
        %p201 = pneg %p102
      $region22: #{dense_layer_forward.4} parent=11 // pred_check_branch
        %203 = sbr.rel (%p201) target = $region24
      $region23: #{dense_layer_forward.4} parent=11 // pred_region
        _
      $region24: #{dense_layer_forward.4} parent=11 // pred_fallthru
        _
    $region12: #{dense_layer_forward.4} parent=5 // pred_fallthru
      _
    %p204 = scmp.lt.s32.totalorder %s13, 2
    // Predicated region
    $region25: #{dense_layer_forward.4} parent=5 // pred_check
      %p205 = pneg %p204
    $region26: #{dense_layer_forward.4} parent=5 // pred_check_branch
      %207 = sbr.rel (%p205) target = $region28
    $region27: #{dense_layer_forward.4} parent=5 // pred_region
      // Predicated region
      $region29: #{dense_layer_forward.4} parent=27 // pred_check
        %p208 = pneg %p33
      $region30: #{dense_layer_forward.4} parent=27 // pred_check_branch
        %210 = sbr.rel (%p208) target = $region32
      $region31: #{dense_layer_forward.4} parent=27 // pred_region
        %p211 = scmp.lt.s32.totalorder %s13, 1
        %s212 = scalar_select %p211, %s13, 1
        %s213 = smul.addr %s212, 54
        %s214 = smul.addr %s213, 8
        %s215 = scalar_lea.vmem %s0, %s214
      $region32: #{dense_layer_forward.4} parent=27 // pred_fallthru
        _
    $region28: #{dense_layer_forward.4} parent=5 // pred_fallthru
      _
    %p216 = scmp.le.s32.totalorder 1, %s13
    %p217 = scmp.lt.s32.totalorder %s13, 3
    %p218 = pnand %p216, %p217
    %p219 = pneg %p218
    // Predicated region
    $region33: #{dense_layer_forward.4} parent=5 // pred_check
      _
    $region34: #{dense_layer_forward.4} parent=5 // pred_check_branch
      %221 = sbr.rel (%p218) target = $region36
    $region35: #{dense_layer_forward.4} parent=5 // pred_region
      %s222 = ssub.s32 %s13, 1
      %p223 = scmp.lt.s32.totalorder %s18, 1
      %s224 = scalar_select %p223, %s18, 1
      %s225 = smul.addr %s224, 54
      %s226 = smul.addr %s225, 8
      %s227 = scalar_lea.vmem %s0, %s226
      %p228 = pneg %p39
      %p229 = pneg %p36
      %p230 = pneg %p60
      %p231 = pneg %p57
      %p232 = pneg %p81
      %p233 = pneg %p78
      %p234 = pneg %p102
      %p235 = pneg %p99
      %p236 = pneg %p128
      %p237 = pneg %p125
      %s238 = smul.u32 32, %s18
      %p239 = scmp.lt.s32.totalorder %s238, 63
      %s240 = scalar_select %p239, %s238, 63
      %s241 = smul.addr %s240, 8
      %s242 = scalar_lea.vmem %s4, %s241
      %p243 = pneg %p154
      %p244 = pneg %p151
      %p245 = scmp.lt.s32.totalorder %s18, 1
      %s246 = scalar_select %p245, %s18, 1
      %s247 = smul.addr %s246, 8
      %s248 = scalar_lea.vmem %s5, %s247
      %p249 = pneg %p180
      %p250 = pneg %p177
      %p251 = scmp.lt.s32.totalorder %s18, 1
      %s252 = scalar_select %p251, %s18, 1
      %s253 = smul.addr %s252, 8
      %s254 = scalar_lea.vmem %s6, %s253
      %p255 = scmp.lt.s32.totalorder %s18, 1
      %s256 = scalar_select %p255, %s18, 1
      %s257 = smul.addr %s256, 54
      %s258 = smul.addr %s257, 8
      %s259 = scalar_lea.vmem %s0, %s258
      %s260 = smul.u32 32, %s18
      %p261 = scmp.lt.s32.totalorder %s260, 63
      %s262 = scalar_select %p261, %s260, 63
      %s263 = smul.addr %s262, 8
      %s264 = scalar_lea.vmem %s4, %s263
      %s265 = smul.u32 32, %s18
      %p266 = scmp.lt.s32.totalorder %s18, 1
      %s267 = scalar_select %p266, %s18, 1
      %s268 = smul.addr %s267, 8
      %s269 = scalar_lea.vmem %s5, %s268
      %p270 = scmp.lt.s32.totalorder %s18, 1
      %s271 = scalar_select %p270, %s18, 1
      %s272 = smul.addr %s271, 8
      %s273 = scalar_lea.vmem %s6, %s272
      %v274 = vld [vmem:[%s259] sm:$0xff]
      %v275 = vld [vmem:[%s259 + $0x8] sm:$0xff]
      %v276 = vld [vmem:[%s259 + $0x10] sm:$0x3]
      %v277 = vld [vmem:[%s259 + $0x18] sm:$0xff]
      %v278 = vld [vmem:[%s259 + $0x20] sm:$0xff]
      %v279 = vld [vmem:[%s259 + $0x28] sm:$0x3]
      %v280 = vld [vmem:[%s259 + $0x30] sm:$0xff]
      %v281 = vld [vmem:[%s259 + $0x38] sm:$0xff]
      %v282 = vld [vmem:[%s259 + $0x40] sm:$0x3]
      %v283 = vld [vmem:[%s259 + $0x48] sm:$0xff]
      %v284 = vld [vmem:[%s259 + $0x50] sm:$0xff]
      %v285 = vld [vmem:[%s259 + $0x58] sm:$0x3]
      %v286 = vld [vmem:[%s259 + $0x60] sm:$0xff]
      %v287 = vld [vmem:[%s259 + $0x68] sm:$0xff]
      %v288 = vld [vmem:[%s259 + $0x70] sm:$0x3]
      %v289 = vld [vmem:[%s259 + $0x78] sm:$0xff]
      %v290 = vld [vmem:[%s259 + $0x80] sm:$0xff]
      %v291 = vld [vmem:[%s259 + $0x88] sm:$0x3]
      %v292 = vld [vmem:[%s259 + $0x90] sm:$0xff]
      %v293 = vld [vmem:[%s259 + $0x98] sm:$0xff]
      %v294 = vld [vmem:[%s259 + $0xa0] sm:$0x3]
      %v295 = vld [vmem:[%s259 + $0xa8] sm:$0xff]
      %v296 = vld [vmem:[%s259 + $0xb0] sm:$0xff]
      %v297 = vld [vmem:[%s259 + $0xb8] sm:$0x3]
      %v298 = vld [vmem:[%s259 + $0xc0] sm:$0xff]
      %v299 = vld [vmem:[%s259 + $0xc8] sm:$0xff]
      %v300 = vld [vmem:[%s259 + $0xd0] sm:$0x3]
      %v301 = vld [vmem:[%s259 + $0xd8] sm:$0xff]
      %v302 = vld [vmem:[%s259 + $0xe0] sm:$0xff]
      %v303 = vld [vmem:[%s259 + $0xe8] sm:$0x3]
      %v304 = vld [vmem:[%s259 + $0xf0] sm:$0xff]
      %v305 = vld [vmem:[%s259 + $0xf8] sm:$0xff]
      %v306 = vld [vmem:[%s259 + $0x100] sm:$0x3]
      %v307 = vld [vmem:[%s259 + $0x108] sm:$0xff]
      %v308 = vld [vmem:[%s259 + $0x110] sm:$0xff]
      %v309 = vld [vmem:[%s259 + $0x118] sm:$0x3]
      %v310 = vld [vmem:[%s259 + $0x120] sm:$0xff]
      %v311 = vld [vmem:[%s259 + $0x128] sm:$0xff]
      %v312 = vld [vmem:[%s259 + $0x130] sm:$0x3]
      %v313 = vld [vmem:[%s259 + $0x138] sm:$0xff]
      %v314 = vld [vmem:[%s259 + $0x140] sm:$0xff]
      %v315 = vld [vmem:[%s259 + $0x148] sm:$0x3]
      %v316 = vld [vmem:[%s259 + $0x150] sm:$0xff]
      %v317 = vld [vmem:[%s259 + $0x158] sm:$0xff]
      %v318 = vld [vmem:[%s259 + $0x160] sm:$0x3]
      %v319 = vld [vmem:[%s259 + $0x168] sm:$0xff]
      %v320 = vld [vmem:[%s259 + $0x170] sm:$0xff]
      %v321 = vld [vmem:[%s259 + $0x178] sm:$0x3]
      %v322 = vld [vmem:[%s259 + $0x180] sm:$0xff]
      %v323 = vld [vmem:[%s259 + $0x188] sm:$0xff]
      %v324 = vld [vmem:[%s259 + $0x190] sm:$0x3]
      %v325 = vld [vmem:[%s259 + $0x198] sm:$0xff]
      %v326 = vld [vmem:[%s259 + $0x1a0] sm:$0xff]
      %v327 = vld [vmem:[%s259 + $0x1a8] sm:$0x3]
      %v328 = vld [vmem:[%s1] sm:$0x1]
      %v329 = vld [vmem:[%s2] sm:$0x1]
      %v330 = vlaneseq
      %v331 = vshrl.u32 %v330, 7
      %v332 = vadd.s32 %v331, 8
      %v333 = vadd.s32 %v331, 16
      %vm334 = vcmp.ge.s32.totalorder %v331, 1
      %vm335 = vcmp.ge.s32.totalorder %v332, 1
      %vm336 = vcmp.ge.s32.totalorder %v333, 1
      %vm337 = vmand 0, %vm334
      %vm338 = vmand 0, %vm335
      %vm339 = vmand 0, %vm336
      %vm340 = vmand 1, %vm334
      %vm341 = vmand 1, %vm335
      %vm342 = vmand 1, %vm336
      %vm343 = vcmp.le.s32.totalorder %v331, 16
      %vm344 = vcmp.le.s32.totalorder %v332, 16
      %vm345 = vcmp.le.s32.totalorder %v333, 16
      %vm346 = vmand %vm337, %vm343
      %vm347 = vmand %vm338, %vm344
      %vm348 = vmand %vm339, %vm345
      %vm349 = vmand %vm340, %vm343
      %vm350 = vmand %vm341, %vm344
      %vm351 = vmand %vm342, %vm345
      %v353 = vperm.slane %v328, 0
      %v355 = vmul.f32 %v274, %v353
      %v356 = vmul.f32 %v275, %v353
      %v357 = vmul.f32 %v276, %v353
      %v358 = vmul.f32 %v277, %v353
      %v359 = vmul.f32 %v278, %v353
      %v360 = vmul.f32 %v279, %v353
      %v361 = vmul.f32 %v280, %v353
      %v362 = vmul.f32 %v281, %v353
      %v363 = vmul.f32 %v282, %v353
      %v364 = vmul.f32 %v283, %v353
      %v365 = vmul.f32 %v284, %v353
      %v366 = vmul.f32 %v285, %v353
      %v367 = vmul.f32 %v286, %v353
      %v368 = vmul.f32 %v287, %v353
      %v369 = vmul.f32 %v288, %v353
      %v370 = vmul.f32 %v289, %v353
      %v371 = vmul.f32 %v290, %v353
      %v372 = vmul.f32 %v291, %v353
      %v373 = vmul.f32 %v292, %v353
      %v374 = vmul.f32 %v293, %v353
      %v375 = vmul.f32 %v294, %v353
      %v376 = vmul.f32 %v295, %v353
      %v377 = vmul.f32 %v296, %v353
      %v378 = vmul.f32 %v297, %v353
      %v379 = vmul.f32 %v298, %v353
      %v380 = vmul.f32 %v299, %v353
      %v381 = vmul.f32 %v300, %v353
      %v382 = vmul.f32 %v301, %v353
      %v383 = vmul.f32 %v302, %v353
      %v384 = vmul.f32 %v303, %v353
      %v385 = vmul.f32 %v304, %v353
      %v386 = vmul.f32 %v305, %v353
      %v387 = vmul.f32 %v306, %v353
      %v388 = vmul.f32 %v307, %v353
      %v389 = vmul.f32 %v308, %v353
      %v390 = vmul.f32 %v309, %v353
      %v391 = vmul.f32 %v310, %v353
      %v392 = vmul.f32 %v311, %v353
      %v393 = vmul.f32 %v312, %v353
      %v394 = vmul.f32 %v313, %v353
      %v395 = vmul.f32 %v314, %v353
      %v396 = vmul.f32 %v315, %v353
      %v397 = vmul.f32 %v316, %v353
      %v398 = vmul.f32 %v317, %v353
      %v399 = vmul.f32 %v318, %v353
      %v400 = vmul.f32 %v319, %v353
      %v401 = vmul.f32 %v320, %v353
      %v402 = vmul.f32 %v321, %v353
      %v403 = vmul.f32 %v322, %v353
      %v404 = vmul.f32 %v323, %v353
      %v405 = vmul.f32 %v324, %v353
      %v406 = vmul.f32 %v325, %v353
      %v407 = vmul.f32 %v326, %v353
      %v408 = vmul.f32 %v327, %v353
      %v410 = vperm.slane %v329, 0
      %v412 = vadd.f32 %v355, %v410
      %v413 = vadd.f32 %v356, %v410
      %v414 = vadd.f32 %v357, %v410
      %v415 = vadd.f32 %v358, %v410
      %v416 = vadd.f32 %v359, %v410
      %v417 = vadd.f32 %v360, %v410
      %v418 = vadd.f32 %v361, %v410
      %v419 = vadd.f32 %v362, %v410
      %v420 = vadd.f32 %v363, %v410
      %v421 = vadd.f32 %v364, %v410
      %v422 = vadd.f32 %v365, %v410
      %v423 = vadd.f32 %v366, %v410
      %v424 = vadd.f32 %v367, %v410
      %v425 = vadd.f32 %v368, %v410
      %v426 = vadd.f32 %v369, %v410
      %v427 = vadd.f32 %v370, %v410
      %v428 = vadd.f32 %v371, %v410
      %v429 = vadd.f32 %v372, %v410
      %v430 = vadd.f32 %v373, %v410
      %v431 = vadd.f32 %v374, %v410
      %v432 = vadd.f32 %v375, %v410
      %v433 = vadd.f32 %v376, %v410
      %v434 = vadd.f32 %v377, %v410
      %v435 = vadd.f32 %v378, %v410
      %v436 = vadd.f32 %v379, %v410
      %v437 = vadd.f32 %v380, %v410
      %v438 = vadd.f32 %v381, %v410
      %v439 = vadd.f32 %v382, %v410
      %v440 = vadd.f32 %v383, %v410
      %v441 = vadd.f32 %v384, %v410
      %v442 = vadd.f32 %v385, %v410
      %v443 = vadd.f32 %v386, %v410
      %v444 = vadd.f32 %v387, %v410
      %v445 = vadd.f32 %v388, %v410
      %v446 = vadd.f32 %v389, %v410
      %v447 = vadd.f32 %v390, %v410
      %v448 = vadd.f32 %v391, %v410
      %v449 = vadd.f32 %v392, %v410
      %v450 = vadd.f32 %v393, %v410
      %v451 = vadd.f32 %v394, %v410
      %v452 = vadd.f32 %v395, %v410
      %v453 = vadd.f32 %v396, %v410
      %v454 = vadd.f32 %v397, %v410
      %v455 = vadd.f32 %v398, %v410
      %v456 = vadd.f32 %v399, %v410
      %v457 = vadd.f32 %v400, %v410
      %v458 = vadd.f32 %v401, %v410
      %v459 = vadd.f32 %v402, %v410
      %v460 = vadd.f32 %v403, %v410
      %v461 = vadd.f32 %v404, %v410
      %v462 = vadd.f32 %v405, %v410
      %v463 = vadd.f32 %v406, %v410
      %v464 = vadd.f32 %v407, %v410
      %v465 = vadd.f32 %v408, %v410
      %v466 = vsel %vm346, %v412, 0.0
      %v467 = vsel %vm347, %v413, 0.0
      %v468 = vsel %vm348, %v414, 0.0
      %v469 = vsel %vm349, %v415, 0.0
      %v470 = vsel %vm350, %v416, 0.0
      %v471 = vsel %vm351, %v417, 0.0
      %v472 = vsel %vm349, %v418, 0.0
      %v473 = vsel %vm350, %v419, 0.0
      %v474 = vsel %vm351, %v420, 0.0
      %v475 = vsel %vm349, %v421, 0.0
      %v476 = vsel %vm350, %v422, 0.0
      %v477 = vsel %vm351, %v423, 0.0
      %v478 = vsel %vm349, %v424, 0.0
      %v479 = vsel %vm350, %v425, 0.0
      %v480 = vsel %vm351, %v426, 0.0
      %v481 = vsel %vm349, %v427, 0.0
      %v482 = vsel %vm350, %v428, 0.0
      %v483 = vsel %vm351, %v429, 0.0
      %v484 = vsel %vm349, %v430, 0.0
      %v485 = vsel %vm350, %v431, 0.0
      %v486 = vsel %vm351, %v432, 0.0
      %v487 = vsel %vm349, %v433, 0.0
      %v488 = vsel %vm350, %v434, 0.0
      %v489 = vsel %vm351, %v435, 0.0
      %v490 = vsel %vm349, %v436, 0.0
      %v491 = vsel %vm350, %v437, 0.0
      %v492 = vsel %vm351, %v438, 0.0
      %v493 = vsel %vm349, %v439, 0.0
      %v494 = vsel %vm350, %v440, 0.0
      %v495 = vsel %vm351, %v441, 0.0
      %v496 = vsel %vm349, %v442, 0.0
      %v497 = vsel %vm350, %v443, 0.0
      %v498 = vsel %vm351, %v444, 0.0
      %v499 = vsel %vm349, %v445, 0.0
      %v500 = vsel %vm350, %v446, 0.0
      %v501 = vsel %vm351, %v447, 0.0
      %v502 = vsel %vm349, %v448, 0.0
      %v503 = vsel %vm350, %v449, 0.0
      %v504 = vsel %vm351, %v450, 0.0
      %v505 = vsel %vm349, %v451, 0.0
      %v506 = vsel %vm350, %v452, 0.0
      %v507 = vsel %vm351, %v453, 0.0
      %v508 = vsel %vm349, %v454, 0.0
      %v509 = vsel %vm350, %v455, 0.0
      %v510 = vsel %vm351, %v456, 0.0
      %v511 = vsel %vm349, %v457, 0.0
      %v512 = vsel %vm350, %v458, 0.0
      %v513 = vsel %vm351, %v459, 0.0
      %v514 = vsel %vm349, %v460, 0.0
      %v515 = vsel %vm350, %v461, 0.0
      %v516 = vsel %vm351, %v462, 0.0
      %v517 = vsel %vm346, %v463, 0.0
      %v518 = vsel %vm347, %v464, 0.0
      %v519 = vsel %vm348, %v465, 0.0
      %v520 = vpack.c.bf16 %v466, %v466
      %v521 = vpack.c.bf16 %v467, %v467
      %v522 = vpack.c.bf16 %v468, %v468
      %v523 = vpack.c.bf16 %v469, %v469
      %v524 = vpack.c.bf16 %v470, %v470
      %v525 = vpack.c.bf16 %v471, %v471
      %v526 = vpack.c.bf16 %v472, %v472
      %v527 = vpack.c.bf16 %v473, %v473
      %v528 = vpack.c.bf16 %v474, %v474
      %v529 = vpack.c.bf16 %v475, %v475
      %v530 = vpack.c.bf16 %v476, %v476
      %v531 = vpack.c.bf16 %v477, %v477
      %v532 = vpack.c.bf16 %v478, %v478
      %v533 = vpack.c.bf16 %v479, %v479
      %v534 = vpack.c.bf16 %v480, %v480
      %v535 = vpack.c.bf16 %v481, %v481
      %v536 = vpack.c.bf16 %v482, %v482
      %v537 = vpack.c.bf16 %v483, %v483
      %v538 = vpack.c.bf16 %v484, %v484
      %v539 = vpack.c.bf16 %v485, %v485
      %v540 = vpack.c.bf16 %v486, %v486
      %v541 = vpack.c.bf16 %v487, %v487
      %v542 = vpack.c.bf16 %v488, %v488
      %v543 = vpack.c.bf16 %v489, %v489
      %v544 = vpack.c.bf16 %v490, %v490
      %v545 = vpack.c.bf16 %v491, %v491
      %v546 = vpack.c.bf16 %v492, %v492
      %v547 = vpack.c.bf16 %v493, %v493
      %v548 = vpack.c.bf16 %v494, %v494
      %v549 = vpack.c.bf16 %v495, %v495
      %v550 = vpack.c.bf16 %v496, %v496
      %v551 = vpack.c.bf16 %v497, %v497
      %v552 = vpack.c.bf16 %v498, %v498
      %v553 = vpack.c.bf16 %v499, %v499
      %v554 = vpack.c.bf16 %v500, %v500
      %v555 = vpack.c.bf16 %v501, %v501
      %v556 = vpack.c.bf16 %v502, %v502
      %v557 = vpack.c.bf16 %v503, %v503
      %v558 = vpack.c.bf16 %v504, %v504
      %v559 = vpack.c.bf16 %v505, %v505
      %v560 = vpack.c.bf16 %v506, %v506
      %v561 = vpack.c.bf16 %v507, %v507
      %v562 = vpack.c.bf16 %v508, %v508
      %v563 = vpack.c.bf16 %v509, %v509
      %v564 = vpack.c.bf16 %v510, %v510
      %v565 = vpack.c.bf16 %v511, %v511
      %v566 = vpack.c.bf16 %v512, %v512
      %v567 = vpack.c.bf16 %v513, %v513
      %v568 = vpack.c.bf16 %v514, %v514
      %v569 = vpack.c.bf16 %v515, %v515
      %v570 = vpack.c.bf16 %v516, %v516
      %v571 = vpack.c.bf16 %v517, %v517
      %v572 = vpack.c.bf16 %v518, %v518
      %v573 = vpack.c.bf16 %v519, %v519
      %v574 = vld [vmem:[%s3] sm:$0xf]
      %v575 = vld [vmem:[%s3 + $0x4] sm:$0xf]
      %v576 = vld [vmem:[%s3 + $0x8] sm:$0xf]
      %v577 = vld [vmem:[%s3 + $0xc] sm:$0xf]
      %v578 = vld [vmem:[%s3 + $0x10] sm:$0xf]
      %v579 = vld [vmem:[%s3 + $0x14] sm:$0xf]
      %v580 = vld [vmem:[%s3 + $0x18] sm:$0xf]
      %v581 = vld [vmem:[%s3 + $0x1c] sm:$0xf]
      %v582 = vld [vmem:[%s3 + $0x20] sm:$0xf]
      %v583 = vld [vmem:[%s3 + $0x24] sm:$0xf]
      %v584 = vld [vmem:[%s3 + $0x28] sm:$0xf]
      %v585 = vld [vmem:[%s3 + $0x2c] sm:$0xf]
      %v586 = vld [vmem:[%s3 + $0x30] sm:$0xf]
      %v587 = vld [vmem:[%s3 + $0x34] sm:$0xf]
      %v588 = vld [vmem:[%s3 + $0x38] sm:$0xf]
      %v589 = vld [vmem:[%s3 + $0x3c] sm:$0xf]
      %vm590 = vsmask.f32 3328
      %vm591 = vsmask.f32 7440
      %vm592 = vmor %vm590, %vm591
      %v594 = vshrl.u32 %v520, 16
      %v596 = vrot.slane %v594, 4
      %v597 = vshll.u32 %v520, 16
      %v599 = vrot.slane %v597, 5
      %v600 = vor.u32 %v596, %v599
      %v601 = vrot.slane %v600, 4
      %v603 = vshll.u32 %v521, 16
      %v605 = vrot.slane %v603, 5
      %v606 = vsel %vm592, %v601, %v605
      %v607 = vshrl.u32 %v521, 16
      %v609 = vrot.slane %v607, 4
      %v610 = vor.u32 %v609, %v605
      %v611 = vrot.slane %v610, 4
      %v613 = vshll.u32 %v522, 16
      %v615 = vrot.slane %v613, 5
      %v616 = vsel %vm592, %v611, %v615
      %v618 = vshrl.u32 %v523, 16
      %v620 = vrot.slane %v618, 4
      %v621 = vshll.u32 %v523, 16
      %v623 = vrot.slane %v621, 5
      %v624 = vor.u32 %v620, %v623
      %v625 = vrot.slane %v624, 4
      %v627 = vshll.u32 %v524, 16
      %v629 = vrot.slane %v627, 5
      %v630 = vsel %vm592, %v625, %v629
      %v631 = vshrl.u32 %v524, 16
      %v633 = vrot.slane %v631, 4
      %v634 = vor.u32 %v633, %v629
      %v635 = vrot.slane %v634, 4
      %v637 = vshll.u32 %v525, 16
      %v639 = vrot.slane %v637, 5
      %v640 = vsel %vm592, %v635, %v639
      %v642 = vshrl.u32 %v526, 16
      %v644 = vrot.slane %v642, 4
      %v645 = vshll.u32 %v526, 16
      %v647 = vrot.slane %v645, 5
      %v648 = vor.u32 %v644, %v647
      %v649 = vrot.slane %v648, 4
      %v651 = vshll.u32 %v527, 16
      %v653 = vrot.slane %v651, 5
      %v654 = vsel %vm592, %v649, %v653
      %v655 = vshrl.u32 %v527, 16
      %v657 = vrot.slane %v655, 4
      %v658 = vor.u32 %v657, %v653
      %v659 = vrot.slane %v658, 4
      %v661 = vshll.u32 %v528, 16
      %v663 = vrot.slane %v661, 5
      %v664 = vsel %vm592, %v659, %v663
      %v666 = vshrl.u32 %v529, 16
      %v668 = vrot.slane %v666, 4
      %v669 = vshll.u32 %v529, 16
      %v671 = vrot.slane %v669, 5
      %v672 = vor.u32 %v668, %v671
      %v673 = vrot.slane %v672, 4
      %v675 = vshll.u32 %v530, 16
      %v677 = vrot.slane %v675, 5
      %v678 = vsel %vm592, %v673, %v677
      %v679 = vshrl.u32 %v530, 16
      %v681 = vrot.slane %v679, 4
      %v682 = vor.u32 %v681, %v677
      %v683 = vrot.slane %v682, 4
      %v685 = vshll.u32 %v531, 16
      %v687 = vrot.slane %v685, 5
      %v688 = vsel %vm592, %v683, %v687
      %v690 = vshrl.u32 %v532, 16
      %v692 = vrot.slane %v690, 4
      %v693 = vshll.u32 %v532, 16
      %v695 = vrot.slane %v693, 5
      %v696 = vor.u32 %v692, %v695
      %v697 = vrot.slane %v696, 4
      %v699 = vshll.u32 %v533, 16
      %v701 = vrot.slane %v699, 5
      %v702 = vsel %vm592, %v697, %v701
      %v703 = vshrl.u32 %v533, 16
      %v705 = vrot.slane %v703, 4
      %v706 = vor.u32 %v705, %v701
      %v707 = vrot.slane %v706, 4
      %v709 = vshll.u32 %v534, 16
      %v711 = vrot.slane %v709, 5
      %v712 = vsel %vm592, %v707, %v711
      %v714 = vshrl.u32 %v535, 16
      %v716 = vrot.slane %v714, 4
      %v717 = vshll.u32 %v535, 16
      %v719 = vrot.slane %v717, 5
      %v720 = vor.u32 %v716, %v719
      %v721 = vrot.slane %v720, 4
      %v723 = vshll.u32 %v536, 16
      %v725 = vrot.slane %v723, 5
      %v726 = vsel %vm592, %v721, %v725
      %v727 = vshrl.u32 %v536, 16
      %v729 = vrot.slane %v727, 4
      %v730 = vor.u32 %v729, %v725
      %v731 = vrot.slane %v730, 4
      %v733 = vshll.u32 %v537, 16
      %v735 = vrot.slane %v733, 5
      %v736 = vsel %vm592, %v731, %v735
      %v738 = vshrl.u32 %v538, 16
      %v740 = vrot.slane %v738, 4
      %v741 = vshll.u32 %v538, 16
      %v743 = vrot.slane %v741, 5
      %v744 = vor.u32 %v740, %v743
      %v745 = vrot.slane %v744, 4
      %v747 = vshll.u32 %v539, 16
      %v749 = vrot.slane %v747, 5
      %v750 = vsel %vm592, %v745, %v749
      %v751 = vshrl.u32 %v539, 16
      %v753 = vrot.slane %v751, 4
      %v754 = vor.u32 %v753, %v749
      %v755 = vrot.slane %v754, 4
      %v757 = vshll.u32 %v540, 16
      %v759 = vrot.slane %v757, 5
      %v760 = vsel %vm592, %v755, %v759
      %v762 = vshrl.u32 %v541, 16
      %v764 = vrot.slane %v762, 4
      %v765 = vshll.u32 %v541, 16
      %v767 = vrot.slane %v765, 5
      %v768 = vor.u32 %v764, %v767
      %v769 = vrot.slane %v768, 4
      %v771 = vshll.u32 %v542, 16
      %v773 = vrot.slane %v771, 5
      %v774 = vsel %vm592, %v769, %v773
      %v775 = vshrl.u32 %v542, 16
      %v777 = vrot.slane %v775, 4
      %v778 = vor.u32 %v777, %v773
      %v779 = vrot.slane %v778, 4
      %v781 = vshll.u32 %v543, 16
      %v783 = vrot.slane %v781, 5
      %v784 = vsel %vm592, %v779, %v783
      %v786 = vshrl.u32 %v544, 16
      %v788 = vrot.slane %v786, 4
      %v789 = vshll.u32 %v544, 16
      %v791 = vrot.slane %v789, 5
      %v792 = vor.u32 %v788, %v791
      %v793 = vrot.slane %v792, 4
      %v795 = vshll.u32 %v545, 16
      %v797 = vrot.slane %v795, 5
      %v798 = vsel %vm592, %v793, %v797
      %v799 = vshrl.u32 %v545, 16
      %v801 = vrot.slane %v799, 4
      %v802 = vor.u32 %v801, %v797
      %v803 = vrot.slane %v802, 4
      %v805 = vshll.u32 %v546, 16
      %v807 = vrot.slane %v805, 5
      %v808 = vsel %vm592, %v803, %v807
      %v810 = vshrl.u32 %v547, 16
      %v812 = vrot.slane %v810, 4
      %v813 = vshll.u32 %v547, 16
      %v815 = vrot.slane %v813, 5
      %v816 = vor.u32 %v812, %v815
      %v817 = vrot.slane %v816, 4
      %v819 = vshll.u32 %v548, 16
      %v821 = vrot.slane %v819, 5
      %v822 = vsel %vm592, %v817, %v821
      %v823 = vshrl.u32 %v548, 16
      %v825 = vrot.slane %v823, 4
      %v826 = vor.u32 %v825, %v821
      %v827 = vrot.slane %v826, 4
      %v829 = vshll.u32 %v549, 16
      %v831 = vrot.slane %v829, 5
      %v832 = vsel %vm592, %v827, %v831
      %v834 = vshrl.u32 %v550, 16
      %v836 = vrot.slane %v834, 4
      %v837 = vshll.u32 %v550, 16
      %v839 = vrot.slane %v837, 5
      %v840 = vor.u32 %v836, %v839
      %v841 = vrot.slane %v840, 4
      %v843 = vshll.u32 %v551, 16
      %v845 = vrot.slane %v843, 5
      %v846 = vsel %vm592, %v841, %v845
      %v847 = vshrl.u32 %v551, 16
      %v849 = vrot.slane %v847, 4
      %v850 = vor.u32 %v849, %v845
      %v851 = vrot.slane %v850, 4
      %v853 = vshll.u32 %v552, 16
      %v855 = vrot.slane %v853, 5
      %v856 = vsel %vm592, %v851, %v855
      %v858 = vshrl.u32 %v553, 16
      %v860 = vrot.slane %v858, 4
      %v861 = vshll.u32 %v553, 16
      %v863 = vrot.slane %v861, 5
      %v864 = vor.u32 %v860, %v863
      %v865 = vrot.slane %v864, 4
      %v867 = vshll.u32 %v554, 16
      %v869 = vrot.slane %v867, 5
      %v870 = vsel %vm592, %v865, %v869
      %v871 = vshrl.u32 %v554, 16
      %v873 = vrot.slane %v871, 4
      %v874 = vor.u32 %v873, %v869
      %v875 = vrot.slane %v874, 4
      %v877 = vshll.u32 %v555, 16
      %v879 = vrot.slane %v877, 5
      %v880 = vsel %vm592, %v875, %v879
      %v882 = vshrl.u32 %v556, 16
      %v884 = vrot.slane %v882, 4
      %v885 = vshll.u32 %v556, 16
      %v887 = vrot.slane %v885, 5
      %v888 = vor.u32 %v884, %v887
      %v889 = vrot.slane %v888, 4
      %v891 = vshll.u32 %v557, 16
      %v893 = vrot.slane %v891, 5
      %v894 = vsel %vm592, %v889, %v893
      %v895 = vshrl.u32 %v557, 16
      %v897 = vrot.slane %v895, 4
      %v898 = vor.u32 %v897, %v893
      %v899 = vrot.slane %v898, 4
      %v901 = vshll.u32 %v558, 16
      %v903 = vrot.slane %v901, 5
      %v904 = vsel %vm592, %v899, %v903
      %v906 = vshrl.u32 %v559, 16
      %v908 = vrot.slane %v906, 4
      %v909 = vshll.u32 %v559, 16
      %v911 = vrot.slane %v909, 5
      %v912 = vor.u32 %v908, %v911
      %v913 = vrot.slane %v912, 4
      %v915 = vshll.u32 %v560, 16
      %v917 = vrot.slane %v915, 5
      %v918 = vsel %vm592, %v913, %v917
      %v919 = vshrl.u32 %v560, 16
      %v921 = vrot.slane %v919, 4
      %v922 = vor.u32 %v921, %v917
      %v923 = vrot.slane %v922, 4
      %v925 = vshll.u32 %v561, 16
      %v927 = vrot.slane %v925, 5
      %v928 = vsel %vm592, %v923, %v927
      %v930 = vshrl.u32 %v562, 16
      %v932 = vrot.slane %v930, 4
      %v933 = vshll.u32 %v562, 16
      %v935 = vrot.slane %v933, 5
      %v936 = vor.u32 %v932, %v935
      %v937 = vrot.slane %v936, 4
      %v939 = vshll.u32 %v563, 16
      %v941 = vrot.slane %v939, 5
      %v942 = vsel %vm592, %v937, %v941
      %v943 = vshrl.u32 %v563, 16
      %v945 = vrot.slane %v943, 4
      %v946 = vor.u32 %v945, %v941
      %v947 = vrot.slane %v946, 4
      %v949 = vshll.u32 %v564, 16
      %v951 = vrot.slane %v949, 5
      %v952 = vsel %vm592, %v947, %v951
      %v954 = vshrl.u32 %v565, 16
      %v956 = vrot.slane %v954, 4
      %v957 = vshll.u32 %v565, 16
      %v959 = vrot.slane %v957, 5
      %v960 = vor.u32 %v956, %v959
      %v961 = vrot.slane %v960, 4
      %v963 = vshll.u32 %v566, 16
      %v965 = vrot.slane %v963, 5
      %v966 = vsel %vm592, %v961, %v965
      %v967 = vshrl.u32 %v566, 16
      %v969 = vrot.slane %v967, 4
      %v970 = vor.u32 %v969, %v965
      %v971 = vrot.slane %v970, 4
      %v973 = vshll.u32 %v567, 16
      %v975 = vrot.slane %v973, 5
      %v976 = vsel %vm592, %v971, %v975
      %s977 = scalar_lea.vmem %s3, 64
      %v978 = vld [vmem:[%s977] sm:$0xf]
      %v979 = vld [vmem:[%s977 + $0x4] sm:$0xf]
      %v980 = vld [vmem:[%s977 + $0x8] sm:$0xf]
      %v981 = vld [vmem:[%s977 + $0xc] sm:$0xf]
      %v982 = vld [vmem:[%s977 + $0x10] sm:$0xf]
      %v983 = vld [vmem:[%s977 + $0x14] sm:$0xf]
      %v984 = vld [vmem:[%s977 + $0x18] sm:$0xf]
      %v985 = vld [vmem:[%s977 + $0x1c] sm:$0xf]
      %v986 = vld [vmem:[%s977 + $0x20] sm:$0xf]
      %v987 = vld [vmem:[%s977 + $0x24] sm:$0xf]
      %v988 = vld [vmem:[%s977 + $0x28] sm:$0xf]
      %v989 = vld [vmem:[%s977 + $0x2c] sm:$0xf]
      %v990 = vld [vmem:[%s977 + $0x30] sm:$0xf]
      %v991 = vld [vmem:[%s977 + $0x34] sm:$0xf]
      %v992 = vld [vmem:[%s977 + $0x38] sm:$0xf]
      %v993 = vld [vmem:[%s977 + $0x3c] sm:$0xf]
      %v994 = vunpack.c.l.b16 %v606
      %v995 = vunpack.c.l.b16 %v616
      %v996 = vunpack.c.l.b16 %v630
      %v997 = vunpack.c.l.b16 %v640
      %v998 = vunpack.c.l.b16 %v654
      %v999 = vunpack.c.l.b16 %v664
      %v1000 = vunpack.c.l.b16 %v678
      %v1001 = vunpack.c.l.b16 %v688
      %v1002 = vunpack.c.l.b16 %v702
      %v1003 = vunpack.c.l.b16 %v712
      %v1004 = vunpack.c.l.b16 %v726
      %v1005 = vunpack.c.l.b16 %v736
      %v1006 = vunpack.c.l.b16 %v750
      %v1007 = vunpack.c.l.b16 %v760
      %v1008 = vunpack.c.l.b16 %v774
      %v1009 = vunpack.c.l.b16 %v784
      %v1010 = vunpack.c.l.b16 %v798
      %v1011 = vunpack.c.l.b16 %v808
      %v1012 = vunpack.c.l.b16 %v822
      %v1013 = vunpack.c.l.b16 %v832
      %v1014 = vunpack.c.l.b16 %v846
      %v1015 = vunpack.c.l.b16 %v856
      %v1016 = vunpack.c.l.b16 %v870
      %v1017 = vunpack.c.l.b16 %v880
      %v1018 = vunpack.c.l.b16 %v894
      %v1019 = vunpack.c.l.b16 %v904
      %v1020 = vunpack.c.l.b16 %v918
      %v1021 = vunpack.c.l.b16 %v928
      %v1022 = vunpack.c.l.b16 %v942
      %v1023 = vunpack.c.l.b16 %v952
      %v1024 = vunpack.c.l.b16 %v966
      %v1025 = vunpack.c.l.b16 %v976
      %v1026 = vpack.c.b16 %v995, %v994
      %v1027 = vpack.c.b16 %v997, %v996
      %v1028 = vpack.c.b16 %v999, %v998
      %v1029 = vpack.c.b16 %v1001, %v1000
      %v1030 = vpack.c.b16 %v1003, %v1002
      %v1031 = vpack.c.b16 %v1005, %v1004
      %v1032 = vpack.c.b16 %v1007, %v1006
      %v1033 = vpack.c.b16 %v1009, %v1008
      %v1034 = vpack.c.b16 %v1011, %v1010
      %v1035 = vpack.c.b16 %v1013, %v1012
      %v1036 = vpack.c.b16 %v1015, %v1014
      %v1037 = vpack.c.b16 %v1017, %v1016
      %v1038 = vpack.c.b16 %v1019, %v1018
      %v1039 = vpack.c.b16 %v1021, %v1020
      %v1040 = vpack.c.b16 %v1023, %v1022
      %v1041 = vpack.c.b16 %v1025, %v1024
      %v1074 = vunpack.c.l.b16 %v978
      %v1075 = vunpack.c.l.b16 %v979
      %v1076 = vunpack.c.l.b16 %v980
      %v1077 = vunpack.c.l.b16 %v981
      %v1078 = vunpack.c.l.b16 %v982
      %v1079 = vunpack.c.l.b16 %v983
      %v1080 = vunpack.c.l.b16 %v984
      %v1081 = vunpack.c.l.b16 %v985
      %v1082 = vunpack.c.l.b16 %v986
      %v1083 = vunpack.c.l.b16 %v987
      %v1084 = vunpack.c.l.b16 %v988
      %v1085 = vunpack.c.l.b16 %v989
      %v1086 = vunpack.c.l.b16 %v990
      %v1087 = vunpack.c.l.b16 %v991
      %v1088 = vunpack.c.l.b16 %v992
      %v1089 = vunpack.c.l.b16 %v993
      %v1090 = vpack.c.b16 %v1075, %v1074
      %v1091 = vpack.c.b16 %v1077, %v1076
      %v1092 = vpack.c.b16 %v1079, %v1078
      %v1093 = vpack.c.b16 %v1081, %v1080
      %v1094 = vpack.c.b16 %v1083, %v1082
      %v1095 = vpack.c.b16 %v1085, %v1084
      %v1096 = vpack.c.b16 %v1087, %v1086
      %v1097 = vpack.c.b16 %v1089, %v1088
      %1106 = vmatpush.bf16.msra.mxu0 %v1097
      %1107 = vmatpush.bf16.msra.mxu0 %v1096
      %1108 = vmatpush.bf16.msra.mxu0 %v1095
      %1109 = vmatpush.bf16.msra.mxu0 %v1094
      %1110 = vmatpush.bf16.msra.mxu0 %v1093
      %1111 = vmatpush.bf16.msra.mxu0 %v1092
      %1112 = vmatpush.bf16.msra.mxu0 %v1091
      %1113 = vmatpush.bf16.msra.mxu0 %v1090
      %1114 = vmatmul.bf16.gmra.mxu0 %v1026
      %v1115 = vpop.f32.mrf.mxu0
      %v1116 = vadd.f32 0.0, %v1115
      %v1117 = vpop.f32.mrf.mxu0
      %v1118 = vadd.f32 0.0, %v1117
      %1119 = vmatmul.bf16.gmra.mxu0 %v1027
      %v1120 = vpop.f32.mrf.mxu0
      %v1121 = vadd.f32 0.0, %v1120
      %v1122 = vpop.f32.mrf.mxu0
      %v1123 = vadd.f32 0.0, %v1122
      %1124 = vmatmul.bf16.gmra.mxu0 %v1028
      %v1125 = vpop.f32.mrf.mxu0
      %v1126 = vadd.f32 0.0, %v1125
      %v1127 = vpop.f32.mrf.mxu0
      %v1128 = vadd.f32 0.0, %v1127
      %1129 = vmatmul.bf16.gmra.mxu0 %v1029
      %v1130 = vpop.f32.mrf.mxu0
      %v1131 = vadd.f32 0.0, %v1130
      %v1132 = vpop.f32.mrf.mxu0
      %v1133 = vadd.f32 0.0, %v1132
      %1134 = vmatmul.bf16.gmra.mxu0 %v1030
      %v1135 = vpop.f32.mrf.mxu0
      %v1136 = vadd.f32 0.0, %v1135
      %v1137 = vpop.f32.mrf.mxu0
      %v1138 = vadd.f32 0.0, %v1137
      %1139 = vmatmul.bf16.gmra.mxu0 %v1031
      %v1140 = vpop.f32.mrf.mxu0
      %v1141 = vadd.f32 0.0, %v1140
      %v1142 = vpop.f32.mrf.mxu0
      %v1143 = vadd.f32 0.0, %v1142
      %1144 = vmatmul.bf16.gmra.mxu0 %v1032
      %v1145 = vpop.f32.mrf.mxu0
      %v1146 = vadd.f32 0.0, %v1145
      %v1147 = vpop.f32.mrf.mxu0
      %v1148 = vadd.f32 0.0, %v1147
      %1149 = vmatmul.bf16.gmra.mxu0 %v1033
      %v1150 = vpop.f32.mrf.mxu0
      %v1151 = vadd.f32 0.0, %v1150
      %v1152 = vpop.f32.mrf.mxu0
      %v1153 = vadd.f32 0.0, %v1152
      %1154 = vmatmul.bf16.gmra.mxu0 %v1034
      %v1155 = vpop.f32.mrf.mxu0
      %v1156 = vadd.f32 0.0, %v1155
      %v1157 = vpop.f32.mrf.mxu0
      %v1158 = vadd.f32 0.0, %v1157
      %1159 = vmatmul.bf16.gmra.mxu0 %v1035
      %v1160 = vpop.f32.mrf.mxu0
      %v1161 = vadd.f32 0.0, %v1160
      %v1162 = vpop.f32.mrf.mxu0
      %v1163 = vadd.f32 0.0, %v1162
      %1164 = vmatmul.bf16.gmra.mxu0 %v1036
      %v1165 = vpop.f32.mrf.mxu0
      %v1166 = vadd.f32 0.0, %v1165
      %v1167 = vpop.f32.mrf.mxu0
      %v1168 = vadd.f32 0.0, %v1167
      %1169 = vmatmul.bf16.gmra.mxu0 %v1037
      %v1170 = vpop.f32.mrf.mxu0
      %v1171 = vadd.f32 0.0, %v1170
      %v1172 = vpop.f32.mrf.mxu0
      %v1173 = vadd.f32 0.0, %v1172
      %1174 = vmatmul.bf16.gmra.mxu0 %v1038
      %v1175 = vpop.f32.mrf.mxu0
      %v1176 = vadd.f32 0.0, %v1175
      %v1177 = vpop.f32.mrf.mxu0
      %v1178 = vadd.f32 0.0, %v1177
      %1179 = vmatmul.bf16.gmra.mxu0 %v1039
      %v1180 = vpop.f32.mrf.mxu0
      %v1181 = vadd.f32 0.0, %v1180
      %v1182 = vpop.f32.mrf.mxu0
      %v1183 = vadd.f32 0.0, %v1182
      %1184 = vmatmul.bf16.gmra.mxu0 %v1040
      %v1185 = vpop.f32.mrf.mxu0
      %v1186 = vadd.f32 0.0, %v1185
      %v1187 = vpop.f32.mrf.mxu0
      %v1188 = vadd.f32 0.0, %v1187
      %1189 = vmatmul.bf16.gmra.mxu0 %v1041
      %v1190 = vpop.f32.mrf.mxu0
      %v1191 = vadd.f32 0.0, %v1190
      %v1192 = vpop.f32.mrf.mxu0
      %v1193 = vadd.f32 0.0, %v1192
      %1194 = vdwg.mxu0
      %v1227 = vunpack.c.l.b16 %v520
      %v1228 = vunpack.c.l.b16 %v521
      %v1229 = vunpack.c.l.b16 %v523
      %v1230 = vunpack.c.l.b16 %v524
      %v1231 = vunpack.c.l.b16 %v526
      %v1232 = vunpack.c.l.b16 %v527
      %v1233 = vunpack.c.l.b16 %v529
      %v1234 = vunpack.c.l.b16 %v530
      %v1235 = vunpack.c.l.b16 %v532
      %v1236 = vunpack.c.l.b16 %v533
      %v1237 = vunpack.c.l.b16 %v535
      %v1238 = vunpack.c.l.b16 %v536
      %v1239 = vunpack.c.l.b16 %v538
      %v1240 = vunpack.c.l.b16 %v539
      %v1241 = vunpack.c.l.b16 %v541
      %v1242 = vunpack.c.l.b16 %v542
      %v1243 = vunpack.c.l.b16 %v544
      %v1244 = vunpack.c.l.b16 %v545
      %v1245 = vunpack.c.l.b16 %v547
      %v1246 = vunpack.c.l.b16 %v548
      %v1247 = vunpack.c.l.b16 %v550
      %v1248 = vunpack.c.l.b16 %v551
      %v1249 = vunpack.c.l.b16 %v553
      %v1250 = vunpack.c.l.b16 %v554
      %v1251 = vunpack.c.l.b16 %v556
      %v1252 = vunpack.c.l.b16 %v557
      %v1253 = vunpack.c.l.b16 %v559
      %v1254 = vunpack.c.l.b16 %v560
      %v1255 = vunpack.c.l.b16 %v562
      %v1256 = vunpack.c.l.b16 %v563
      %v1257 = vunpack.c.l.b16 %v565
      %v1258 = vunpack.c.l.b16 %v566
      %v1259 = vpack.c.b16 %v1228, %v1227
      %v1260 = vpack.c.b16 %v1230, %v1229
      %v1261 = vpack.c.b16 %v1232, %v1231
      %v1262 = vpack.c.b16 %v1234, %v1233
      %v1263 = vpack.c.b16 %v1236, %v1235
      %v1264 = vpack.c.b16 %v1238, %v1237
      %v1265 = vpack.c.b16 %v1240, %v1239
      %v1266 = vpack.c.b16 %v1242, %v1241
      %v1267 = vpack.c.b16 %v1244, %v1243
      %v1268 = vpack.c.b16 %v1246, %v1245
      %v1269 = vpack.c.b16 %v1248, %v1247
      %v1270 = vpack.c.b16 %v1250, %v1249
      %v1271 = vpack.c.b16 %v1252, %v1251
      %v1272 = vpack.c.b16 %v1254, %v1253
      %v1273 = vpack.c.b16 %v1256, %v1255
      %v1274 = vpack.c.b16 %v1258, %v1257
      %v1307 = vunpack.c.l.b16 %v574
      %v1308 = vunpack.c.l.b16 %v575
      %v1309 = vunpack.c.l.b16 %v576
      %v1310 = vunpack.c.l.b16 %v577
      %v1311 = vunpack.c.l.b16 %v578
      %v1312 = vunpack.c.l.b16 %v579
      %v1313 = vunpack.c.l.b16 %v580
      %v1314 = vunpack.c.l.b16 %v581
      %v1315 = vunpack.c.l.b16 %v582
      %v1316 = vunpack.c.l.b16 %v583
      %v1317 = vunpack.c.l.b16 %v584
      %v1318 = vunpack.c.l.b16 %v585
      %v1319 = vunpack.c.l.b16 %v586
      %v1320 = vunpack.c.l.b16 %v587
      %v1321 = vunpack.c.l.b16 %v588
      %v1322 = vunpack.c.l.b16 %v589
      %v1323 = vpack.c.b16 %v1308, %v1307
      %v1324 = vpack.c.b16 %v1310, %v1309
      %v1325 = vpack.c.b16 %v1312, %v1311
      %v1326 = vpack.c.b16 %v1314, %v1313
      %v1327 = vpack.c.b16 %v1316, %v1315
      %v1328 = vpack.c.b16 %v1318, %v1317
      %v1329 = vpack.c.b16 %v1320, %v1319
      %v1330 = vpack.c.b16 %v1322, %v1321
      %1339 = vmatpush.bf16.msra.mxu0 %v1330
      %1340 = vmatpush.bf16.msra.mxu0 %v1329
      %1341 = vmatpush.bf16.msra.mxu0 %v1328
      %1342 = vmatpush.bf16.msra.mxu0 %v1327
      %1343 = vmatpush.bf16.msra.mxu0 %v1326
      %1344 = vmatpush.bf16.msra.mxu0 %v1325
      %1345 = vmatpush.bf16.msra.mxu0 %v1324
      %1346 = vmatpush.bf16.msra.mxu0 %v1323
      %1347 = vmatmul.bf16.gmra.mxu0 %v1259
      %v1348 = vpop.f32.mrf.mxu0
      %v1349 = vadd.f32 %v1116, %v1348
      %v1350 = vpop.f32.mrf.mxu0
      %v1351 = vadd.f32 %v1118, %v1350
      %1352 = vmatmul.bf16.gmra.mxu0 %v1260
      %v1353 = vpop.f32.mrf.mxu0
      %v1354 = vadd.f32 %v1121, %v1353
      %v1355 = vpop.f32.mrf.mxu0
      %v1356 = vadd.f32 %v1123, %v1355
      %1357 = vmatmul.bf16.gmra.mxu0 %v1261
      %v1358 = vpop.f32.mrf.mxu0
      %v1359 = vadd.f32 %v1126, %v1358
      %v1360 = vpop.f32.mrf.mxu0
      %v1361 = vadd.f32 %v1128, %v1360
      %1362 = vmatmul.bf16.gmra.mxu0 %v1262
      %v1363 = vpop.f32.mrf.mxu0
      %v1364 = vadd.f32 %v1131, %v1363
      %v1365 = vpop.f32.mrf.mxu0
      %v1366 = vadd.f32 %v1133, %v1365
      %1367 = vmatmul.bf16.gmra.mxu0 %v1263
      %v1368 = vpop.f32.mrf.mxu0
      %v1369 = vadd.f32 %v1136, %v1368
      %v1370 = vpop.f32.mrf.mxu0
      %v1371 = vadd.f32 %v1138, %v1370
      %1372 = vmatmul.bf16.gmra.mxu0 %v1264
      %v1373 = vpop.f32.mrf.mxu0
      %v1374 = vadd.f32 %v1141, %v1373
      %v1375 = vpop.f32.mrf.mxu0
      %v1376 = vadd.f32 %v1143, %v1375
      %1377 = vmatmul.bf16.gmra.mxu0 %v1265
      %v1378 = vpop.f32.mrf.mxu0
      %v1379 = vadd.f32 %v1146, %v1378
      %v1380 = vpop.f32.mrf.mxu0
      %v1381 = vadd.f32 %v1148, %v1380
      %1382 = vmatmul.bf16.gmra.mxu0 %v1266
      %v1383 = vpop.f32.mrf.mxu0
      %v1384 = vadd.f32 %v1151, %v1383
      %v1385 = vpop.f32.mrf.mxu0
      %v1386 = vadd.f32 %v1153, %v1385
      %1387 = vmatmul.bf16.gmra.mxu0 %v1267
      %v1388 = vpop.f32.mrf.mxu0
      %v1389 = vadd.f32 %v1156, %v1388
      %v1390 = vpop.f32.mrf.mxu0
      %v1391 = vadd.f32 %v1158, %v1390
      %1392 = vmatmul.bf16.gmra.mxu0 %v1268
      %v1393 = vpop.f32.mrf.mxu0
      %v1394 = vadd.f32 %v1161, %v1393
      %v1395 = vpop.f32.mrf.mxu0
      %v1396 = vadd.f32 %v1163, %v1395
      %1397 = vmatmul.bf16.gmra.mxu0 %v1269
      %v1398 = vpop.f32.mrf.mxu0
      %v1399 = vadd.f32 %v1166, %v1398
      %v1400 = vpop.f32.mrf.mxu0
      %v1401 = vadd.f32 %v1168, %v1400
      %1402 = vmatmul.bf16.gmra.mxu0 %v1270
      %v1403 = vpop.f32.mrf.mxu0
      %v1404 = vadd.f32 %v1171, %v1403
      %v1405 = vpop.f32.mrf.mxu0
      %v1406 = vadd.f32 %v1173, %v1405
      %1407 = vmatmul.bf16.gmra.mxu0 %v1271
      %v1408 = vpop.f32.mrf.mxu0
      %v1409 = vadd.f32 %v1176, %v1408
      %v1410 = vpop.f32.mrf.mxu0
      %v1411 = vadd.f32 %v1178, %v1410
      %1412 = vmatmul.bf16.gmra.mxu0 %v1272
      %v1413 = vpop.f32.mrf.mxu0
      %v1414 = vadd.f32 %v1181, %v1413
      %v1415 = vpop.f32.mrf.mxu0
      %v1416 = vadd.f32 %v1183, %v1415
      %1417 = vmatmul.bf16.gmra.mxu0 %v1273
      %v1418 = vpop.f32.mrf.mxu0
      %v1419 = vadd.f32 %v1186, %v1418
      %v1420 = vpop.f32.mrf.mxu0
      %v1421 = vadd.f32 %v1188, %v1420
      %1422 = vmatmul.bf16.gmra.mxu0 %v1274
      %v1423 = vpop.f32.mrf.mxu0
      %v1424 = vadd.f32 %v1191, %v1423
      %v1425 = vpop.f32.mrf.mxu0
      %v1426 = vadd.f32 %v1193, %v1425
      %1427 = vdwg.mxu0
      %vm1444 = vcmask 1042432
      %vm1445 = vcmask 1046532
      %vm1446 = vmor %vm1444, %vm1445
      %v1447 = vrot.slane %v520, 5
      %v1448 = vrot.slane %v1447, 4
      %v1449 = vrot.slane %v521, 5
      %v1450 = vsel %vm1446, %v1448, %v1449
      %v1451 = vrot.slane %v1449, 4
      %v1452 = vrot.slane %v522, 5
      %v1453 = vsel %vm1446, %v1451, %v1452
      %v1454 = vrot.slane %v523, 5
      %v1455 = vrot.slane %v1454, 4
      %v1456 = vrot.slane %v524, 5
      %v1457 = vsel %vm1446, %v1455, %v1456
      %v1458 = vrot.slane %v1456, 4
      %v1459 = vrot.slane %v525, 5
      %v1460 = vsel %vm1446, %v1458, %v1459
      %v1461 = vrot.slane %v526, 5
      %v1462 = vrot.slane %v1461, 4
      %v1463 = vrot.slane %v527, 5
      %v1464 = vsel %vm1446, %v1462, %v1463
      %v1465 = vrot.slane %v1463, 4
      %v1466 = vrot.slane %v528, 5
      %v1467 = vsel %vm1446, %v1465, %v1466
      %v1468 = vrot.slane %v529, 5
      %v1469 = vrot.slane %v1468, 4
      %v1470 = vrot.slane %v530, 5
      %v1471 = vsel %vm1446, %v1469, %v1470
      %v1472 = vrot.slane %v1470, 4
      %v1473 = vrot.slane %v531, 5
      %v1474 = vsel %vm1446, %v1472, %v1473
      %v1475 = vrot.slane %v532, 5
      %v1476 = vrot.slane %v1475, 4
      %v1477 = vrot.slane %v533, 5
      %v1478 = vsel %vm1446, %v1476, %v1477
      %v1479 = vrot.slane %v1477, 4
      %v1480 = vrot.slane %v534, 5
      %v1481 = vsel %vm1446, %v1479, %v1480
      %v1482 = vrot.slane %v535, 5
      %v1483 = vrot.slane %v1482, 4
      %v1484 = vrot.slane %v536, 5
      %v1485 = vsel %vm1446, %v1483, %v1484
      %v1486 = vrot.slane %v1484, 4
      %v1487 = vrot.slane %v537, 5
      %v1488 = vsel %vm1446, %v1486, %v1487
      %v1489 = vrot.slane %v538, 5
      %v1490 = vrot.slane %v1489, 4
      %v1491 = vrot.slane %v539, 5
      %v1492 = vsel %vm1446, %v1490, %v1491
      %v1493 = vrot.slane %v1491, 4
      %v1494 = vrot.slane %v540, 5
      %v1495 = vsel %vm1446, %v1493, %v1494
      %v1496 = vrot.slane %v541, 5
      %v1497 = vrot.slane %v1496, 4
      %v1498 = vrot.slane %v542, 5
      %v1499 = vsel %vm1446, %v1497, %v1498
      %v1500 = vrot.slane %v1498, 4
      %v1501 = vrot.slane %v543, 5
      %v1502 = vsel %vm1446, %v1500, %v1501
      %v1503 = vrot.slane %v544, 5
      %v1504 = vrot.slane %v1503, 4
      %v1505 = vrot.slane %v545, 5
      %v1506 = vsel %vm1446, %v1504, %v1505
      %v1507 = vrot.slane %v1505, 4
      %v1508 = vrot.slane %v546, 5
      %v1509 = vsel %vm1446, %v1507, %v1508
      %v1510 = vrot.slane %v547, 5
      %v1511 = vrot.slane %v1510, 4
      %v1512 = vrot.slane %v548, 5
      %v1513 = vsel %vm1446, %v1511, %v1512
      %v1514 = vrot.slane %v1512, 4
      %v1515 = vrot.slane %v549, 5
      %v1516 = vsel %vm1446, %v1514, %v1515
      %v1517 = vrot.slane %v550, 5
      %v1518 = vrot.slane %v1517, 4
      %v1519 = vrot.slane %v551, 5
      %v1520 = vsel %vm1446, %v1518, %v1519
      %v1521 = vrot.slane %v1519, 4
      %v1522 = vrot.slane %v552, 5
      %v1523 = vsel %vm1446, %v1521, %v1522
      %v1524 = vrot.slane %v553, 5
      %v1525 = vrot.slane %v1524, 4
      %v1526 = vrot.slane %v554, 5
      %v1527 = vsel %vm1446, %v1525, %v1526
      %v1528 = vrot.slane %v1526, 4
      %v1529 = vrot.slane %v555, 5
      %v1530 = vsel %vm1446, %v1528, %v1529
      %v1531 = vrot.slane %v556, 5
      %v1532 = vrot.slane %v1531, 4
      %v1533 = vrot.slane %v557, 5
      %v1534 = vsel %vm1446, %v1532, %v1533
      %v1535 = vrot.slane %v1533, 4
      %v1536 = vrot.slane %v558, 5
      %v1537 = vsel %vm1446, %v1535, %v1536
      %v1538 = vrot.slane %v559, 5
      %v1539 = vrot.slane %v1538, 4
      %v1540 = vrot.slane %v560, 5
      %v1541 = vsel %vm1446, %v1539, %v1540
      %v1542 = vrot.slane %v1540, 4
      %v1543 = vrot.slane %v561, 5
      %v1544 = vsel %vm1446, %v1542, %v1543
      %v1545 = vrot.slane %v562, 5
      %v1546 = vrot.slane %v1545, 4
      %v1547 = vrot.slane %v563, 5
      %v1548 = vsel %vm1446, %v1546, %v1547
      %v1549 = vrot.slane %v1547, 4
      %v1550 = vrot.slane %v564, 5
      %v1551 = vsel %vm1446, %v1549, %v1550
      %v1552 = vrot.slane %v565, 5
      %v1553 = vrot.slane %v1552, 4
      %v1554 = vrot.slane %v566, 5
      %v1555 = vsel %vm1446, %v1553, %v1554
      %v1556 = vrot.slane %v1554, 4
      %v1557 = vrot.slane %v567, 5
      %v1558 = vsel %vm1446, %v1556, %v1557
      %s1559 = scalar_lea.vmem %s3, 128
      %v1560 = vld [vmem:[%s1559] sm:$0xf]
      %v1561 = vld [vmem:[%s1559 + $0x4] sm:$0xf]
      %v1562 = vld [vmem:[%s1559 + $0x8] sm:$0xf]
      %v1563 = vld [vmem:[%s1559 + $0xc] sm:$0xf]
      %v1564 = vld [vmem:[%s1559 + $0x10] sm:$0xf]
      %v1565 = vld [vmem:[%s1559 + $0x14] sm:$0xf]
      %v1566 = vld [vmem:[%s1559 + $0x18] sm:$0xf]
      %v1567 = vld [vmem:[%s1559 + $0x1c] sm:$0xf]
      %v1568 = vld [vmem:[%s1559 + $0x20] sm:$0xf]
      %v1569 = vld [vmem:[%s1559 + $0x24] sm:$0xf]
      %v1570 = vld [vmem:[%s1559 + $0x28] sm:$0xf]
      %v1571 = vld [vmem:[%s1559 + $0x2c] sm:$0xf]
      %v1572 = vld [vmem:[%s1559 + $0x30] sm:$0xf]
      %v1573 = vld [vmem:[%s1559 + $0x34] sm:$0xf]
      %v1574 = vld [vmem:[%s1559 + $0x38] sm:$0xf]
      %v1575 = vld [vmem:[%s1559 + $0x3c] sm:$0xf]
      %v1576 = vunpack.c.l.b16 %v1450
      %v1577 = vunpack.c.l.b16 %v1453
      %v1578 = vunpack.c.l.b16 %v1457
      %v1579 = vunpack.c.l.b16 %v1460
      %v1580 = vunpack.c.l.b16 %v1464
      %v1581 = vunpack.c.l.b16 %v1467
      %v1582 = vunpack.c.l.b16 %v1471
      %v1583 = vunpack.c.l.b16 %v1474
      %v1584 = vunpack.c.l.b16 %v1478
      %v1585 = vunpack.c.l.b16 %v1481
      %v1586 = vunpack.c.l.b16 %v1485
      %v1587 = vunpack.c.l.b16 %v1488
      %v1588 = vunpack.c.l.b16 %v1492
      %v1589 = vunpack.c.l.b16 %v1495
      %v1590 = vunpack.c.l.b16 %v1499
      %v1591 = vunpack.c.l.b16 %v1502
      %v1592 = vunpack.c.l.b16 %v1506
      %v1593 = vunpack.c.l.b16 %v1509
      %v1594 = vunpack.c.l.b16 %v1513
      %v1595 = vunpack.c.l.b16 %v1516
      %v1596 = vunpack.c.l.b16 %v1520
      %v1597 = vunpack.c.l.b16 %v1523
      %v1598 = vunpack.c.l.b16 %v1527
      %v1599 = vunpack.c.l.b16 %v1530
      %v1600 = vunpack.c.l.b16 %v1534
      %v1601 = vunpack.c.l.b16 %v1537
      %v1602 = vunpack.c.l.b16 %v1541
      %v1603 = vunpack.c.l.b16 %v1544
      %v1604 = vunpack.c.l.b16 %v1548
      %v1605 = vunpack.c.l.b16 %v1551
      %v1606 = vunpack.c.l.b16 %v1555
      %v1607 = vunpack.c.l.b16 %v1558
      %v1608 = vpack.c.b16 %v1577, %v1576
      %v1609 = vpack.c.b16 %v1579, %v1578
      %v1610 = vpack.c.b16 %v1581, %v1580
      %v1611 = vpack.c.b16 %v1583, %v1582
      %v1612 = vpack.c.b16 %v1585, %v1584
      %v1613 = vpack.c.b16 %v1587, %v1586
      %v1614 = vpack.c.b16 %v1589, %v1588
      %v1615 = vpack.c.b16 %v1591, %v1590
      %v1616 = vpack.c.b16 %v1593, %v1592
      %v1617 = vpack.c.b16 %v1595, %v1594
      %v1618 = vpack.c.b16 %v1597, %v1596
      %v1619 = vpack.c.b16 %v1599, %v1598
      %v1620 = vpack.c.b16 %v1601, %v1600
      %v1621 = vpack.c.b16 %v1603, %v1602
      %v1622 = vpack.c.b16 %v1605, %v1604
      %v1623 = vpack.c.b16 %v1607, %v1606
      %v1656 = vunpack.c.l.b16 %v1560
      %v1657 = vunpack.c.l.b16 %v1561
      %v1658 = vunpack.c.l.b16 %v1562
      %v1659 = vunpack.c.l.b16 %v1563
      %v1660 = vunpack.c.l.b16 %v1564
      %v1661 = vunpack.c.l.b16 %v1565
      %v1662 = vunpack.c.l.b16 %v1566
      %v1663 = vunpack.c.l.b16 %v1567
      %v1664 = vunpack.c.l.b16 %v1568
      %v1665 = vunpack.c.l.b16 %v1569
      %v1666 = vunpack.c.l.b16 %v1570
      %v1667 = vunpack.c.l.b16 %v1571
      %v1668 = vunpack.c.l.b16 %v1572
      %v1669 = vunpack.c.l.b16 %v1573
      %v1670 = vunpack.c.l.b16 %v1574
      %v1671 = vunpack.c.l.b16 %v1575
      %v1672 = vpack.c.b16 %v1657, %v1656
      %v1673 = vpack.c.b16 %v1659, %v1658
      %v1674 = vpack.c.b16 %v1661, %v1660
      %v1675 = vpack.c.b16 %v1663, %v1662
      %v1676 = vpack.c.b16 %v1665, %v1664
      %v1677 = vpack.c.b16 %v1667, %v1666
      %v1678 = vpack.c.b16 %v1669, %v1668
      %v1679 = vpack.c.b16 %v1671, %v1670
      %1688 = vmatpush.bf16.msra.mxu0 %v1679
      %1689 = vmatpush.bf16.msra.mxu0 %v1678
      %1690 = vmatpush.bf16.msra.mxu0 %v1677
      %1691 = vmatpush.bf16.msra.mxu0 %v1676
      %1692 = vmatpush.bf16.msra.mxu0 %v1675
      %1693 = vmatpush.bf16.msra.mxu0 %v1674
      %1694 = vmatpush.bf16.msra.mxu0 %v1673
      %1695 = vmatpush.bf16.msra.mxu0 %v1672
      %1696 = vmatmul.bf16.gmra.mxu0 %v1608
      %v1697 = vpop.f32.mrf.mxu0
      %v1698 = vadd.f32 0.0, %v1697
      %v1699 = vpop.f32.mrf.mxu0
      %v1700 = vadd.f32 0.0, %v1699
      %1701 = vmatmul.bf16.gmra.mxu0 %v1609
      %v1702 = vpop.f32.mrf.mxu0
      %v1703 = vadd.f32 0.0, %v1702
      %v1704 = vpop.f32.mrf.mxu0
      %v1705 = vadd.f32 0.0, %v1704
      %1706 = vmatmul.bf16.gmra.mxu0 %v1610
      %v1707 = vpop.f32.mrf.mxu0
      %v1708 = vadd.f32 0.0, %v1707
      %v1709 = vpop.f32.mrf.mxu0
      %v1710 = vadd.f32 0.0, %v1709
      %1711 = vmatmul.bf16.gmra.mxu0 %v1611
      %v1712 = vpop.f32.mrf.mxu0
      %v1713 = vadd.f32 0.0, %v1712
      %v1714 = vpop.f32.mrf.mxu0
      %v1715 = vadd.f32 0.0, %v1714
      %1716 = vmatmul.bf16.gmra.mxu0 %v1612
      %v1717 = vpop.f32.mrf.mxu0
      %v1718 = vadd.f32 0.0, %v1717
      %v1719 = vpop.f32.mrf.mxu0
      %v1720 = vadd.f32 0.0, %v1719
      %1721 = vmatmul.bf16.gmra.mxu0 %v1613
      %v1722 = vpop.f32.mrf.mxu0
      %v1723 = vadd.f32 0.0, %v1722
      %v1724 = vpop.f32.mrf.mxu0
      %v1725 = vadd.f32 0.0, %v1724
      %1726 = vmatmul.bf16.gmra.mxu0 %v1614
      %v1727 = vpop.f32.mrf.mxu0
      %v1728 = vadd.f32 0.0, %v1727
      %v1729 = vpop.f32.mrf.mxu0
      %v1730 = vadd.f32 0.0, %v1729
      %1731 = vmatmul.bf16.gmra.mxu0 %v1615
      %v1732 = vpop.f32.mrf.mxu0
      %v1733 = vadd.f32 0.0, %v1732
      %v1734 = vpop.f32.mrf.mxu0
      %v1735 = vadd.f32 0.0, %v1734
      %1736 = vmatmul.bf16.gmra.mxu0 %v1616
      %v1737 = vpop.f32.mrf.mxu0
      %v1738 = vadd.f32 0.0, %v1737
      %v1739 = vpop.f32.mrf.mxu0
      %v1740 = vadd.f32 0.0, %v1739
      %1741 = vmatmul.bf16.gmra.mxu0 %v1617
      %v1742 = vpop.f32.mrf.mxu0
      %v1743 = vadd.f32 0.0, %v1742
      %v1744 = vpop.f32.mrf.mxu0
      %v1745 = vadd.f32 0.0, %v1744
      %1746 = vmatmul.bf16.gmra.mxu0 %v1618
      %v1747 = vpop.f32.mrf.mxu0
      %v1748 = vadd.f32 0.0, %v1747
      %v1749 = vpop.f32.mrf.mxu0
      %v1750 = vadd.f32 0.0, %v1749
      %1751 = vmatmul.bf16.gmra.mxu0 %v1619
      %v1752 = vpop.f32.mrf.mxu0
      %v1753 = vadd.f32 0.0, %v1752
      %v1754 = vpop.f32.mrf.mxu0
      %v1755 = vadd.f32 0.0, %v1754
      %1756 = vmatmul.bf16.gmra.mxu0 %v1620
      %v1757 = vpop.f32.mrf.mxu0
      %v1758 = vadd.f32 0.0, %v1757
      %v1759 = vpop.f32.mrf.mxu0
      %v1760 = vadd.f32 0.0, %v1759
      %1761 = vmatmul.bf16.gmra.mxu0 %v1621
      %v1762 = vpop.f32.mrf.mxu0
      %v1763 = vadd.f32 0.0, %v1762
      %v1764 = vpop.f32.mrf.mxu0
      %v1765 = vadd.f32 0.0, %v1764
      %1766 = vmatmul.bf16.gmra.mxu0 %v1622
      %v1767 = vpop.f32.mrf.mxu0
      %v1768 = vadd.f32 0.0, %v1767
      %v1769 = vpop.f32.mrf.mxu0
      %v1770 = vadd.f32 0.0, %v1769
      %1771 = vmatmul.bf16.gmra.mxu0 %v1623
      %v1772 = vpop.f32.mrf.mxu0
      %v1773 = vadd.f32 0.0, %v1772
      %v1774 = vpop.f32.mrf.mxu0
      %v1775 = vadd.f32 0.0, %v1774
      %1776 = vdwg.mxu0
      %v1777 = vadd.f32 %v1349, %v1698
      %v1778 = vadd.f32 %v1351, %v1700
      %v1779 = vadd.f32 %v1354, %v1703
      %v1780 = vadd.f32 %v1356, %v1705
      %v1781 = vadd.f32 %v1359, %v1708
      %v1782 = vadd.f32 %v1361, %v1710
      %v1783 = vadd.f32 %v1364, %v1713
      %v1784 = vadd.f32 %v1366, %v1715
      %v1785 = vadd.f32 %v1369, %v1718
      %v1786 = vadd.f32 %v1371, %v1720
      %v1787 = vadd.f32 %v1374, %v1723
      %v1788 = vadd.f32 %v1376, %v1725
      %v1789 = vadd.f32 %v1379, %v1728
      %v1790 = vadd.f32 %v1381, %v1730
      %v1791 = vadd.f32 %v1384, %v1733
      %v1792 = vadd.f32 %v1386, %v1735
      %v1793 = vadd.f32 %v1389, %v1738
      %v1794 = vadd.f32 %v1391, %v1740
      %v1795 = vadd.f32 %v1394, %v1743
      %v1796 = vadd.f32 %v1396, %v1745
      %v1797 = vadd.f32 %v1399, %v1748
      %v1798 = vadd.f32 %v1401, %v1750
      %v1799 = vadd.f32 %v1404, %v1753
      %v1800 = vadd.f32 %v1406, %v1755
      %v1801 = vadd.f32 %v1409, %v1758
      %v1802 = vadd.f32 %v1411, %v1760
      %v1803 = vadd.f32 %v1414, %v1763
      %v1804 = vadd.f32 %v1416, %v1765
      %v1805 = vadd.f32 %v1419, %v1768
      %v1806 = vadd.f32 %v1421, %v1770
      %v1807 = vadd.f32 %v1424, %v1773
      %v1808 = vadd.f32 %v1426, %v1775
      %s1809 = scalar_lea.vmem %s3, 192
      %v1810 = vld [vmem:[%s1809] sm:$0xf]
      %v1811 = vld [vmem:[%s1809 + $0x4] sm:$0xf]
      %v1812 = vld [vmem:[%s1809 + $0x8] sm:$0xf]
      %v1813 = vld [vmem:[%s1809 + $0xc] sm:$0xf]
      %v1814 = vld [vmem:[%s1809 + $0x10] sm:$0xf]
      %v1815 = vld [vmem:[%s1809 + $0x14] sm:$0xf]
      %v1816 = vld [vmem:[%s1809 + $0x18] sm:$0xf]
      %v1817 = vld [vmem:[%s1809 + $0x1c] sm:$0xf]
      %v1818 = vld [vmem:[%s1809 + $0x20] sm:$0xf]
      %v1819 = vld [vmem:[%s1809 + $0x24] sm:$0xf]
      %v1820 = vld [vmem:[%s1809 + $0x28] sm:$0xf]
      %v1821 = vld [vmem:[%s1809 + $0x2c] sm:$0xf]
      %v1822 = vld [vmem:[%s1809 + $0x30] sm:$0xf]
      %v1823 = vld [vmem:[%s1809 + $0x34] sm:$0xf]
      %v1824 = vld [vmem:[%s1809 + $0x38] sm:$0xf]
      %v1825 = vld [vmem:[%s1809 + $0x3c] sm:$0xf]
      %v1828 = vunpack.c.l.b16 %v568
      %v1829 = vunpack.c.l.b16 %v569
      %v1830 = vpack.c.b16 %v1829, %v1828
      %v1848 = vunpack.c.l.b16 %v1810
      %v1849 = vunpack.c.l.b16 %v1811
      %v1850 = vunpack.c.l.b16 %v1812
      %v1851 = vunpack.c.l.b16 %v1813
      %v1852 = vunpack.c.l.b16 %v1814
      %v1853 = vunpack.c.l.b16 %v1815
      %v1854 = vunpack.c.l.b16 %v1816
      %v1855 = vunpack.c.l.b16 %v1817
      %v1856 = vunpack.c.l.b16 %v1818
      %v1857 = vunpack.c.l.b16 %v1819
      %v1858 = vunpack.c.l.b16 %v1820
      %v1859 = vunpack.c.l.b16 %v1821
      %v1860 = vunpack.c.l.b16 %v1822
      %v1861 = vunpack.c.l.b16 %v1823
      %v1862 = vunpack.c.l.b16 %v1824
      %v1863 = vunpack.c.l.b16 %v1825
      %v1864 = vpack.c.b16 %v1849, %v1848
      %v1865 = vpack.c.b16 %v1851, %v1850
      %v1866 = vpack.c.b16 %v1853, %v1852
      %v1867 = vpack.c.b16 %v1855, %v1854
      %v1868 = vpack.c.b16 %v1857, %v1856
      %v1869 = vpack.c.b16 %v1859, %v1858
      %v1870 = vpack.c.b16 %v1861, %v1860
      %v1871 = vpack.c.b16 %v1863, %v1862
      %1880 = vmatpush.bf16.msra.mxu0 %v1871
      %1881 = vmatpush.bf16.msra.mxu0 %v1870
      %1882 = vmatpush.bf16.msra.mxu0 %v1869
      %1883 = vmatpush.bf16.msra.mxu0 %v1868
      %1884 = vmatpush.bf16.msra.mxu0 %v1867
      %1885 = vmatpush.bf16.msra.mxu0 %v1866
      %1886 = vmatpush.bf16.msra.mxu0 %v1865
      %1887 = vmatpush.bf16.msra.mxu0 %v1864
      %1888 = vmatmul.bf16.gmra.mxu0 %v1260
      %v1889 = vpop.f32.mrf.mxu0
      %v1890 = vadd.f32 0.0, %v1889
      %v1891 = vpop.f32.mrf.mxu0
      %v1892 = vadd.f32 0.0, %v1891
      %1893 = vmatmul.bf16.gmra.mxu0 %v1261
      %v1894 = vpop.f32.mrf.mxu0
      %v1895 = vadd.f32 0.0, %v1894
      %v1896 = vpop.f32.mrf.mxu0
      %v1897 = vadd.f32 0.0, %v1896
      %1898 = vmatmul.bf16.gmra.mxu0 %v1262
      %v1899 = vpop.f32.mrf.mxu0
      %v1900 = vadd.f32 0.0, %v1899
      %v1901 = vpop.f32.mrf.mxu0
      %v1902 = vadd.f32 0.0, %v1901
      %1903 = vmatmul.bf16.gmra.mxu0 %v1263
      %v1904 = vpop.f32.mrf.mxu0
      %v1905 = vadd.f32 0.0, %v1904
      %v1906 = vpop.f32.mrf.mxu0
      %v1907 = vadd.f32 0.0, %v1906
      %1908 = vmatmul.bf16.gmra.mxu0 %v1264
      %v1909 = vpop.f32.mrf.mxu0
      %v1910 = vadd.f32 0.0, %v1909
      %v1911 = vpop.f32.mrf.mxu0
      %v1912 = vadd.f32 0.0, %v1911
      %1913 = vmatmul.bf16.gmra.mxu0 %v1265
      %v1914 = vpop.f32.mrf.mxu0
      %v1915 = vadd.f32 0.0, %v1914
      %v1916 = vpop.f32.mrf.mxu0
      %v1917 = vadd.f32 0.0, %v1916
      %1918 = vmatmul.bf16.gmra.mxu0 %v1266
      %v1919 = vpop.f32.mrf.mxu0
      %v1920 = vadd.f32 0.0, %v1919
      %v1921 = vpop.f32.mrf.mxu0
      %v1922 = vadd.f32 0.0, %v1921
      %1923 = vmatmul.bf16.gmra.mxu0 %v1267
      %v1924 = vpop.f32.mrf.mxu0
      %v1925 = vadd.f32 0.0, %v1924
      %v1926 = vpop.f32.mrf.mxu0
      %v1927 = vadd.f32 0.0, %v1926
      %1928 = vmatmul.bf16.gmra.mxu0 %v1268
      %v1929 = vpop.f32.mrf.mxu0
      %v1930 = vadd.f32 0.0, %v1929
      %v1931 = vpop.f32.mrf.mxu0
      %v1932 = vadd.f32 0.0, %v1931
      %1933 = vmatmul.bf16.gmra.mxu0 %v1269
      %v1934 = vpop.f32.mrf.mxu0
      %v1935 = vadd.f32 0.0, %v1934
      %v1936 = vpop.f32.mrf.mxu0
      %v1937 = vadd.f32 0.0, %v1936
      %1938 = vmatmul.bf16.gmra.mxu0 %v1270
      %v1939 = vpop.f32.mrf.mxu0
      %v1940 = vadd.f32 0.0, %v1939
      %v1941 = vpop.f32.mrf.mxu0
      %v1942 = vadd.f32 0.0, %v1941
      %1943 = vmatmul.bf16.gmra.mxu0 %v1271
      %v1944 = vpop.f32.mrf.mxu0
      %v1945 = vadd.f32 0.0, %v1944
      %v1946 = vpop.f32.mrf.mxu0
      %v1947 = vadd.f32 0.0, %v1946
      %1948 = vmatmul.bf16.gmra.mxu0 %v1272
      %v1949 = vpop.f32.mrf.mxu0
      %v1950 = vadd.f32 0.0, %v1949
      %v1951 = vpop.f32.mrf.mxu0
      %v1952 = vadd.f32 0.0, %v1951
      %1953 = vmatmul.bf16.gmra.mxu0 %v1273
      %v1954 = vpop.f32.mrf.mxu0
      %v1955 = vadd.f32 0.0, %v1954
      %v1956 = vpop.f32.mrf.mxu0
      %v1957 = vadd.f32 0.0, %v1956
      %1958 = vmatmul.bf16.gmra.mxu0 %v1274
      %v1959 = vpop.f32.mrf.mxu0
      %v1960 = vadd.f32 0.0, %v1959
      %v1961 = vpop.f32.mrf.mxu0
      %v1962 = vadd.f32 0.0, %v1961
      %1963 = vmatmul.bf16.gmra.mxu0 %v1830
      %v1964 = vpop.f32.mrf.mxu0
      %v1965 = vadd.f32 0.0, %v1964
      %v1966 = vpop.f32.mrf.mxu0
      %v1967 = vadd.f32 0.0, %v1966
      %1968 = vdwg.mxu0
      %v1969 = vadd.f32 %v1777, %v1890
      %v1970 = vadd.f32 %v1778, %v1892
      %v1971 = vadd.f32 %v1779, %v1895
      %v1972 = vadd.f32 %v1780, %v1897
      %v1973 = vadd.f32 %v1781, %v1900
      %v1974 = vadd.f32 %v1782, %v1902
      %v1975 = vadd.f32 %v1783, %v1905
      %v1976 = vadd.f32 %v1784, %v1907
      %v1977 = vadd.f32 %v1785, %v1910
      %v1978 = vadd.f32 %v1786, %v1912
      %v1979 = vadd.f32 %v1787, %v1915
      %v1980 = vadd.f32 %v1788, %v1917
      %v1981 = vadd.f32 %v1789, %v1920
      %v1982 = vadd.f32 %v1790, %v1922
      %v1983 = vadd.f32 %v1791, %v1925
      %v1984 = vadd.f32 %v1792, %v1927
      %v1985 = vadd.f32 %v1793, %v1930
      %v1986 = vadd.f32 %v1794, %v1932
      %v1987 = vadd.f32 %v1795, %v1935
      %v1988 = vadd.f32 %v1796, %v1937
      %v1989 = vadd.f32 %v1797, %v1940
      %v1990 = vadd.f32 %v1798, %v1942
      %v1991 = vadd.f32 %v1799, %v1945
      %v1992 = vadd.f32 %v1800, %v1947
      %v1993 = vadd.f32 %v1801, %v1950
      %v1994 = vadd.f32 %v1802, %v1952
      %v1995 = vadd.f32 %v1803, %v1955
      %v1996 = vadd.f32 %v1804, %v1957
      %v1997 = vadd.f32 %v1805, %v1960
      %v1998 = vadd.f32 %v1806, %v1962
      %v1999 = vadd.f32 %v1807, %v1965
      %v2000 = vadd.f32 %v1808, %v1967
      %v2002 = vshrl.u32 %v568, 16
      %v2004 = vrot.slane %v2002, 4
      %v2005 = vshll.u32 %v568, 16
      %v2007 = vrot.slane %v2005, 5
      %v2008 = vor.u32 %v2004, %v2007
      %v2009 = vrot.slane %v2008, 4
      %v2011 = vshll.u32 %v569, 16
      %v2013 = vrot.slane %v2011, 5
      %v2014 = vsel %vm592, %v2009, %v2013
      %v2015 = vshrl.u32 %v569, 16
      %v2017 = vrot.slane %v2015, 4
      %v2018 = vor.u32 %v2017, %v2013
      %v2019 = vrot.slane %v2018, 4
      %v2021 = vshll.u32 %v570, 16
      %v2023 = vrot.slane %v2021, 5
      %v2024 = vsel %vm592, %v2019, %v2023
      %s2025 = scalar_lea.vmem %s3, 256
      %v2026 = vld [vmem:[%s2025] sm:$0xf]
      %v2027 = vld [vmem:[%s2025 + $0x4] sm:$0xf]
      %v2028 = vld [vmem:[%s2025 + $0x8] sm:$0xf]
      %v2029 = vld [vmem:[%s2025 + $0xc] sm:$0xf]
      %v2030 = vld [vmem:[%s2025 + $0x10] sm:$0xf]
      %v2031 = vld [vmem:[%s2025 + $0x14] sm:$0xf]
      %v2032 = vld [vmem:[%s2025 + $0x18] sm:$0xf]
      %v2033 = vld [vmem:[%s2025 + $0x1c] sm:$0xf]
      %v2034 = vld [vmem:[%s2025 + $0x20] sm:$0xf]
      %v2035 = vld [vmem:[%s2025 + $0x24] sm:$0xf]
      %v2036 = vld [vmem:[%s2025 + $0x28] sm:$0xf]
      %v2037 = vld [vmem:[%s2025 + $0x2c] sm:$0xf]
      %v2038 = vld [vmem:[%s2025 + $0x30] sm:$0xf]
      %v2039 = vld [vmem:[%s2025 + $0x34] sm:$0xf]
      %v2040 = vld [vmem:[%s2025 + $0x38] sm:$0xf]
      %v2041 = vld [vmem:[%s2025 + $0x3c] sm:$0xf]
      %v2042 = vunpack.c.l.b16 %v2014
      %v2043 = vunpack.c.l.b16 %v2024
      %v2044 = vpack.c.b16 %v2043, %v2042
      %v2062 = vunpack.c.l.b16 %v2026
      %v2063 = vunpack.c.l.b16 %v2027
      %v2064 = vunpack.c.l.b16 %v2028
      %v2065 = vunpack.c.l.b16 %v2029
      %v2066 = vunpack.c.l.b16 %v2030
      %v2067 = vunpack.c.l.b16 %v2031
      %v2068 = vunpack.c.l.b16 %v2032
      %v2069 = vunpack.c.l.b16 %v2033
      %v2070 = vunpack.c.l.b16 %v2034
      %v2071 = vunpack.c.l.b16 %v2035
      %v2072 = vunpack.c.l.b16 %v2036
      %v2073 = vunpack.c.l.b16 %v2037
      %v2074 = vunpack.c.l.b16 %v2038
      %v2075 = vunpack.c.l.b16 %v2039
      %v2076 = vunpack.c.l.b16 %v2040
      %v2077 = vunpack.c.l.b16 %v2041
      %v2078 = vpack.c.b16 %v2063, %v2062
      %v2079 = vpack.c.b16 %v2065, %v2064
      %v2080 = vpack.c.b16 %v2067, %v2066
      %v2081 = vpack.c.b16 %v2069, %v2068
      %v2082 = vpack.c.b16 %v2071, %v2070
      %v2083 = vpack.c.b16 %v2073, %v2072
      %v2084 = vpack.c.b16 %v2075, %v2074
      %v2085 = vpack.c.b16 %v2077, %v2076
      %2094 = vmatpush.bf16.msra.mxu0 %v2085
      %2095 = vmatpush.bf16.msra.mxu0 %v2084
      %2096 = vmatpush.bf16.msra.mxu0 %v2083
      %2097 = vmatpush.bf16.msra.mxu0 %v2082
      %2098 = vmatpush.bf16.msra.mxu0 %v2081
      %2099 = vmatpush.bf16.msra.mxu0 %v2080
      %2100 = vmatpush.bf16.msra.mxu0 %v2079
      %2101 = vmatpush.bf16.msra.mxu0 %v2078
      %2102 = vmatmul.bf16.gmra.mxu0 %v1027
      %v2103 = vpop.f32.mrf.mxu0
      %v2104 = vadd.f32 0.0, %v2103
      %v2105 = vpop.f32.mrf.mxu0
      %v2106 = vadd.f32 0.0, %v2105
      %2107 = vmatmul.bf16.gmra.mxu0 %v1028
      %v2108 = vpop.f32.mrf.mxu0
      %v2109 = vadd.f32 0.0, %v2108
      %v2110 = vpop.f32.mrf.mxu0
      %v2111 = vadd.f32 0.0, %v2110
      %2112 = vmatmul.bf16.gmra.mxu0 %v1029
      %v2113 = vpop.f32.mrf.mxu0
      %v2114 = vadd.f32 0.0, %v2113
      %v2115 = vpop.f32.mrf.mxu0
      %v2116 = vadd.f32 0.0, %v2115
      %2117 = vmatmul.bf16.gmra.mxu0 %v1030
      %v2118 = vpop.f32.mrf.mxu0
      %v2119 = vadd.f32 0.0, %v2118
      %v2120 = vpop.f32.mrf.mxu0
      %v2121 = vadd.f32 0.0, %v2120
      %2122 = vmatmul.bf16.gmra.mxu0 %v1031
      %v2123 = vpop.f32.mrf.mxu0
      %v2124 = vadd.f32 0.0, %v2123
      %v2125 = vpop.f32.mrf.mxu0
      %v2126 = vadd.f32 0.0, %v2125
      %2127 = vmatmul.bf16.gmra.mxu0 %v1032
      %v2128 = vpop.f32.mrf.mxu0
      %v2129 = vadd.f32 0.0, %v2128
      %v2130 = vpop.f32.mrf.mxu0
      %v2131 = vadd.f32 0.0, %v2130
      %2132 = vmatmul.bf16.gmra.mxu0 %v1033
      %v2133 = vpop.f32.mrf.mxu0
      %v2134 = vadd.f32 0.0, %v2133
      %v2135 = vpop.f32.mrf.mxu0
      %v2136 = vadd.f32 0.0, %v2135
      %2137 = vmatmul.bf16.gmra.mxu0 %v1034
      %v2138 = vpop.f32.mrf.mxu0
      %v2139 = vadd.f32 0.0, %v2138
      %v2140 = vpop.f32.mrf.mxu0
      %v2141 = vadd.f32 0.0, %v2140
      %2142 = vmatmul.bf16.gmra.mxu0 %v1035
      %v2143 = vpop.f32.mrf.mxu0
      %v2144 = vadd.f32 0.0, %v2143
      %v2145 = vpop.f32.mrf.mxu0
      %v2146 = vadd.f32 0.0, %v2145
      %2147 = vmatmul.bf16.gmra.mxu0 %v1036
      %v2148 = vpop.f32.mrf.mxu0
      %v2149 = vadd.f32 0.0, %v2148
      %v2150 = vpop.f32.mrf.mxu0
      %v2151 = vadd.f32 0.0, %v2150
      %2152 = vmatmul.bf16.gmra.mxu0 %v1037
      %v2153 = vpop.f32.mrf.mxu0
      %v2154 = vadd.f32 0.0, %v2153
      %v2155 = vpop.f32.mrf.mxu0
      %v2156 = vadd.f32 0.0, %v2155
      %2157 = vmatmul.bf16.gmra.mxu0 %v1038
      %v2158 = vpop.f32.mrf.mxu0
      %v2159 = vadd.f32 0.0, %v2158
      %v2160 = vpop.f32.mrf.mxu0
      %v2161 = vadd.f32 0.0, %v2160
      %2162 = vmatmul.bf16.gmra.mxu0 %v1039
      %v2163 = vpop.f32.mrf.mxu0
      %v2164 = vadd.f32 0.0, %v2163
      %v2165 = vpop.f32.mrf.mxu0
      %v2166 = vadd.f32 0.0, %v2165
      %2167 = vmatmul.bf16.gmra.mxu0 %v1040
      %v2168 = vpop.f32.mrf.mxu0
      %v2169 = vadd.f32 0.0, %v2168
      %v2170 = vpop.f32.mrf.mxu0
      %v2171 = vadd.f32 0.0, %v2170
      %2172 = vmatmul.bf16.gmra.mxu0 %v1041
      %v2173 = vpop.f32.mrf.mxu0
      %v2174 = vadd.f32 0.0, %v2173
      %v2175 = vpop.f32.mrf.mxu0
      %v2176 = vadd.f32 0.0, %v2175
      %2177 = vmatmul.bf16.gmra.mxu0 %v2044
      %v2178 = vpop.f32.mrf.mxu0
      %v2179 = vadd.f32 0.0, %v2178
      %v2180 = vpop.f32.mrf.mxu0
      %v2181 = vadd.f32 0.0, %v2180
      %2182 = vdwg.mxu0
      %v2183 = vadd.f32 %v1969, %v2104
      %v2184 = vadd.f32 %v1970, %v2106
      %v2185 = vadd.f32 %v1971, %v2109
      %v2186 = vadd.f32 %v1972, %v2111
      %v2187 = vadd.f32 %v1973, %v2114
      %v2188 = vadd.f32 %v1974, %v2116
      %v2189 = vadd.f32 %v1975, %v2119
      %v2190 = vadd.f32 %v1976, %v2121
      %v2191 = vadd.f32 %v1977, %v2124
      %v2192 = vadd.f32 %v1978, %v2126
      %v2193 = vadd.f32 %v1979, %v2129
      %v2194 = vadd.f32 %v1980, %v2131
      %v2195 = vadd.f32 %v1981, %v2134
      %v2196 = vadd.f32 %v1982, %v2136
      %v2197 = vadd.f32 %v1983, %v2139
      %v2198 = vadd.f32 %v1984, %v2141
      %v2199 = vadd.f32 %v1985, %v2144
      %v2200 = vadd.f32 %v1986, %v2146
      %v2201 = vadd.f32 %v1987, %v2149
      %v2202 = vadd.f32 %v1988, %v2151
      %v2203 = vadd.f32 %v1989, %v2154
      %v2204 = vadd.f32 %v1990, %v2156
      %v2205 = vadd.f32 %v1991, %v2159
      %v2206 = vadd.f32 %v1992, %v2161
      %v2207 = vadd.f32 %v1993, %v2164
      %v2208 = vadd.f32 %v1994, %v2166
      %v2209 = vadd.f32 %v1995, %v2169
      %v2210 = vadd.f32 %v1996, %v2171
      %v2211 = vadd.f32 %v1997, %v2174
      %v2212 = vadd.f32 %v1998, %v2176
      %v2213 = vadd.f32 %v1999, %v2179
      %v2214 = vadd.f32 %v2000, %v2181
      %v2216 = vrot.slane %v568, 5
      %v2217 = vrot.slane %v2216, 4
      %v2218 = vrot.slane %v569, 5
      %v2219 = vsel %vm1446, %v2217, %v2218
      %v2220 = vrot.slane %v2218, 4
      %v2221 = vrot.slane %v570, 5
      %v2222 = vsel %vm1446, %v2220, %v2221
      %s2223 = scalar_lea.vmem %s3, 320
      %v2224 = vld [vmem:[%s2223] sm:$0xf]
      %v2225 = vld [vmem:[%s2223 + $0x4] sm:$0xf]
      %v2226 = vld [vmem:[%s2223 + $0x8] sm:$0xf]
      %v2227 = vld [vmem:[%s2223 + $0xc] sm:$0xf]
      %v2228 = vld [vmem:[%s2223 + $0x10] sm:$0xf]
      %v2229 = vld [vmem:[%s2223 + $0x14] sm:$0xf]
      %v2230 = vld [vmem:[%s2223 + $0x18] sm:$0xf]
      %v2231 = vld [vmem:[%s2223 + $0x1c] sm:$0xf]
      %v2232 = vld [vmem:[%s2223 + $0x20] sm:$0xf]
      %v2233 = vld [vmem:[%s2223 + $0x24] sm:$0xf]
      %v2234 = vld [vmem:[%s2223 + $0x28] sm:$0xf]
      %v2235 = vld [vmem:[%s2223 + $0x2c] sm:$0xf]
      %v2236 = vld [vmem:[%s2223 + $0x30] sm:$0xf]
      %v2237 = vld [vmem:[%s2223 + $0x34] sm:$0xf]
      %v2238 = vld [vmem:[%s2223 + $0x38] sm:$0xf]
      %v2239 = vld [vmem:[%s2223 + $0x3c] sm:$0xf]
      %v2240 = vunpack.c.l.b16 %v2219
      %v2241 = vunpack.c.l.b16 %v2222
      %v2242 = vpack.c.b16 %v2241, %v2240
      %v2260 = vunpack.c.l.b16 %v2224
      %v2261 = vunpack.c.l.b16 %v2225
      %v2262 = vunpack.c.l.b16 %v2226
      %v2263 = vunpack.c.l.b16 %v2227
      %v2264 = vunpack.c.l.b16 %v2228
      %v2265 = vunpack.c.l.b16 %v2229
      %v2266 = vunpack.c.l.b16 %v2230
      %v2267 = vunpack.c.l.b16 %v2231
      %v2268 = vunpack.c.l.b16 %v2232
      %v2269 = vunpack.c.l.b16 %v2233
      %v2270 = vunpack.c.l.b16 %v2234
      %v2271 = vunpack.c.l.b16 %v2235
      %v2272 = vunpack.c.l.b16 %v2236
      %v2273 = vunpack.c.l.b16 %v2237
      %v2274 = vunpack.c.l.b16 %v2238
      %v2275 = vunpack.c.l.b16 %v2239
      %v2276 = vpack.c.b16 %v2261, %v2260
      %v2277 = vpack.c.b16 %v2263, %v2262
      %v2278 = vpack.c.b16 %v2265, %v2264
      %v2279 = vpack.c.b16 %v2267, %v2266
      %v2280 = vpack.c.b16 %v2269, %v2268
      %v2281 = vpack.c.b16 %v2271, %v2270
      %v2282 = vpack.c.b16 %v2273, %v2272
      %v2283 = vpack.c.b16 %v2275, %v2274
      %2292 = vmatpush.bf16.msra.mxu0 %v2283
      %2293 = vmatpush.bf16.msra.mxu0 %v2282
      %2294 = vmatpush.bf16.msra.mxu0 %v2281
      %2295 = vmatpush.bf16.msra.mxu0 %v2280
      %2296 = vmatpush.bf16.msra.mxu0 %v2279
      %2297 = vmatpush.bf16.msra.mxu0 %v2278
      %2298 = vmatpush.bf16.msra.mxu0 %v2277
      %2299 = vmatpush.bf16.msra.mxu0 %v2276
      %2300 = vmatmul.bf16.gmra.mxu0 %v1609
      %v2301 = vpop.f32.mrf.mxu0
      %v2302 = vadd.f32 0.0, %v2301
      %v2303 = vpop.f32.mrf.mxu0
      %v2304 = vadd.f32 0.0, %v2303
      %2305 = vmatmul.bf16.gmra.mxu0 %v1610
      %v2306 = vpop.f32.mrf.mxu0
      %v2307 = vadd.f32 0.0, %v2306
      %v2308 = vpop.f32.mrf.mxu0
      %v2309 = vadd.f32 0.0, %v2308
      %2310 = vmatmul.bf16.gmra.mxu0 %v1611
      %v2311 = vpop.f32.mrf.mxu0
      %v2312 = vadd.f32 0.0, %v2311
      %v2313 = vpop.f32.mrf.mxu0
      %v2314 = vadd.f32 0.0, %v2313
      %2315 = vmatmul.bf16.gmra.mxu0 %v1612
      %v2316 = vpop.f32.mrf.mxu0
      %v2317 = vadd.f32 0.0, %v2316
      %v2318 = vpop.f32.mrf.mxu0
      %v2319 = vadd.f32 0.0, %v2318
      %2320 = vmatmul.bf16.gmra.mxu0 %v1613
      %v2321 = vpop.f32.mrf.mxu0
      %v2322 = vadd.f32 0.0, %v2321
      %v2323 = vpop.f32.mrf.mxu0
      %v2324 = vadd.f32 0.0, %v2323
      %2325 = vmatmul.bf16.gmra.mxu0 %v1614
      %v2326 = vpop.f32.mrf.mxu0
      %v2327 = vadd.f32 0.0, %v2326
      %v2328 = vpop.f32.mrf.mxu0
      %v2329 = vadd.f32 0.0, %v2328
      %2330 = vmatmul.bf16.gmra.mxu0 %v1615
      %v2331 = vpop.f32.mrf.mxu0
      %v2332 = vadd.f32 0.0, %v2331
      %v2333 = vpop.f32.mrf.mxu0
      %v2334 = vadd.f32 0.0, %v2333
      %2335 = vmatmul.bf16.gmra.mxu0 %v1616
      %v2336 = vpop.f32.mrf.mxu0
      %v2337 = vadd.f32 0.0, %v2336
      %v2338 = vpop.f32.mrf.mxu0
      %v2339 = vadd.f32 0.0, %v2338
      %2340 = vmatmul.bf16.gmra.mxu0 %v1617
      %v2341 = vpop.f32.mrf.mxu0
      %v2342 = vadd.f32 0.0, %v2341
      %v2343 = vpop.f32.mrf.mxu0
      %v2344 = vadd.f32 0.0, %v2343
      %2345 = vmatmul.bf16.gmra.mxu0 %v1618
      %v2346 = vpop.f32.mrf.mxu0
      %v2347 = vadd.f32 0.0, %v2346
      %v2348 = vpop.f32.mrf.mxu0
      %v2349 = vadd.f32 0.0, %v2348
      %2350 = vmatmul.bf16.gmra.mxu0 %v1619
      %v2351 = vpop.f32.mrf.mxu0
      %v2352 = vadd.f32 0.0, %v2351
      %v2353 = vpop.f32.mrf.mxu0
      %v2354 = vadd.f32 0.0, %v2353
      %2355 = vmatmul.bf16.gmra.mxu0 %v1620
      %v2356 = vpop.f32.mrf.mxu0
      %v2357 = vadd.f32 0.0, %v2356
      %v2358 = vpop.f32.mrf.mxu0
      %v2359 = vadd.f32 0.0, %v2358
      %2360 = vmatmul.bf16.gmra.mxu0 %v1621
      %v2361 = vpop.f32.mrf.mxu0
      %v2362 = vadd.f32 0.0, %v2361
      %v2363 = vpop.f32.mrf.mxu0
      %v2364 = vadd.f32 0.0, %v2363
      %2365 = vmatmul.bf16.gmra.mxu0 %v1622
      %v2366 = vpop.f32.mrf.mxu0
      %v2367 = vadd.f32 0.0, %v2366
      %v2368 = vpop.f32.mrf.mxu0
      %v2369 = vadd.f32 0.0, %v2368
      %2370 = vmatmul.bf16.gmra.mxu0 %v1623
      %v2371 = vpop.f32.mrf.mxu0
      %v2372 = vadd.f32 0.0, %v2371
      %v2373 = vpop.f32.mrf.mxu0
      %v2374 = vadd.f32 0.0, %v2373
      %2375 = vmatmul.bf16.gmra.mxu0 %v2242
      %v2376 = vpop.f32.mrf.mxu0
      %v2377 = vadd.f32 0.0, %v2376
      %v2378 = vpop.f32.mrf.mxu0
      %v2379 = vadd.f32 0.0, %v2378
      %2380 = vdwg.mxu0
      %v2381 = vadd.f32 %v2183, %v2302
      %v2382 = vadd.f32 %v2184, %v2304
      %v2383 = vadd.f32 %v2185, %v2307
      %v2384 = vadd.f32 %v2186, %v2309
      %v2385 = vadd.f32 %v2187, %v2312
      %v2386 = vadd.f32 %v2188, %v2314
      %v2387 = vadd.f32 %v2189, %v2317
      %v2388 = vadd.f32 %v2190, %v2319
      %v2389 = vadd.f32 %v2191, %v2322
      %v2390 = vadd.f32 %v2192, %v2324
      %v2391 = vadd.f32 %v2193, %v2327
      %v2392 = vadd.f32 %v2194, %v2329
      %v2393 = vadd.f32 %v2195, %v2332
      %v2394 = vadd.f32 %v2196, %v2334
      %v2395 = vadd.f32 %v2197, %v2337
      %v2396 = vadd.f32 %v2198, %v2339
      %v2397 = vadd.f32 %v2199, %v2342
      %v2398 = vadd.f32 %v2200, %v2344
      %v2399 = vadd.f32 %v2201, %v2347
      %v2400 = vadd.f32 %v2202, %v2349
      %v2401 = vadd.f32 %v2203, %v2352
      %v2402 = vadd.f32 %v2204, %v2354
      %v2403 = vadd.f32 %v2205, %v2357
      %v2404 = vadd.f32 %v2206, %v2359
      %v2405 = vadd.f32 %v2207, %v2362
      %v2406 = vadd.f32 %v2208, %v2364
      %v2407 = vadd.f32 %v2209, %v2367
      %v2408 = vadd.f32 %v2210, %v2369
      %v2409 = vadd.f32 %v2211, %v2372
      %v2410 = vadd.f32 %v2212, %v2374
      %v2411 = vadd.f32 %v2213, %v2377
      %v2412 = vadd.f32 %v2214, %v2379
      %s2413 = scalar_lea.vmem %s3, 384
      %v2414 = vld [vmem:[%s2413] sm:$0xf]
      %v2415 = vld [vmem:[%s2413 + $0x4] sm:$0xf]
      %v2416 = vld [vmem:[%s2413 + $0x8] sm:$0xf]
      %v2417 = vld [vmem:[%s2413 + $0xc] sm:$0xf]
      %v2418 = vld [vmem:[%s2413 + $0x10] sm:$0xf]
      %v2419 = vld [vmem:[%s2413 + $0x14] sm:$0xf]
      %v2420 = vld [vmem:[%s2413 + $0x18] sm:$0xf]
      %v2421 = vld [vmem:[%s2413 + $0x1c] sm:$0xf]
      %v2422 = vld [vmem:[%s2413 + $0x20] sm:$0xf]
      %v2423 = vld [vmem:[%s2413 + $0x24] sm:$0xf]
      %v2424 = vld [vmem:[%s2413 + $0x28] sm:$0xf]
      %v2425 = vld [vmem:[%s2413 + $0x2c] sm:$0xf]
      %v2426 = vld [vmem:[%s2413 + $0x30] sm:$0xf]
      %v2427 = vld [vmem:[%s2413 + $0x34] sm:$0xf]
      %v2428 = vld [vmem:[%s2413 + $0x38] sm:$0xf]
      %v2429 = vld [vmem:[%s2413 + $0x3c] sm:$0xf]
      %v2432 = vunpack.c.l.b16 %v571
      %v2433 = vunpack.c.l.b16 %v572
      %v2434 = vpack.c.b16 %v2433, %v2432
      %v2452 = vunpack.c.l.b16 %v2414
      %v2453 = vunpack.c.l.b16 %v2415
      %v2454 = vunpack.c.l.b16 %v2416
      %v2455 = vunpack.c.l.b16 %v2417
      %v2456 = vunpack.c.l.b16 %v2418
      %v2457 = vunpack.c.l.b16 %v2419
      %v2458 = vunpack.c.l.b16 %v2420
      %v2459 = vunpack.c.l.b16 %v2421
      %v2460 = vunpack.c.l.b16 %v2422
      %v2461 = vunpack.c.l.b16 %v2423
      %v2462 = vunpack.c.l.b16 %v2424
      %v2463 = vunpack.c.l.b16 %v2425
      %v2464 = vunpack.c.l.b16 %v2426
      %v2465 = vunpack.c.l.b16 %v2427
      %v2466 = vunpack.c.l.b16 %v2428
      %v2467 = vunpack.c.l.b16 %v2429
      %v2468 = vpack.c.b16 %v2453, %v2452
      %v2469 = vpack.c.b16 %v2455, %v2454
      %v2470 = vpack.c.b16 %v2457, %v2456
      %v2471 = vpack.c.b16 %v2459, %v2458
      %v2472 = vpack.c.b16 %v2461, %v2460
      %v2473 = vpack.c.b16 %v2463, %v2462
      %v2474 = vpack.c.b16 %v2465, %v2464
      %v2475 = vpack.c.b16 %v2467, %v2466
      %2484 = vmatpush.bf16.msra.mxu0 %v2475
      %2485 = vmatpush.bf16.msra.mxu0 %v2474
      %2486 = vmatpush.bf16.msra.mxu0 %v2473
      %2487 = vmatpush.bf16.msra.mxu0 %v2472
      %2488 = vmatpush.bf16.msra.mxu0 %v2471
      %2489 = vmatpush.bf16.msra.mxu0 %v2470
      %2490 = vmatpush.bf16.msra.mxu0 %v2469
      %2491 = vmatpush.bf16.msra.mxu0 %v2468
      %2492 = vmatmul.bf16.gmra.mxu0 %v1261
      %v2493 = vpop.f32.mrf.mxu0
      %v2494 = vadd.f32 0.0, %v2493
      %v2495 = vpop.f32.mrf.mxu0
      %v2496 = vadd.f32 0.0, %v2495
      %2497 = vmatmul.bf16.gmra.mxu0 %v1262
      %v2498 = vpop.f32.mrf.mxu0
      %v2499 = vadd.f32 0.0, %v2498
      %v2500 = vpop.f32.mrf.mxu0
      %v2501 = vadd.f32 0.0, %v2500
      %2502 = vmatmul.bf16.gmra.mxu0 %v1263
      %v2503 = vpop.f32.mrf.mxu0
      %v2504 = vadd.f32 0.0, %v2503
      %v2505 = vpop.f32.mrf.mxu0
      %v2506 = vadd.f32 0.0, %v2505
      %2507 = vmatmul.bf16.gmra.mxu0 %v1264
      %v2508 = vpop.f32.mrf.mxu0
      %v2509 = vadd.f32 0.0, %v2508
      %v2510 = vpop.f32.mrf.mxu0
      %v2511 = vadd.f32 0.0, %v2510
      %2512 = vmatmul.bf16.gmra.mxu0 %v1265
      %v2513 = vpop.f32.mrf.mxu0
      %v2514 = vadd.f32 0.0, %v2513
      %v2515 = vpop.f32.mrf.mxu0
      %v2516 = vadd.f32 0.0, %v2515
      %2517 = vmatmul.bf16.gmra.mxu0 %v1266
      %v2518 = vpop.f32.mrf.mxu0
      %v2519 = vadd.f32 0.0, %v2518
      %v2520 = vpop.f32.mrf.mxu0
      %v2521 = vadd.f32 0.0, %v2520
      %2522 = vmatmul.bf16.gmra.mxu0 %v1267
      %v2523 = vpop.f32.mrf.mxu0
      %v2524 = vadd.f32 0.0, %v2523
      %v2525 = vpop.f32.mrf.mxu0
      %v2526 = vadd.f32 0.0, %v2525
      %2527 = vmatmul.bf16.gmra.mxu0 %v1268
      %v2528 = vpop.f32.mrf.mxu0
      %v2529 = vadd.f32 0.0, %v2528
      %v2530 = vpop.f32.mrf.mxu0
      %v2531 = vadd.f32 0.0, %v2530
      %2532 = vmatmul.bf16.gmra.mxu0 %v1269
      %v2533 = vpop.f32.mrf.mxu0
      %v2534 = vadd.f32 0.0, %v2533
      %v2535 = vpop.f32.mrf.mxu0
      %v2536 = vadd.f32 0.0, %v2535
      %2537 = vmatmul.bf16.gmra.mxu0 %v1270
      %v2538 = vpop.f32.mrf.mxu0
      %v2539 = vadd.f32 0.0, %v2538
      %v2540 = vpop.f32.mrf.mxu0
      %v2541 = vadd.f32 0.0, %v2540
      %2542 = vmatmul.bf16.gmra.mxu0 %v1271
      %v2543 = vpop.f32.mrf.mxu0
      %v2544 = vadd.f32 0.0, %v2543
      %v2545 = vpop.f32.mrf.mxu0
      %v2546 = vadd.f32 0.0, %v2545
      %2547 = vmatmul.bf16.gmra.mxu0 %v1272
      %v2548 = vpop.f32.mrf.mxu0
      %v2549 = vadd.f32 0.0, %v2548
      %v2550 = vpop.f32.mrf.mxu0
      %v2551 = vadd.f32 0.0, %v2550
      %2552 = vmatmul.bf16.gmra.mxu0 %v1273
      %v2553 = vpop.f32.mrf.mxu0
      %v2554 = vadd.f32 0.0, %v2553
      %v2555 = vpop.f32.mrf.mxu0
      %v2556 = vadd.f32 0.0, %v2555
      %2557 = vmatmul.bf16.gmra.mxu0 %v1274
      %v2558 = vpop.f32.mrf.mxu0
      %v2559 = vadd.f32 0.0, %v2558
      %v2560 = vpop.f32.mrf.mxu0
      %v2561 = vadd.f32 0.0, %v2560
      %2562 = vmatmul.bf16.gmra.mxu0 %v1830
      %v2563 = vpop.f32.mrf.mxu0
      %v2564 = vadd.f32 0.0, %v2563
      %v2565 = vpop.f32.mrf.mxu0
      %v2566 = vadd.f32 0.0, %v2565
      %2567 = vmatmul.bf16.gmra.mxu0 %v2434
      %v2568 = vpop.f32.mrf.mxu0
      %v2569 = vadd.f32 0.0, %v2568
      %v2570 = vpop.f32.mrf.mxu0
      %v2571 = vadd.f32 0.0, %v2570
      %2572 = vdwg.mxu0
      %v2573 = vadd.f32 %v2381, %v2494
      %v2574 = vadd.f32 %v2382, %v2496
      %v2575 = vadd.f32 %v2383, %v2499
      %v2576 = vadd.f32 %v2384, %v2501
      %v2577 = vadd.f32 %v2385, %v2504
      %v2578 = vadd.f32 %v2386, %v2506
      %v2579 = vadd.f32 %v2387, %v2509
      %v2580 = vadd.f32 %v2388, %v2511
      %v2581 = vadd.f32 %v2389, %v2514
      %v2582 = vadd.f32 %v2390, %v2516
      %v2583 = vadd.f32 %v2391, %v2519
      %v2584 = vadd.f32 %v2392, %v2521
      %v2585 = vadd.f32 %v2393, %v2524
      %v2586 = vadd.f32 %v2394, %v2526
      %v2587 = vadd.f32 %v2395, %v2529
      %v2588 = vadd.f32 %v2396, %v2531
      %v2589 = vadd.f32 %v2397, %v2534
      %v2590 = vadd.f32 %v2398, %v2536
      %v2591 = vadd.f32 %v2399, %v2539
      %v2592 = vadd.f32 %v2400, %v2541
      %v2593 = vadd.f32 %v2401, %v2544
      %v2594 = vadd.f32 %v2402, %v2546
      %v2595 = vadd.f32 %v2403, %v2549
      %v2596 = vadd.f32 %v2404, %v2551
      %v2597 = vadd.f32 %v2405, %v2554
      %v2598 = vadd.f32 %v2406, %v2556
      %v2599 = vadd.f32 %v2407, %v2559
      %v2600 = vadd.f32 %v2408, %v2561
      %v2601 = vadd.f32 %v2409, %v2564
      %v2602 = vadd.f32 %v2410, %v2566
      %v2603 = vadd.f32 %v2411, %v2569
      %v2604 = vadd.f32 %v2412, %v2571
      %v2606 = vshrl.u32 %v571, 16
      %v2608 = vrot.slane %v2606, 4
      %v2609 = vshll.u32 %v571, 16
      %v2611 = vrot.slane %v2609, 5
      %v2612 = vor.u32 %v2608, %v2611
      %v2613 = vrot.slane %v2612, 4
      %v2615 = vshll.u32 %v572, 16
      %v2617 = vrot.slane %v2615, 5
      %v2618 = vsel %vm592, %v2613, %v2617
      %v2619 = vshrl.u32 %v572, 16
      %v2621 = vrot.slane %v2619, 4
      %v2622 = vor.u32 %v2621, %v2617
      %v2623 = vrot.slane %v2622, 4
      %v2625 = vshll.u32 %v573, 16
      %v2627 = vrot.slane %v2625, 5
      %v2628 = vsel %vm592, %v2623, %v2627
      %s2629 = scalar_lea.vmem %s3, 448
      %v2630 = vld [vmem:[%s2629] sm:$0xf]
      %v2631 = vld [vmem:[%s2629 + $0x4] sm:$0xf]
      %v2632 = vld [vmem:[%s2629 + $0x8] sm:$0xf]
      %v2633 = vld [vmem:[%s2629 + $0xc] sm:$0xf]
      %v2634 = vld [vmem:[%s2629 + $0x10] sm:$0xf]
      %v2635 = vld [vmem:[%s2629 + $0x14] sm:$0xf]
      %v2636 = vld [vmem:[%s2629 + $0x18] sm:$0xf]
      %v2637 = vld [vmem:[%s2629 + $0x1c] sm:$0xf]
      %v2638 = vld [vmem:[%s2629 + $0x20] sm:$0xf]
      %v2639 = vld [vmem:[%s2629 + $0x24] sm:$0xf]
      %v2640 = vld [vmem:[%s2629 + $0x28] sm:$0xf]
      %v2641 = vld [vmem:[%s2629 + $0x2c] sm:$0xf]
      %v2642 = vld [vmem:[%s2629 + $0x30] sm:$0xf]
      %v2643 = vld [vmem:[%s2629 + $0x34] sm:$0xf]
      %v2644 = vld [vmem:[%s2629 + $0x38] sm:$0xf]
      %v2645 = vld [vmem:[%s2629 + $0x3c] sm:$0xf]
      %v2646 = vunpack.c.l.b16 %v2618
      %v2647 = vunpack.c.l.b16 %v2628
      %v2648 = vpack.c.b16 %v2647, %v2646
      %v2666 = vunpack.c.l.b16 %v2630
      %v2667 = vunpack.c.l.b16 %v2631
      %v2668 = vunpack.c.l.b16 %v2632
      %v2669 = vunpack.c.l.b16 %v2633
      %v2670 = vunpack.c.l.b16 %v2634
      %v2671 = vunpack.c.l.b16 %v2635
      %v2672 = vunpack.c.l.b16 %v2636
      %v2673 = vunpack.c.l.b16 %v2637
      %v2674 = vunpack.c.l.b16 %v2638
      %v2675 = vunpack.c.l.b16 %v2639
      %v2676 = vunpack.c.l.b16 %v2640
      %v2677 = vunpack.c.l.b16 %v2641
      %v2678 = vunpack.c.l.b16 %v2642
      %v2679 = vunpack.c.l.b16 %v2643
      %v2680 = vunpack.c.l.b16 %v2644
      %v2681 = vunpack.c.l.b16 %v2645
      %v2682 = vpack.c.b16 %v2667, %v2666
      %v2683 = vpack.c.b16 %v2669, %v2668
      %v2684 = vpack.c.b16 %v2671, %v2670
      %v2685 = vpack.c.b16 %v2673, %v2672
      %v2686 = vpack.c.b16 %v2675, %v2674
      %v2687 = vpack.c.b16 %v2677, %v2676
      %v2688 = vpack.c.b16 %v2679, %v2678
      %v2689 = vpack.c.b16 %v2681, %v2680
      %2698 = vmatpush.bf16.msra.mxu0 %v2689
      %2699 = vmatpush.bf16.msra.mxu0 %v2688
      %2700 = vmatpush.bf16.msra.mxu0 %v2687
      %2701 = vmatpush.bf16.msra.mxu0 %v2686
      %2702 = vmatpush.bf16.msra.mxu0 %v2685
      %2703 = vmatpush.bf16.msra.mxu0 %v2684
      %2704 = vmatpush.bf16.msra.mxu0 %v2683
      %2705 = vmatpush.bf16.msra.mxu0 %v2682
      %2706 = vmatmul.bf16.gmra.mxu0 %v1028
      %v2707 = vpop.f32.mrf.mxu0
      %v2708 = vadd.f32 0.0, %v2707
      %v2709 = vpop.f32.mrf.mxu0
      %v2710 = vadd.f32 0.0, %v2709
      %2711 = vmatmul.bf16.gmra.mxu0 %v1029
      %v2712 = vpop.f32.mrf.mxu0
      %v2713 = vadd.f32 0.0, %v2712
      %v2714 = vpop.f32.mrf.mxu0
      %v2715 = vadd.f32 0.0, %v2714
      %2716 = vmatmul.bf16.gmra.mxu0 %v1030
      %v2717 = vpop.f32.mrf.mxu0
      %v2718 = vadd.f32 0.0, %v2717
      %v2719 = vpop.f32.mrf.mxu0
      %v2720 = vadd.f32 0.0, %v2719
      %2721 = vmatmul.bf16.gmra.mxu0 %v1031
      %v2722 = vpop.f32.mrf.mxu0
      %v2723 = vadd.f32 0.0, %v2722
      %v2724 = vpop.f32.mrf.mxu0
      %v2725 = vadd.f32 0.0, %v2724
      %2726 = vmatmul.bf16.gmra.mxu0 %v1032
      %v2727 = vpop.f32.mrf.mxu0
      %v2728 = vadd.f32 0.0, %v2727
      %v2729 = vpop.f32.mrf.mxu0
      %v2730 = vadd.f32 0.0, %v2729
      %2731 = vmatmul.bf16.gmra.mxu0 %v1033
      %v2732 = vpop.f32.mrf.mxu0
      %v2733 = vadd.f32 0.0, %v2732
      %v2734 = vpop.f32.mrf.mxu0
      %v2735 = vadd.f32 0.0, %v2734
      %2736 = vmatmul.bf16.gmra.mxu0 %v1034
      %v2737 = vpop.f32.mrf.mxu0
      %v2738 = vadd.f32 0.0, %v2737
      %v2739 = vpop.f32.mrf.mxu0
      %v2740 = vadd.f32 0.0, %v2739
      %2741 = vmatmul.bf16.gmra.mxu0 %v1035
      %v2742 = vpop.f32.mrf.mxu0
      %v2743 = vadd.f32 0.0, %v2742
      %v2744 = vpop.f32.mrf.mxu0
      %v2745 = vadd.f32 0.0, %v2744
      %2746 = vmatmul.bf16.gmra.mxu0 %v1036
      %v2747 = vpop.f32.mrf.mxu0
      %v2748 = vadd.f32 0.0, %v2747
      %v2749 = vpop.f32.mrf.mxu0
      %v2750 = vadd.f32 0.0, %v2749
      %2751 = vmatmul.bf16.gmra.mxu0 %v1037
      %v2752 = vpop.f32.mrf.mxu0
      %v2753 = vadd.f32 0.0, %v2752
      %v2754 = vpop.f32.mrf.mxu0
      %v2755 = vadd.f32 0.0, %v2754
      %2756 = vmatmul.bf16.gmra.mxu0 %v1038
      %v2757 = vpop.f32.mrf.mxu0
      %v2758 = vadd.f32 0.0, %v2757
      %v2759 = vpop.f32.mrf.mxu0
      %v2760 = vadd.f32 0.0, %v2759
      %2761 = vmatmul.bf16.gmra.mxu0 %v1039
      %v2762 = vpop.f32.mrf.mxu0
      %v2763 = vadd.f32 0.0, %v2762
      %v2764 = vpop.f32.mrf.mxu0
      %v2765 = vadd.f32 0.0, %v2764
      %2766 = vmatmul.bf16.gmra.mxu0 %v1040
      %v2767 = vpop.f32.mrf.mxu0
      %v2768 = vadd.f32 0.0, %v2767
      %v2769 = vpop.f32.mrf.mxu0
      %v2770 = vadd.f32 0.0, %v2769
      %2771 = vmatmul.bf16.gmra.mxu0 %v1041
      %v2772 = vpop.f32.mrf.mxu0
      %v2773 = vadd.f32 0.0, %v2772
      %v2774 = vpop.f32.mrf.mxu0
      %v2775 = vadd.f32 0.0, %v2774
      %2776 = vmatmul.bf16.gmra.mxu0 %v2044
      %v2777 = vpop.f32.mrf.mxu0
      %v2778 = vadd.f32 0.0, %v2777
      %v2779 = vpop.f32.mrf.mxu0
      %v2780 = vadd.f32 0.0, %v2779
      %2781 = vmatmul.bf16.gmra.mxu0 %v2648
      %v2782 = vpop.f32.mrf.mxu0
      %v2783 = vadd.f32 0.0, %v2782
      %v2784 = vpop.f32.mrf.mxu0
      %v2785 = vadd.f32 0.0, %v2784
      %2786 = vdwg.mxu0
      %v2787 = vadd.f32 %v2573, %v2708
      %v2788 = vadd.f32 %v2574, %v2710
      %v2789 = vadd.f32 %v2575, %v2713
      %v2790 = vadd.f32 %v2576, %v2715
      %v2791 = vadd.f32 %v2577, %v2718
      %v2792 = vadd.f32 %v2578, %v2720
      %v2793 = vadd.f32 %v2579, %v2723
      %v2794 = vadd.f32 %v2580, %v2725
      %v2795 = vadd.f32 %v2581, %v2728
      %v2796 = vadd.f32 %v2582, %v2730
      %v2797 = vadd.f32 %v2583, %v2733
      %v2798 = vadd.f32 %v2584, %v2735
      %v2799 = vadd.f32 %v2585, %v2738
      %v2800 = vadd.f32 %v2586, %v2740
      %v2801 = vadd.f32 %v2587, %v2743
      %v2802 = vadd.f32 %v2588, %v2745
      %v2803 = vadd.f32 %v2589, %v2748
      %v2804 = vadd.f32 %v2590, %v2750
      %v2805 = vadd.f32 %v2591, %v2753
      %v2806 = vadd.f32 %v2592, %v2755
      %v2807 = vadd.f32 %v2593, %v2758
      %v2808 = vadd.f32 %v2594, %v2760
      %v2809 = vadd.f32 %v2595, %v2763
      %v2810 = vadd.f32 %v2596, %v2765
      %v2811 = vadd.f32 %v2597, %v2768
      %v2812 = vadd.f32 %v2598, %v2770
      %v2813 = vadd.f32 %v2599, %v2773
      %v2814 = vadd.f32 %v2600, %v2775
      %v2815 = vadd.f32 %v2601, %v2778
      %v2816 = vadd.f32 %v2602, %v2780
      %v2817 = vadd.f32 %v2603, %v2783
      %v2818 = vadd.f32 %v2604, %v2785
      %v2820 = vrot.slane %v571, 5
      %v2821 = vrot.slane %v2820, 4
      %v2822 = vrot.slane %v572, 5
      %v2823 = vsel %vm1446, %v2821, %v2822
      %v2824 = vrot.slane %v2822, 4
      %v2825 = vrot.slane %v573, 5
      %v2826 = vsel %vm1446, %v2824, %v2825
      %s2827 = scalar_lea.vmem %s3, 512
      %v2828 = vld [vmem:[%s2827] sm:$0xf]
      %v2829 = vld [vmem:[%s2827 + $0x4] sm:$0xf]
      %v2830 = vld [vmem:[%s2827 + $0x8] sm:$0xf]
      %v2831 = vld [vmem:[%s2827 + $0xc] sm:$0xf]
      %v2832 = vld [vmem:[%s2827 + $0x10] sm:$0xf]
      %v2833 = vld [vmem:[%s2827 + $0x14] sm:$0xf]
      %v2834 = vld [vmem:[%s2827 + $0x18] sm:$0xf]
      %v2835 = vld [vmem:[%s2827 + $0x1c] sm:$0xf]
      %v2836 = vld [vmem:[%s2827 + $0x20] sm:$0xf]
      %v2837 = vld [vmem:[%s2827 + $0x24] sm:$0xf]
      %v2838 = vld [vmem:[%s2827 + $0x28] sm:$0xf]
      %v2839 = vld [vmem:[%s2827 + $0x2c] sm:$0xf]
      %v2840 = vld [vmem:[%s2827 + $0x30] sm:$0xf]
      %v2841 = vld [vmem:[%s2827 + $0x34] sm:$0xf]
      %v2842 = vld [vmem:[%s2827 + $0x38] sm:$0xf]
      %v2843 = vld [vmem:[%s2827 + $0x3c] sm:$0xf]
      %v2844 = vunpack.c.l.b16 %v2823
      %v2845 = vunpack.c.l.b16 %v2826
      %v2846 = vpack.c.b16 %v2845, %v2844
      %v2864 = vunpack.c.l.b16 %v2828
      %v2865 = vunpack.c.l.b16 %v2829
      %v2866 = vunpack.c.l.b16 %v2830
      %v2867 = vunpack.c.l.b16 %v2831
      %v2868 = vunpack.c.l.b16 %v2832
      %v2869 = vunpack.c.l.b16 %v2833
      %v2870 = vunpack.c.l.b16 %v2834
      %v2871 = vunpack.c.l.b16 %v2835
      %v2872 = vunpack.c.l.b16 %v2836
      %v2873 = vunpack.c.l.b16 %v2837
      %v2874 = vunpack.c.l.b16 %v2838
      %v2875 = vunpack.c.l.b16 %v2839
      %v2876 = vunpack.c.l.b16 %v2840
      %v2877 = vunpack.c.l.b16 %v2841
      %v2878 = vunpack.c.l.b16 %v2842
      %v2879 = vunpack.c.l.b16 %v2843
      %v2880 = vpack.c.b16 %v2865, %v2864
      %v2881 = vpack.c.b16 %v2867, %v2866
      %v2882 = vpack.c.b16 %v2869, %v2868
      %v2883 = vpack.c.b16 %v2871, %v2870
      %v2884 = vpack.c.b16 %v2873, %v2872
      %v2885 = vpack.c.b16 %v2875, %v2874
      %v2886 = vpack.c.b16 %v2877, %v2876
      %v2887 = vpack.c.b16 %v2879, %v2878
      %2896 = vmatpush.bf16.msra.mxu0 %v2887
      %2897 = vmatpush.bf16.msra.mxu0 %v2886
      %2898 = vmatpush.bf16.msra.mxu0 %v2885
      %2899 = vmatpush.bf16.msra.mxu0 %v2884
      %2900 = vmatpush.bf16.msra.mxu0 %v2883
      %2901 = vmatpush.bf16.msra.mxu0 %v2882
      %2902 = vmatpush.bf16.msra.mxu0 %v2881
      %2903 = vmatpush.bf16.msra.mxu0 %v2880
      %2904 = vmatmul.bf16.gmra.mxu0 %v1610
      %v2905 = vpop.f32.mrf.mxu0
      %v2906 = vadd.f32 0.0, %v2905
      %v2907 = vpop.f32.mrf.mxu0
      %v2908 = vadd.f32 0.0, %v2907
      %2909 = vmatmul.bf16.gmra.mxu0 %v1611
      %v2910 = vpop.f32.mrf.mxu0
      %v2911 = vadd.f32 0.0, %v2910
      %v2912 = vpop.f32.mrf.mxu0
      %v2913 = vadd.f32 0.0, %v2912
      %2914 = vmatmul.bf16.gmra.mxu0 %v1612
      %v2915 = vpop.f32.mrf.mxu0
      %v2916 = vadd.f32 0.0, %v2915
      %v2917 = vpop.f32.mrf.mxu0
      %v2918 = vadd.f32 0.0, %v2917
      %2919 = vmatmul.bf16.gmra.mxu0 %v1613
      %v2920 = vpop.f32.mrf.mxu0
      %v2921 = vadd.f32 0.0, %v2920
      %v2922 = vpop.f32.mrf.mxu0
      %v2923 = vadd.f32 0.0, %v2922
      %2924 = vmatmul.bf16.gmra.mxu0 %v1614
      %v2925 = vpop.f32.mrf.mxu0
      %v2926 = vadd.f32 0.0, %v2925
      %v2927 = vpop.f32.mrf.mxu0
      %v2928 = vadd.f32 0.0, %v2927
      %2929 = vmatmul.bf16.gmra.mxu0 %v1615
      %v2930 = vpop.f32.mrf.mxu0
      %v2931 = vadd.f32 0.0, %v2930
      %v2932 = vpop.f32.mrf.mxu0
      %v2933 = vadd.f32 0.0, %v2932
      %2934 = vmatmul.bf16.gmra.mxu0 %v1616
      %v2935 = vpop.f32.mrf.mxu0
      %v2936 = vadd.f32 0.0, %v2935
      %v2937 = vpop.f32.mrf.mxu0
      %v2938 = vadd.f32 0.0, %v2937
      %2939 = vmatmul.bf16.gmra.mxu0 %v1617
      %v2940 = vpop.f32.mrf.mxu0
      %v2941 = vadd.f32 0.0, %v2940
      %v2942 = vpop.f32.mrf.mxu0
      %v2943 = vadd.f32 0.0, %v2942
      %2944 = vmatmul.bf16.gmra.mxu0 %v1618
      %v2945 = vpop.f32.mrf.mxu0
      %v2946 = vadd.f32 0.0, %v2945
      %v2947 = vpop.f32.mrf.mxu0
      %v2948 = vadd.f32 0.0, %v2947
      %2949 = vmatmul.bf16.gmra.mxu0 %v1619
      %v2950 = vpop.f32.mrf.mxu0
      %v2951 = vadd.f32 0.0, %v2950
      %v2952 = vpop.f32.mrf.mxu0
      %v2953 = vadd.f32 0.0, %v2952
      %2954 = vmatmul.bf16.gmra.mxu0 %v1620
      %v2955 = vpop.f32.mrf.mxu0
      %v2956 = vadd.f32 0.0, %v2955
      %v2957 = vpop.f32.mrf.mxu0
      %v2958 = vadd.f32 0.0, %v2957
      %2959 = vmatmul.bf16.gmra.mxu0 %v1621
      %v2960 = vpop.f32.mrf.mxu0
      %v2961 = vadd.f32 0.0, %v2960
      %v2962 = vpop.f32.mrf.mxu0
      %v2963 = vadd.f32 0.0, %v2962
      %2964 = vmatmul.bf16.gmra.mxu0 %v1622
      %v2965 = vpop.f32.mrf.mxu0
      %v2966 = vadd.f32 0.0, %v2965
      %v2967 = vpop.f32.mrf.mxu0
      %v2968 = vadd.f32 0.0, %v2967
      %2969 = vmatmul.bf16.gmra.mxu0 %v1623
      %v2970 = vpop.f32.mrf.mxu0
      %v2971 = vadd.f32 0.0, %v2970
      %v2972 = vpop.f32.mrf.mxu0
      %v2973 = vadd.f32 0.0, %v2972
      %2974 = vmatmul.bf16.gmra.mxu0 %v2242
      %v2975 = vpop.f32.mrf.mxu0
      %v2976 = vadd.f32 0.0, %v2975
      %v2977 = vpop.f32.mrf.mxu0
      %v2978 = vadd.f32 0.0, %v2977
      %2979 = vmatmul.bf16.gmra.mxu0 %v2846
      %v2980 = vpop.f32.mrf.mxu0
      %v2981 = vadd.f32 0.0, %v2980
      %v2982 = vpop.f32.mrf.mxu0
      %v2983 = vadd.f32 0.0, %v2982
      %2984 = vdwg.mxu0
      %v2985 = vadd.f32 %v2787, %v2906
      %v2986 = vadd.f32 %v2788, %v2908
      %v2987 = vadd.f32 %v2789, %v2911
      %v2988 = vadd.f32 %v2790, %v2913
      %v2989 = vadd.f32 %v2791, %v2916
      %v2990 = vadd.f32 %v2792, %v2918
      %v2991 = vadd.f32 %v2793, %v2921
      %v2992 = vadd.f32 %v2794, %v2923
      %v2993 = vadd.f32 %v2795, %v2926
      %v2994 = vadd.f32 %v2796, %v2928
      %v2995 = vadd.f32 %v2797, %v2931
      %v2996 = vadd.f32 %v2798, %v2933
      %v2997 = vadd.f32 %v2799, %v2936
      %v2998 = vadd.f32 %v2800, %v2938
      %v2999 = vadd.f32 %v2801, %v2941
      %v3000 = vadd.f32 %v2802, %v2943
      %v3001 = vadd.f32 %v2803, %v2946
      %v3002 = vadd.f32 %v2804, %v2948
      %v3003 = vadd.f32 %v2805, %v2951
      %v3004 = vadd.f32 %v2806, %v2953
      %v3005 = vadd.f32 %v2807, %v2956
      %v3006 = vadd.f32 %v2808, %v2958
      %v3007 = vadd.f32 %v2809, %v2961
      %v3008 = vadd.f32 %v2810, %v2963
      %v3009 = vadd.f32 %v2811, %v2966
      %v3010 = vadd.f32 %v2812, %v2968
      %v3011 = vadd.f32 %v2813, %v2971
      %v3012 = vadd.f32 %v2814, %v2973
      %v3013 = vadd.f32 %v2815, %v2976
      %v3014 = vadd.f32 %v2816, %v2978
      %v3015 = vadd.f32 %v2817, %v2981
      %v3016 = vadd.f32 %v2818, %v2983
      %3017 = vst [vmem:[%s264] sm:$0xff] %v2985
      %3018 = vst [vmem:[%s264 + $0x8] sm:$0xff] %v2986
      %3019 = vst [vmem:[%s264 + $0x10] sm:$0xff] %v2987
      %3020 = vst [vmem:[%s264 + $0x18] sm:$0xff] %v2988
      %3021 = vst [vmem:[%s264 + $0x20] sm:$0xff] %v2989
      %3022 = vst [vmem:[%s264 + $0x28] sm:$0xff] %v2990
      %3023 = vst [vmem:[%s264 + $0x30] sm:$0xff] %v2991
      %3024 = vst [vmem:[%s264 + $0x38] sm:$0xff] %v2992
      %3025 = vst [vmem:[%s264 + $0x40] sm:$0xff] %v2993
      %3026 = vst [vmem:[%s264 + $0x48] sm:$0xff] %v2994
      %3027 = vst [vmem:[%s264 + $0x50] sm:$0xff] %v2995
      %3028 = vst [vmem:[%s264 + $0x58] sm:$0xff] %v2996
      %3029 = vst [vmem:[%s264 + $0x60] sm:$0xff] %v2997
      %3030 = vst [vmem:[%s264 + $0x68] sm:$0xff] %v2998
      %3031 = vst [vmem:[%s264 + $0x70] sm:$0xff] %v2999
      %3032 = vst [vmem:[%s264 + $0x78] sm:$0xff] %v3000
      %3033 = vst [vmem:[%s264 + $0x80] sm:$0xff] %v3001
      %3034 = vst [vmem:[%s264 + $0x88] sm:$0xff] %v3002
      %3035 = vst [vmem:[%s264 + $0x90] sm:$0xff] %v3003
      %3036 = vst [vmem:[%s264 + $0x98] sm:$0xff] %v3004
      %3037 = vst [vmem:[%s264 + $0xa0] sm:$0xff] %v3005
      %3038 = vst [vmem:[%s264 + $0xa8] sm:$0xff] %v3006
      %3039 = vst [vmem:[%s264 + $0xb0] sm:$0xff] %v3007
      %3040 = vst [vmem:[%s264 + $0xb8] sm:$0xff] %v3008
      %3041 = vst [vmem:[%s264 + $0xc0] sm:$0xff] %v3009
      %3042 = vst [vmem:[%s264 + $0xc8] sm:$0xff] %v3010
      %3043 = vst [vmem:[%s264 + $0xd0] sm:$0xff] %v3011
      %3044 = vst [vmem:[%s264 + $0xd8] sm:$0xff] %v3012
      %3045 = vst [vmem:[%s264 + $0xe0] sm:$0xff] %v3013
      %3046 = vst [vmem:[%s264 + $0xe8] sm:$0xff] %v3014
      %3047 = vst [vmem:[%s264 + $0xf0] sm:$0xff] %v3015
      %3048 = vst [vmem:[%s264 + $0xf8] sm:$0xff] %v3016
      %v3049 = vadd.f32 %v2985, %v2986
      %v3050 = vadd.f32 %v3049, %v2987
      %v3051 = vadd.f32 %v3050, %v2988
      %v3052 = vadd.f32 %v3051, %v2989
      %v3053 = vadd.f32 %v3052, %v2990
      %v3054 = vadd.f32 %v3053, %v2991
      %v3055 = vadd.f32 %v3054, %v2992
      %v3056 = vadd.f32 %v3055, %v2993
      %v3057 = vadd.f32 %v3056, %v2994
      %v3058 = vadd.f32 %v3057, %v2995
      %v3059 = vadd.f32 %v3058, %v2996
      %v3060 = vadd.f32 %v3059, %v2997
      %v3061 = vadd.f32 %v3060, %v2998
      %v3062 = vadd.f32 %v3061, %v2999
      %v3063 = vadd.f32 %v3062, %v3000
      %v3064 = vadd.f32 %v3063, %v3001
      %v3065 = vadd.f32 %v3064, %v3002
      %v3066 = vadd.f32 %v3065, %v3003
      %v3067 = vadd.f32 %v3066, %v3004
      %v3068 = vadd.f32 %v3067, %v3005
      %v3069 = vadd.f32 %v3068, %v3006
      %v3070 = vadd.f32 %v3069, %v3007
      %v3071 = vadd.f32 %v3070, %v3008
      %v3072 = vadd.f32 %v3071, %v3009
      %v3073 = vadd.f32 %v3072, %v3010
      %v3074 = vadd.f32 %v3073, %v3011
      %v3075 = vadd.f32 %v3074, %v3012
      %v3076 = vadd.f32 %v3075, %v3013
      %v3077 = vadd.f32 %v3076, %v3014
      %v3078 = vadd.f32 %v3077, %v3015
      %v3079 = vadd.f32 %v3078, %v3016
      %v3080 = vrot.slane %v3079, 4
      %v3081 = vadd.f32 %v3079, %v3080
      %v3082 = vrot.slane %v3081, 2
      %v3083 = vadd.f32 %v3081, %v3082
      %v3084 = vrot.slane %v3083, 1
      %v3085 = vadd.f32 %v3083, %v3084
      %v3086 = vmul.f32 %v2985, %v2985
      %v3087 = vmul.f32 %v2986, %v2986
      %v3088 = vmul.f32 %v2987, %v2987
      %v3089 = vmul.f32 %v2988, %v2988
      %v3090 = vmul.f32 %v2989, %v2989
      %v3091 = vmul.f32 %v2990, %v2990
      %v3092 = vmul.f32 %v2991, %v2991
      %v3093 = vmul.f32 %v2992, %v2992
      %v3094 = vmul.f32 %v2993, %v2993
      %v3095 = vmul.f32 %v2994, %v2994
      %v3096 = vmul.f32 %v2995, %v2995
      %v3097 = vmul.f32 %v2996, %v2996
      %v3098 = vmul.f32 %v2997, %v2997
      %v3099 = vmul.f32 %v2998, %v2998
      %v3100 = vmul.f32 %v2999, %v2999
      %v3101 = vmul.f32 %v3000, %v3000
      %v3102 = vmul.f32 %v3001, %v3001
      %v3103 = vmul.f32 %v3002, %v3002
      %v3104 = vmul.f32 %v3003, %v3003
      %v3105 = vmul.f32 %v3004, %v3004
      %v3106 = vmul.f32 %v3005, %v3005
      %v3107 = vmul.f32 %v3006, %v3006
      %v3108 = vmul.f32 %v3007, %v3007
      %v3109 = vmul.f32 %v3008, %v3008
      %v3110 = vmul.f32 %v3009, %v3009
      %v3111 = vmul.f32 %v3010, %v3010
      %v3112 = vmul.f32 %v3011, %v3011
      %v3113 = vmul.f32 %v3012, %v3012
      %v3114 = vmul.f32 %v3013, %v3013
      %v3115 = vmul.f32 %v3014, %v3014
      %v3116 = vmul.f32 %v3015, %v3015
      %v3117 = vmul.f32 %v3016, %v3016
      %v3118 = vadd.f32 %v3086, %v3087
      %v3119 = vadd.f32 %v3118, %v3088
      %v3120 = vadd.f32 %v3119, %v3089
      %v3121 = vadd.f32 %v3120, %v3090
      %v3122 = vadd.f32 %v3121, %v3091
      %v3123 = vadd.f32 %v3122, %v3092
      %v3124 = vadd.f32 %v3123, %v3093
      %v3125 = vadd.f32 %v3124, %v3094
      %v3126 = vadd.f32 %v3125, %v3095
      %v3127 = vadd.f32 %v3126, %v3096
      %v3128 = vadd.f32 %v3127, %v3097
      %v3129 = vadd.f32 %v3128, %v3098
      %v3130 = vadd.f32 %v3129, %v3099
      %v3131 = vadd.f32 %v3130, %v3100
      %v3132 = vadd.f32 %v3131, %v3101
      %v3133 = vadd.f32 %v3132, %v3102
      %v3134 = vadd.f32 %v3133, %v3103
      %v3135 = vadd.f32 %v3134, %v3104
      %v3136 = vadd.f32 %v3135, %v3105
      %v3137 = vadd.f32 %v3136, %v3106
      %v3138 = vadd.f32 %v3137, %v3107
      %v3139 = vadd.f32 %v3138, %v3108
      %v3140 = vadd.f32 %v3139, %v3109
      %v3141 = vadd.f32 %v3140, %v3110
      %v3142 = vadd.f32 %v3141, %v3111
      %v3143 = vadd.f32 %v3142, %v3112
      %v3144 = vadd.f32 %v3143, %v3113
      %v3145 = vadd.f32 %v3144, %v3114
      %v3146 = vadd.f32 %v3145, %v3115
      %v3147 = vadd.f32 %v3146, %v3116
      %v3148 = vadd.f32 %v3147, %v3117
      %v3149 = vrot.slane %v3148, 4
      %v3150 = vadd.f32 %v3148, %v3149
      %v3151 = vrot.slane %v3150, 2
      %v3152 = vadd.f32 %v3150, %v3151
      %v3153 = vrot.slane %v3152, 1
      %v3154 = vadd.f32 %v3152, %v3153
      %3155 = vst [vmem:[%s269] sm:$0xff] %v3085
      %3156 = vst [vmem:[%s273] sm:$0xff] %v3154
      %s3157 = smul.u32 32, %s18
      %p3158 = scmp.lt.s32.totalorder %s3157, 63
      %s3159 = scalar_select %p3158, %s3157, 63
      %s3160 = smul.addr %s3159, 8
      %s3161 = scalar_lea.vmem %s4, %s3160
      %p3162 = scmp.lt.s32.totalorder %s18, 1
      %s3163 = scalar_select %p3162, %s18, 1
      %s3164 = smul.addr %s3163, 8
      %s3165 = scalar_lea.vmem %s5, %s3164
      %p3166 = scmp.lt.s32.totalorder %s18, 1
      %s3167 = scalar_select %p3166, %s18, 1
      %s3168 = smul.addr %s3167, 8
      %s3169 = scalar_lea.vmem %s6, %s3168
      // Predicated region
      $region37: #{dense_layer_forward.4} parent=35 // pred_check
        %p3170 = pneg %p125
      $region38: #{dense_layer_forward.4} parent=35 // pred_check_branch
        %3172 = sbr.rel (%p3170) target = $region40
      $region39: #{dense_layer_forward.4} parent=35 // pred_region
        %s3173 = smul.u32 32, %s18
      $region40: #{dense_layer_forward.4} parent=35 // pred_fallthru
        _
      // Predicated region
      $region41: #{dense_layer_forward.4} parent=35 // pred_check
        %p3174 = pneg %p151
      $region42: #{dense_layer_forward.4} parent=35 // pred_check_branch
        %3176 = sbr.rel (%p3174) target = $region44
      $region43: #{dense_layer_forward.4} parent=35 // pred_region
        _
      $region44: #{dense_layer_forward.4} parent=35 // pred_fallthru
        _
      // Predicated region
      $region45: #{dense_layer_forward.4} parent=35 // pred_check
        %p3177 = pneg %p177
      $region46: #{dense_layer_forward.4} parent=35 // pred_check_branch
        %3179 = sbr.rel (%p3177) target = $region48
      $region47: #{dense_layer_forward.4} parent=35 // pred_region
        _
      $region48: #{dense_layer_forward.4} parent=35 // pred_fallthru
        _
    $region36: #{dense_layer_forward.4} parent=5 // pred_fallthru
      _
    %p3180 = scmp.le.s32.totalorder 2, %s13
    // Predicated region
    $region49: #{dense_layer_forward.4} parent=5 // pred_check
      %p3181 = pneg %p3180
    $region50: #{dense_layer_forward.4} parent=5 // pred_check_branch
      %3183 = sbr.rel (%p3181) target = $region52
    $region51: #{dense_layer_forward.4} parent=5 // pred_region
      %s3184 = ssub.s32 %s13, 2
      // Predicated region
      $region53: #{dense_layer_forward.4} parent=51 // pred_check
        %p3185 = pneg %p131
      $region54: #{dense_layer_forward.4} parent=51 // pred_check_branch
        %3187 = sbr.rel (%p3185) target = $region56
      $region55: #{dense_layer_forward.4} parent=51 // pred_region
        %s3188 = smul.u32 32, %s19
        %p3189 = scmp.lt.s32.totalorder %s3188, 63
        %s3190 = scalar_select %p3189, %s3188, 63
        %s3191 = smul.addr %s3190, 8
        %s3192 = scalar_lea.vmem %s4, %s3191
      $region56: #{dense_layer_forward.4} parent=51 // pred_fallthru
        _
      // Predicated region
      $region57: #{dense_layer_forward.4} parent=51 // pred_check
        %p3193 = pneg %p157
      $region58: #{dense_layer_forward.4} parent=51 // pred_check_branch
        %3195 = sbr.rel (%p3193) target = $region60
      $region59: #{dense_layer_forward.4} parent=51 // pred_region
        %p3196 = scmp.lt.s32.totalorder %s19, 1
        %s3197 = scalar_select %p3196, %s19, 1
        %s3198 = smul.addr %s3197, 8
        %s3199 = scalar_lea.vmem %s5, %s3198
      $region60: #{dense_layer_forward.4} parent=51 // pred_fallthru
        _
      // Predicated region
      $region61: #{dense_layer_forward.4} parent=51 // pred_check
        %p3200 = pneg %p183
      $region62: #{dense_layer_forward.4} parent=51 // pred_check_branch
        %3202 = sbr.rel (%p3200) target = $region64
      $region63: #{dense_layer_forward.4} parent=51 // pred_region
        %p3203 = scmp.lt.s32.totalorder %s19, 1
        %s3204 = scalar_select %p3203, %s19, 1
        %s3205 = smul.addr %s3204, 8
        %s3206 = scalar_lea.vmem %s6, %s3205
      $region64: #{dense_layer_forward.4} parent=51 // pred_fallthru
        _
    $region52: #{dense_layer_forward.4} parent=5 // pred_fallthru
      _
  $region6: #{dense_layer_forward.4} parent=0 // loop_footer
    %s17 = sadd.s32 1, %s13
  $region7: #{dense_layer_forward.4} parent=0 // loop_footer_branch
    %12 = sbr.rel target = $region3
  $region8: #{dense_layer_forward.4} parent=0 // loop_exit
    _

</llo_original>
